<compile_context>
chip_gen: v7x
topology: tpu7x:2x2x1
jax: 0.10.0
libtpu: 0.0.40
codegen_flags: <defaults>
</compile_context>

<pallas_src>
import functools

import jax
import jax.numpy as jnp
from jax import lax
from jax.experimental import pallas as pl
from jax.experimental.pallas import tpu as pltpu


# ----------------------------------------------------------------------------
# Projection kernel: row-tiled matmul, weight resident (pre-transposed (Din, Dout))
# ----------------------------------------------------------------------------
def _proj_kernel(x_ref, wt_ref, o_ref):
    # x_ref: (TM, Din)   wt_ref: (Din, Dout)   o_ref: (TM, Dout)
    o_ref[...] = jnp.dot(
        x_ref[...], wt_ref[...], preferred_element_type=jnp.float32
    ).astype(o_ref.dtype)


def _proj(x2d, wt, *, tm=512):
    """(R, Din) @ (Din, Dout) -> (R, Dout), tiled over rows."""
    R, Din = x2d.shape
    Dout = wt.shape[1]
    tm = min(tm, R)
    cost = pl.CostEstimate(
        flops=2 * R * Din * Dout,
        transcendentals=0,
        bytes_accessed=(R * Din + Din * Dout + R * Dout) * x2d.dtype.itemsize,
    )
    return pl.pallas_call(
        _proj_kernel,
        out_shape=jax.ShapeDtypeStruct((R, Dout), x2d.dtype),
        grid=(pl.cdiv(R, tm),),
        in_specs=[
            pl.BlockSpec((tm, Din), lambda i: (i, 0)),
            pl.BlockSpec((Din, Dout), lambda i: (0, 0)),   # weight stays resident
        ],
        out_specs=pl.BlockSpec((tm, Dout), lambda i: (i, 0)),
        compiler_params=pltpu.CompilerParams(dimension_semantics=("parallel",)),
        cost_estimate=cost,
    )(x2d, wt)


# ----------------------------------------------------------------------------
# Fused multi-head attention kernel: one (batch, q-tile) step handles all heads
# ----------------------------------------------------------------------------
def _attn_kernel(q_ref, kv_ref, o_ref, *, heads, head_dim, scale):
    # q_ref: (1, TQ, C)   kv_ref: (1, M, 2C)   o_ref: (1, TQ, C)
    C = heads * head_dim
    q = q_ref[0].astype(jnp.float32) * scale      # fold scale into q (TQ*C muls)
    kv = kv_ref[0].astype(jnp.float32)            # split k/v inside VMEM (static slices)

    outs = []
    for h in range(heads):                        # static unroll over heads
        lo = h * head_dim
        qh = q[:, lo:lo + head_dim]               # (TQ, hd)
        kh = kv[:, lo:lo + head_dim]              # (M, hd)
        vh = kv[:, C + lo:C + lo + head_dim]      # (M, hd)

        # Contract last dims directly -> no explicit K transpose materialized.
        sim = lax.dot_general(
            qh, kh, (((1,), (1,)), ((), ())),
            preferred_element_type=jnp.float32)   # (TQ, M)

        sim = sim - jnp.max(sim, axis=-1, keepdims=True)
        p = jnp.exp(sim)
        inv = pl.reciprocal(jnp.sum(p, axis=-1, keepdims=True), approx=True)
        attn = p * inv

        outs.append(jnp.dot(attn, vh, preferred_element_type=jnp.float32))  # (TQ, hd)

    # Single lane-dense (TQ, C) store, head-major channel order (matches module).
    o_ref[0] = jnp.concatenate(outs, axis=-1).astype(o_ref.dtype)


def _attention(q, kv, *, heads, scale, tq=256):
    """q: (B, N, C), kv: (B, M, 2C) -> (B, N, C)  (channels head-major)."""
    B, N, C = q.shape
    M = kv.shape[1]
    head_dim = C // heads
    tq = min(tq, N)
    kernel = functools.partial(
        _attn_kernel, heads=heads, head_dim=head_dim, scale=scale)
    cost = pl.CostEstimate(
        flops=4 * B * N * M * C,                  # QK^T + PV across all heads
        transcendentals=B * N * M,                # exp
        bytes_accessed=(2 * B * N * C + B * M * 2 * C) * q.dtype.itemsize,
    )
    return pl.pallas_call(
        kernel,
        out_shape=jax.ShapeDtypeStruct((B, N, C), q.dtype),
        grid=(B, pl.cdiv(N, tq)),
        in_specs=[
            pl.BlockSpec((1, tq, C), lambda b, i: (b, i, 0)),
            pl.BlockSpec((1, M, 2 * C), lambda b, i: (b, 0, 0)),  # resident across q tiles
        ],
        out_specs=pl.BlockSpec((1, tq, C), lambda b, i: (b, i, 0)),
        compiler_params=pltpu.CompilerParams(
            dimension_semantics=("parallel", "parallel")),
        cost_estimate=cost,
    )(q, kv)


# ----------------------------------------------------------------------------
# Module forward (glue in plain JAX, hot paths in Pallas)
# ----------------------------------------------------------------------------
def efficient_self_attention(x, params, *, heads, reduction_ratio):
    # x: (B, C, H, W) NCHW, matching the PyTorch module interface.
    B, C, H, W = x.shape
    r = reduction_ratio
    head_dim = C // heads
    scale = head_dim ** -0.5
    Hr, Wr = H // r, W // r
    N = H * W
    M = Hr * Wr

    # Pre-transpose weights once (layout-native MXU RHS; no per-step XLU transpose).
    wq_t = params["wq"].T                                 # (C, C)
    wkv_t = params["wkv"].reshape(2 * C, C * r * r).T     # (C*r*r, 2C)
    wout_t = params["wout"].T                             # (C, C)

    # to_q: 1x1 conv == per-pixel channel matmul over B*N rows.
    x_rows = jnp.transpose(x, (0, 2, 3, 1)).reshape(B * N, C)
    q = _proj(x_rows, wq_t).reshape(B, N, C)

    # to_kv: rxr conv with stride r == matmul over flattened (C, r, r) patches.
    patches = x.reshape(B, C, Hr, r, Wr, r)
    patches = jnp.transpose(patches, (0, 2, 4, 1, 3, 5)).reshape(B * M, C * r * r)
    kv = _proj(patches, wkv_t).reshape(B, M, 2 * C)       # k/v kept fused for the kernel

    # Fused multi-head attention; k/v + head split happen inside the kernel.
    out = _attention(q, kv, heads=heads, scale=scale)     # (B, N, C), head-major channels

    # to_out: 1x1 conv.
    out = _proj(out.reshape(B * N, C), wout_t).reshape(B, H, W, C)
    return jnp.transpose(out, (0, 3, 1, 2))               # back to NCHW


# ----------------------------------------------------------------------------
# Pure-JAX reference (uses lax.conv) for correctness checking
# ----------------------------------------------------------------------------
def reference(x, params, *, heads, reduction_ratio):
    B, C, H, W = x.shape
    r = reduction_ratio
    head_dim = C // heads
    scale = head_dim ** -0.5

    def conv(inp, w, s):
        return lax.conv_general_dilated(
            inp, w, (s, s), "VALID", dimension_numbers=("NCHW", "OIHW", "NCHW"))

    q = conv(x, params["wq"][:, :, None, None], 1)
    kv = conv(x, params["wkv"], r)
    k, v = kv[:, :C], kv[:, C:]

    def rearr(t):
        b, ch, hh, ww = t.shape
        t = t.reshape(b, heads, ch // heads, hh * ww)
        return jnp.transpose(t, (0, 1, 3, 2)).reshape(b * heads, hh * ww, ch // heads)

    qh, kh, vh = map(rearr, (q, k, v))
    sim = jnp.einsum("bid,bjd->bij", qh, kh) * scale
    attn = jax.nn.softmax(sim, axis=-1)
    out = jnp.einsum("bij,bjd->bid", attn, vh)
    out = out.reshape(B, heads, H * W, head_dim)
    out = jnp.transpose(out, (0, 1, 3, 2)).reshape(B, C, H, W)
    return conv(out, params["wout"][:, :, None, None], 1)


# ----------------------------------------------------------------------------
if __name__ == "__main__":
    B, dim, H, W = 2, 32, 16, 16
    heads, reduction_ratio = 2, 2

    key = jax.random.PRNGKey(0)
    kx, kq, kkv, ko = jax.random.split(key, 4)

    x = jax.random.normal(kx, (B, dim, H, W), dtype=jnp.float32)
    params = {
        "wq": jax.random.normal(kq, (dim, dim), dtype=jnp.float32) * 0.05,
        "wkv": jax.random.normal(
            kkv, (2 * dim, dim, reduction_ratio, reduction_ratio), dtype=jnp.float32) * 0.05,
        "wout": jax.random.normal(ko, (dim, dim), dtype=jnp.float32) * 0.05,
    }

    fwd = jax.jit(functools.partial(
        efficient_self_attention, heads=heads, reduction_ratio=reduction_ratio))
    y = fwd(x, params)
    y = jax.block_until_ready(y)

    y_ref = reference(x, params, heads=heads, reduction_ratio=reduction_ratio)
    assert y.shape == (B, dim, H, W)
    # Tolerance accounts for the approx (EUP) reciprocal in the softmax denominator.
    assert jnp.allclose(y, y_ref, atol=2e-3, rtol=2e-3), "mismatch vs reference"

    print("KERNEL_OK")
</pallas_src>

<mosaic_0001>
module attributes {stable_mosaic.version = 11 : i64} {
  func.func @_proj_kernel(%arg0: i32, %arg1: memref<128x128xf32, #tpu.memory_space<vmem>>, %arg2: memref<128x64xf32, #tpu.memory_space<vmem>>, %arg3: memref<128x64xf32, #tpu.memory_space<vmem>>) attributes {dimension_semantics = [#tpu.dimension_semantics<parallel>], iteration_bounds = array<i64: 1>, scalar_prefetch = 0 : i64, scratch_operands = 0 : i64, tpu.core_type = #tpu.core_type<tc>, window_params = [{transform_indices = @transform_0, window_bounds = array<i64: 128, 128>}, {pipeline_mode = #tpu.pipeline_mode<synchronous>, transform_indices = @transform_1, window_bounds = array<i64: 128, 64>}, {transform_indices = @transform_2, window_bounds = array<i64: 128, 64>}]} {
    %c0 = arith.constant 0 : index
    %c0_0 = arith.constant 0 : index
    %0 = vector.load %arg1[%c0, %c0_0] : memref<128x128xf32, #tpu.memory_space<vmem>>, vector<128x128xf32>
    %c0_1 = arith.constant 0 : index
    %c0_2 = arith.constant 0 : index
    %1 = vector.load %arg2[%c0_1, %c0_2] : memref<128x64xf32, #tpu.memory_space<vmem>>, vector<128x64xf32>
    %cst = arith.constant dense<0.000000e+00> : vector<128x64xf32>
    %2 = tpu.matmul %0, %1, %cst {dimension_numbers = #tpu.dot_dimension_numbers<[1], [0], [0], [1], [0, 0, 1, 1], [], []>} : vector<128x128xf32>, vector<128x64xf32>, vector<128x64xf32> -> vector<128x64xf32>
    %c0_3 = arith.constant 0 : index
    %c0_4 = arith.constant 0 : index
    %3 = vector.load %arg3[%c0_3, %c0_4] : memref<128x64xf32, #tpu.memory_space<vmem>>, vector<128x64xf32>
    tpu.vector_store %arg3[%c0_3, %c0_4], %2 {strides = array<i32>} : memref<128x64xf32, #tpu.memory_space<vmem>>, vector<128x64xf32>,
    return
  }
  func.func @transform_0(%arg0: i32) -> (i32, i32) {
    %c0_i32 = arith.constant 0 : i32
    %c0_i32_0 = arith.constant 0 : i32
    return %arg0, %c0_i32 : i32, i32
  }
  func.func @transform_1(%arg0: i32) -> (i32, i32) {
    %c0_i32 = arith.constant 0 : i32
    %c0_i32_0 = arith.constant 0 : i32
    %c0_i32_1 = arith.constant 0 : i32
    return %c0_i32, %c0_i32_0 : i32, i32
  }
  func.func @transform_2(%arg0: i32) -> (i32, i32) {
    %c0_i32 = arith.constant 0 : i32
    %c0_i32_0 = arith.constant 0 : i32
    return %arg0, %c0_i32 : i32, i32
  }
}

module attributes {stable_mosaic.version = 11 : i64} {
  func.func @_attn_kernel(%arg0: i32, %arg1: i32, %arg2: memref<1x256x32xf32, #tpu.memory_space<vmem>>, %arg3: memref<1x64x64xf32, #tpu.memory_space<vmem>>, %arg4: memref<1x256x32xf32, #tpu.memory_space<vmem>>) attributes {dimension_semantics = [#tpu.dimension_semantics<parallel>, #tpu.dimension_semantics<parallel>], iteration_bounds = array<i64: 2, 1>, scalar_prefetch = 0 : i64, scratch_operands = 0 : i64, tpu.core_type = #tpu.core_type<tc>, window_params = [{transform_indices = @transform_0, window_bounds = array<i64: 1, 256, 32>}, {transform_indices = @transform_1, window_bounds = array<i64: 1, 64, 64>}, {transform_indices = @transform_2, window_bounds = array<i64: 1, 256, 32>}]} {
    %c0 = arith.constant 0 : index
    %c0_0 = arith.constant 0 : index
    %c0_1 = arith.constant 0 : index
    %0 = vector.load %arg2[%c0, %c0_0, %c0_1] : memref<1x256x32xf32, #tpu.memory_space<vmem>>, vector<1x256x32xf32>
    %1 = vector.shape_cast %0 : vector<1x256x32xf32> to vector<256x32xf32>
    %cst = arith.constant 2.500000e-01 : f32
    %2 = vector.broadcast %cst : f32 to vector<256x32xf32>
    %3 = arith.mulf %1, %2 : vector<256x32xf32>
    %c0_2 = arith.constant 0 : index
    %c0_3 = arith.constant 0 : index
    %c0_4 = arith.constant 0 : index
    %4 = vector.load %arg3[%c0_2, %c0_3, %c0_4] : memref<1x64x64xf32, #tpu.memory_space<vmem>>, vector<1x64x64xf32>
    %5 = vector.shape_cast %4 : vector<1x64x64xf32> to vector<64x64xf32>
    %6 = vector.extract_strided_slice %3 {offsets = [0, 0], sizes = [256, 16], strides = [1, 1]} : vector<256x32xf32> to vector<256x16xf32>
    %7 = vector.extract_strided_slice %5 {offsets = [0, 0], sizes = [64, 16], strides = [1, 1]} : vector<64x64xf32> to vector<64x16xf32>
    %8 = vector.extract_strided_slice %5 {offsets = [0, 32], sizes = [64, 16], strides = [1, 1]} : vector<64x64xf32> to vector<64x16xf32>
    %cst_5 = arith.constant dense<0.000000e+00> : vector<256x64xf32>
    %9 = tpu.matmul %6, %7, %cst_5 {dimension_numbers = #tpu.dot_dimension_numbers<[1], [1], [0], [0], [0, 0, 1, 0], [], []>} : vector<256x16xf32>, vector<64x16xf32>, vector<256x64xf32> -> vector<256x64xf32>
    %cst_6 = arith.constant dense<0xFF800000> : vector<256xf32>
    %10 = vector.multi_reduction <maximumf>, %9, %cst_6 [1] : vector<256x64xf32> to vector<256xf32>
    %11 = vector.shape_cast %10 : vector<256xf32> to vector<256x1xf32>
    %12 = vector.broadcast %11 : vector<256x1xf32> to vector<256x64xf32>
    %13 = arith.subf %9, %12 : vector<256x64xf32>
    %14 = math.exp %13 : vector<256x64xf32>
    %cst_7 = arith.constant dense<0.000000e+00> : vector<256xf32>
    %15 = vector.multi_reduction <add>, %14, %cst_7 [1] : vector<256x64xf32> to vector<256xf32>
    %16 = vector.shape_cast %15 : vector<256xf32> to vector<256x1xf32>
    %17 = tpu.reciprocal %16 {approx = true} : vector<256x1xf32> -> vector<256x1xf32>
    %18 = vector.broadcast %17 : vector<256x1xf32> to vector<256x64xf32>
    %19 = arith.mulf %14, %18 : vector<256x64xf32>
    %cst_8 = arith.constant dense<0.000000e+00> : vector<256x16xf32>
    %20 = tpu.matmul %19, %8, %cst_8 {dimension_numbers = #tpu.dot_dimension_numbers<[1], [0], [0], [1], [0, 0, 1, 1], [], []>} : vector<256x64xf32>, vector<64x16xf32>, vector<256x16xf32> -> vector<256x16xf32>
    %21 = vector.extract_strided_slice %3 {offsets = [0, 16], sizes = [256, 16], strides = [1, 1]} : vector<256x32xf32> to vector<256x16xf32>
    %22 = vector.extract_strided_slice %5 {offsets = [0, 16], sizes = [64, 16], strides = [1, 1]} : vector<64x64xf32> to vector<64x16xf32>
    %23 = vector.extract_strided_slice %5 {offsets = [0, 48], sizes = [64, 16], strides = [1, 1]} : vector<64x64xf32> to vector<64x16xf32>
    %cst_9 = arith.constant dense<0.000000e+00> : vector<256x64xf32>
    %24 = tpu.matmul %21, %22, %cst_9 {dimension_numbers = #tpu.dot_dimension_numbers<[1], [1], [0], [0], [0, 0, 1, 0], [], []>} : vector<256x16xf32>, vector<64x16xf32>, vector<256x64xf32> -> vector<256x64xf32>
    %cst_10 = arith.constant dense<0xFF800000> : vector<256xf32>
    %25 = vector.multi_reduction <maximumf>, %24, %cst_10 [1] : vector<256x64xf32> to vector<256xf32>
    %26 = vector.shape_cast %25 : vector<256xf32> to vector<256x1xf32>
    %27 = vector.broadcast %26 : vector<256x1xf32> to vector<256x64xf32>
    %28 = arith.subf %24, %27 : vector<256x64xf32>
    %29 = math.exp %28 : vector<256x64xf32>
    %cst_11 = arith.constant dense<0.000000e+00> : vector<256xf32>
    %30 = vector.multi_reduction <add>, %29, %cst_11 [1] : vector<256x64xf32> to vector<256xf32>
    %31 = vector.shape_cast %30 : vector<256xf32> to vector<256x1xf32>
    %32 = tpu.reciprocal %31 {approx = true} : vector<256x1xf32> -> vector<256x1xf32>
    %33 = vector.broadcast %32 : vector<256x1xf32> to vector<256x64xf32>
    %34 = arith.mulf %29, %33 : vector<256x64xf32>
    %cst_12 = arith.constant dense<0.000000e+00> : vector<256x16xf32>
    %35 = tpu.matmul %34, %23, %cst_12 {dimension_numbers = #tpu.dot_dimension_numbers<[1], [0], [0], [1], [0, 0, 1, 1], [], []>} : vector<256x64xf32>, vector<64x16xf32>, vector<256x16xf32> -> vector<256x16xf32>
    %36 = tpu.concatenate %20, %35 in 1 : vector<256x16xf32>, vector<256x16xf32> -> vector<256x32xf32>
    %c0_13 = arith.constant 0 : index
    %c0_14 = arith.constant 0 : index
    %c0_15 = arith.constant 0 : index
    %37 = vector.load %arg4[%c0_13, %c0_14, %c0_15] : memref<1x256x32xf32, #tpu.memory_space<vmem>>, vector<1x256x32xf32>
    %38 = vector.shape_cast %37 : vector<1x256x32xf32> to vector<256x32xf32>
    %39 = vector.shape_cast %36 : vector<256x32xf32> to vector<1x256x32xf32>
    tpu.vector_store %arg4[%c0_13, %c0_14, %c0_15], %39 {strides = array<i32>} : memref<1x256x32xf32, #tpu.memory_space<vmem>>, vector<1x256x32xf32>,
    return
  }
  func.func @transform_0(%arg0: i32, %arg1: i32) -> (i32, i32, i32) {
    %c0_i32 = arith.constant 0 : i32
    %c0_i32_0 = arith.constant 0 : i32
    return %arg0, %arg1, %c0_i32 : i32, i32, i32
  }
  func.func @transform_1(%arg0: i32, %arg1: i32) -> (i32, i32, i32) {
    %c0_i32 = arith.constant 0 : i32
    %c0_i32_0 = arith.constant 0 : i32
    %c0_i32_1 = arith.constant 0 : i32
    return %arg0, %c0_i32, %c0_i32_0 : i32, i32, i32
  }
  func.func @transform_2(%arg0: i32, %arg1: i32) -> (i32, i32, i32) {
    %c0_i32 = arith.constant 0 : i32
    %c0_i32_0 = arith.constant 0 : i32
    return %arg0, %arg1, %c0_i32 : i32, i32, i32
  }
}

module attributes {stable_mosaic.version = 11 : i64} {
  func.func @_proj_kernel(%arg0: i32, %arg1: memref<512x32xf32, #tpu.memory_space<vmem>>, %arg2: memref<32x32xf32, #tpu.memory_space<vmem>>, %arg3: memref<512x32xf32, #tpu.memory_space<vmem>>) attributes {dimension_semantics = [#tpu.dimension_semantics<parallel>], iteration_bounds = array<i64: 1>, scalar_prefetch = 0 : i64, scratch_operands = 0 : i64, tpu.core_type = #tpu.core_type<tc>, window_params = [{transform_indices = @transform_0, window_bounds = array<i64: 512, 32>}, {pipeline_mode = #tpu.pipeline_mode<synchronous>, transform_indices = @transform_1, window_bounds = array<i64: 32, 32>}, {transform_indices = @transform_2, window_bounds = array<i64: 512, 32>}]} {
    %c0 = arith.constant 0 : index
    %c0_0 = arith.constant 0 : index
    %0 = vector.load %arg1[%c0, %c0_0] : memref<512x32xf32, #tpu.memory_space<vmem>>, vector<512x32xf32>
    %c0_1 = arith.constant 0 : index
    %c0_2 = arith.constant 0 : index
    %1 = vector.load %arg2[%c0_1, %c0_2] : memref<32x32xf32, #tpu.memory_space<vmem>>, vector<32x32xf32>
    %cst = arith.constant dense<0.000000e+00> : vector<512x32xf32>
    %2 = tpu.matmul %0, %1, %cst {dimension_numbers = #tpu.dot_dimension_numbers<[1], [0], [0], [1], [0, 0, 1, 1], [], []>} : vector<512x32xf32>, vector<32x32xf32>, vector<512x32xf32> -> vector<512x32xf32>
    %c0_3 = arith.constant 0 : index
    %c0_4 = arith.constant 0 : index
    %3 = vector.load %arg3[%c0_3, %c0_4] : memref<512x32xf32, #tpu.memory_space<vmem>>, vector<512x32xf32>
    tpu.vector_store %arg3[%c0_3, %c0_4], %2 {strides = array<i32>} : memref<512x32xf32, #tpu.memory_space<vmem>>, vector<512x32xf32>,
    return
  }
  func.func @transform_0(%arg0: i32) -> (i32, i32) {
    %c0_i32 = arith.constant 0 : i32
    %c0_i32_0 = arith.constant 0 : i32
    return %arg0, %c0_i32 : i32, i32
  }
  func.func @transform_1(%arg0: i32) -> (i32, i32) {
    %c0_i32 = arith.constant 0 : i32
    %c0_i32_0 = arith.constant 0 : i32
    %c0_i32_1 = arith.constant 0 : i32
    return %c0_i32, %c0_i32_0 : i32, i32
  }
  func.func @transform_2(%arg0: i32) -> (i32, i32) {
    %c0_i32 = arith.constant 0 : i32
    %c0_i32_0 = arith.constant 0 : i32
    return %arg0, %c0_i32 : i32, i32
  }
}

module attributes {stable_mosaic.version = 11 : i64} {
  func.func @_proj_kernel(%arg0: i32, %arg1: memref<512x32xf32, #tpu.memory_space<vmem>>, %arg2: memref<32x32xf32, #tpu.memory_space<vmem>>, %arg3: memref<512x32xf32, #tpu.memory_space<vmem>>) attributes {dimension_semantics = [#tpu.dimension_semantics<parallel>], iteration_bounds = array<i64: 1>, scalar_prefetch = 0 : i64, scratch_operands = 0 : i64, tpu.core_type = #tpu.core_type<tc>, window_params = [{transform_indices = @transform_0, window_bounds = array<i64: 512, 32>}, {pipeline_mode = #tpu.pipeline_mode<synchronous>, transform_indices = @transform_1, window_bounds = array<i64: 32, 32>}, {transform_indices = @transform_2, window_bounds = array<i64: 512, 32>}]} {
    %c0 = arith.constant 0 : index
    %c0_0 = arith.constant 0 : index
    %0 = vector.load %arg1[%c0, %c0_0] : memref<512x32xf32, #tpu.memory_space<vmem>>, vector<512x32xf32>
    %c0_1 = arith.constant 0 : index
    %c0_2 = arith.constant 0 : index
    %1 = vector.load %arg2[%c0_1, %c0_2] : memref<32x32xf32, #tpu.memory_space<vmem>>, vector<32x32xf32>
    %cst = arith.constant dense<0.000000e+00> : vector<512x32xf32>
    %2 = tpu.matmul %0, %1, %cst {dimension_numbers = #tpu.dot_dimension_numbers<[1], [0], [0], [1], [0, 0, 1, 1], [], []>} : vector<512x32xf32>, vector<32x32xf32>, vector<512x32xf32> -> vector<512x32xf32>
    %c0_3 = arith.constant 0 : index
    %c0_4 = arith.constant 0 : index
    %3 = vector.load %arg3[%c0_3, %c0_4] : memref<512x32xf32, #tpu.memory_space<vmem>>, vector<512x32xf32>
    tpu.vector_store %arg3[%c0_3, %c0_4], %2 {strides = array<i32>} : memref<512x32xf32, #tpu.memory_space<vmem>>, vector<512x32xf32>,
    return
  }
  func.func @transform_0(%arg0: i32) -> (i32, i32) {
    %c0_i32 = arith.constant 0 : i32
    %c0_i32_0 = arith.constant 0 : i32
    return %arg0, %c0_i32 : i32, i32
  }
  func.func @transform_1(%arg0: i32) -> (i32, i32) {
    %c0_i32 = arith.constant 0 : i32
    %c0_i32_0 = arith.constant 0 : i32
    %c0_i32_1 = arith.constant 0 : i32
    return %c0_i32, %c0_i32_0 : i32, i32
  }
  func.func @transform_2(%arg0: i32) -> (i32, i32) {
    %c0_i32 = arith.constant 0 : i32
    %c0_i32_0 = arith.constant 0 : i32
    return %arg0, %c0_i32 : i32, i32
  }
}

</mosaic_0001>

<llo_original>
// kernel: efficient_self_attention.5
$region0: #{efficient_self_attention.5}
  #allocation0 [shape = 'u32[]', space=smem, size = 0x4, offset = 0x4, fixed_abs, tag = 'smem constant byte address 0x4 - core index']
  #allocation1 [shape = 'u32[144,128]{1,0:T(1,128)}', space=vmem, size = 0x12000, scoped, tag = 'internal scratch']
  %s0 = inlined_call_operand.vmem [shape: f32[128,128], index: 0, kind: input, shape index: {}]
  %s1 = inlined_call_operand.vmem [shape: f32[128,64], index: 1, kind: input, shape index: {}]
  %s2 = inlined_call_operand.vmem [shape: f32[128,64], index: 2, kind: output, shape index: {}]
  %s3 = sld [smem:[#allocation0]]
  $region18: #{efficient_self_attention.5} parent=0
    _
  %s5 = ssub.s32 1, %s3
  %s6 = scalar_select 0, %s5, %s3
  // Predicated region
  $region2: #{efficient_self_attention.5} parent=0 // pred_check
    _
  $region3: #{efficient_self_attention.5} parent=0 // pred_check_branch
    %8 = sbr.rel (0) target = $region5
  $region4: #{efficient_self_attention.5} parent=0 // pred_region
    _
  $region5: #{efficient_self_attention.5} parent=0 // pred_fallthru
    _
  // Predicated region
  $region6: #{efficient_self_attention.5} parent=0 // pred_check
    _
  $region7: #{efficient_self_attention.5} parent=0 // pred_check_branch
    %10 = sbr.rel (0) target = $region9
  $region8: #{efficient_self_attention.5} parent=0 // pred_region
    _
  $region9: #{efficient_self_attention.5} parent=0 // pred_fallthru
    _
  %v11 = vld [vmem:[%s0] sm:$0xff]
  %v12 = vld [vmem:[%s0 + $0x8] sm:$0xff]
  %v13 = vld [vmem:[%s0 + $0x10] sm:$0xff]
  %v14 = vld [vmem:[%s0 + $0x18] sm:$0xff]
  %v15 = vld [vmem:[%s0 + $0x20] sm:$0xff]
  %v16 = vld [vmem:[%s0 + $0x28] sm:$0xff]
  %v17 = vld [vmem:[%s0 + $0x30] sm:$0xff]
  %v18 = vld [vmem:[%s0 + $0x38] sm:$0xff]
  %v19 = vld [vmem:[%s0 + $0x40] sm:$0xff]
  %v20 = vld [vmem:[%s0 + $0x48] sm:$0xff]
  %v21 = vld [vmem:[%s0 + $0x50] sm:$0xff]
  %v22 = vld [vmem:[%s0 + $0x58] sm:$0xff]
  %v23 = vld [vmem:[%s0 + $0x60] sm:$0xff]
  %v24 = vld [vmem:[%s0 + $0x68] sm:$0xff]
  %v25 = vld [vmem:[%s0 + $0x70] sm:$0xff]
  %v26 = vld [vmem:[%s0 + $0x78] sm:$0xff]
  %v27 = vld [vmem:[%s1] sm:$0xff]
  %v28 = vld [vmem:[%s1 + $0x8] sm:$0xff]
  %v29 = vld [vmem:[%s1 + $0x10] sm:$0xff]
  %v30 = vld [vmem:[%s1 + $0x18] sm:$0xff]
  %v31 = vld [vmem:[%s1 + $0x20] sm:$0xff]
  %v32 = vld [vmem:[%s1 + $0x28] sm:$0xff]
  %v33 = vld [vmem:[%s1 + $0x30] sm:$0xff]
  %v34 = vld [vmem:[%s1 + $0x38] sm:$0xff]
  %v35 = vld [vmem:[%s1 + $0x40] sm:$0xff]
  %v36 = vld [vmem:[%s1 + $0x48] sm:$0xff]
  %v37 = vld [vmem:[%s1 + $0x50] sm:$0xff]
  %v38 = vld [vmem:[%s1 + $0x58] sm:$0xff]
  %v39 = vld [vmem:[%s1 + $0x60] sm:$0xff]
  %v40 = vld [vmem:[%s1 + $0x68] sm:$0xff]
  %v41 = vld [vmem:[%s1 + $0x70] sm:$0xff]
  %v42 = vld [vmem:[%s1 + $0x78] sm:$0xff]
  %43 = vmatprep.subr.mxu0 0.0
  %44 = vmatpush1.msra.mxu0 %v27
  %45 = vmatprep.subr.mxu0 0.0
  %46 = vmatpush1.msra.mxu0 %v28
  %47 = vmatprep.subr.mxu0 0.0
  %48 = vmatpush1.msra.mxu0 %v29
  %49 = vmatprep.subr.mxu0 0.0
  %50 = vmatpush1.msra.mxu0 %v30
  %51 = vmatprep.subr.mxu0 0.0
  %52 = vmatpush1.msra.mxu0 %v31
  %53 = vmatprep.subr.mxu0 0.0
  %54 = vmatpush1.msra.mxu0 %v32
  %55 = vmatprep.subr.mxu0 0.0
  %56 = vmatpush1.msra.mxu0 %v33
  %57 = vmatprep.subr.mxu0 0.0
  %58 = vmatpush1.msra.mxu0 %v34
  %59 = vmatprep.subr.mxu0 0.0
  %60 = vmatpush1.msra.mxu0 %v35
  %61 = vmatprep.subr.mxu0 0.0
  %62 = vmatpush1.msra.mxu0 %v36
  %63 = vmatprep.subr.mxu0 0.0
  %64 = vmatpush1.msra.mxu0 %v37
  %65 = vmatprep.subr.mxu0 0.0
  %66 = vmatpush1.msra.mxu0 %v38
  %67 = vmatprep.subr.mxu0 0.0
  %68 = vmatpush1.msra.mxu0 %v39
  %69 = vmatprep.subr.mxu0 0.0
  %70 = vmatpush1.msra.mxu0 %v40
  %71 = vmatprep.subr.mxu0 0.0
  %72 = vmatpush1.msra.mxu0 %v41
  %73 = vmatprep.subr.mxu0 0.0
  %74 = vmatpush1.msra.mxu0 %v42
  %75 = vmatprep.subr.mxu0 0.0
  %76 = vmatpush1.msra.mxu0 0.0
  %77 = vmatprep.subr.mxu0 0.0
  %78 = vmatpush1.msra.mxu0 0.0
  %79 = vmatprep.subr.mxu0 0.0
  %80 = vmatpush1.msra.mxu0 0.0
  %81 = vmatprep.subr.mxu0 0.0
  %82 = vmatpush1.msra.mxu0 0.0
  %83 = vmatprep.subr.mxu0 0.0
  %84 = vmatpush1.msra.mxu0 0.0
  %85 = vmatprep.subr.mxu0 0.0
  %86 = vmatpush1.msra.mxu0 0.0
  %87 = vmatprep.subr.mxu0 0.0
  %88 = vmatpush1.msra.mxu0 0.0
  %89 = vmatprep.subr.mxu0 0.0
  %90 = vmatpush1.msra.mxu0 0.0
  %91 = vmatprep.subr.mxu0 0.0
  %92 = vmatpush1.msra.mxu0 0.0
  %93 = vmatprep.subr.mxu0 0.0
  %94 = vmatpush1.msra.mxu0 0.0
  %95 = vmatprep.subr.mxu0 0.0
  %96 = vmatpush1.msra.mxu0 0.0
  %97 = vmatprep.subr.mxu0 0.0
  %98 = vmatpush1.msra.mxu0 0.0
  %99 = vmatprep.subr.mxu0 0.0
  %100 = vmatpush1.msra.mxu0 0.0
  %101 = vmatprep.subr.mxu0 0.0
  %102 = vmatpush1.msra.mxu0 0.0
  %103 = vmatprep.subr.mxu0 0.0
  %104 = vmatpush1.msra.mxu0 0.0
  %105 = vmatprep.subr.mxu0 0.0
  %106 = vmatpush1.msra.mxu0 0.0
  %107 = vmatprep.mubr.f32.mxu0 0.0
  %108 = vmatmul.mubr.f32.gmra.mrb[0].mxu0 %v11
  %v109 = vpop.f32.mrb[0].mxu0
  %v110 = vadd.f32 0.0, %v109
  %v111 = vpop.f32.mrb[0].mxu0
  %112 = vmatprep.mubr.f32.mxu0 0.0
  %113 = vmatmul.mubr.f32.gmra.mrb[0].mxu0 %v12
  %v114 = vpop.f32.mrb[0].mxu0
  %v115 = vadd.f32 0.0, %v114
  %v116 = vpop.f32.mrb[0].mxu0
  %117 = vmatprep.mubr.f32.mxu0 0.0
  %118 = vmatmul.mubr.f32.gmra.mrb[0].mxu0 %v13
  %v119 = vpop.f32.mrb[0].mxu0
  %v120 = vadd.f32 0.0, %v119
  %v121 = vpop.f32.mrb[0].mxu0
  %122 = vmatprep.mubr.f32.mxu0 0.0
  %123 = vmatmul.mubr.f32.gmra.mrb[0].mxu0 %v14
  %v124 = vpop.f32.mrb[0].mxu0
  %v125 = vadd.f32 0.0, %v124
  %v126 = vpop.f32.mrb[0].mxu0
  %127 = vmatprep.mubr.f32.mxu0 0.0
  %128 = vmatmul.mubr.f32.gmra.mrb[0].mxu0 %v15
  %v129 = vpop.f32.mrb[0].mxu0
  %v130 = vadd.f32 0.0, %v129
  %v131 = vpop.f32.mrb[0].mxu0
  %132 = vmatprep.mubr.f32.mxu0 0.0
  %133 = vmatmul.mubr.f32.gmra.mrb[0].mxu0 %v16
  %v134 = vpop.f32.mrb[0].mxu0
  %v135 = vadd.f32 0.0, %v134
  %v136 = vpop.f32.mrb[0].mxu0
  %137 = vmatprep.mubr.f32.mxu0 0.0
  %138 = vmatmul.mubr.f32.gmra.mrb[0].mxu0 %v17
  %v139 = vpop.f32.mrb[0].mxu0
  %v140 = vadd.f32 0.0, %v139
  %v141 = vpop.f32.mrb[0].mxu0
  %142 = vmatprep.mubr.f32.mxu0 0.0
  %143 = vmatmul.mubr.f32.gmra.mrb[0].mxu0 %v18
  %v144 = vpop.f32.mrb[0].mxu0
  %v145 = vadd.f32 0.0, %v144
  %v146 = vpop.f32.mrb[0].mxu0
  %147 = vmatprep.mubr.f32.mxu0 0.0
  %148 = vmatmul.mubr.f32.gmra.mrb[0].mxu0 %v19
  %v149 = vpop.f32.mrb[0].mxu0
  %v150 = vadd.f32 0.0, %v149
  %v151 = vpop.f32.mrb[0].mxu0
  %152 = vmatprep.mubr.f32.mxu0 0.0
  %153 = vmatmul.mubr.f32.gmra.mrb[0].mxu0 %v20
  %v154 = vpop.f32.mrb[0].mxu0
  %v155 = vadd.f32 0.0, %v154
  %v156 = vpop.f32.mrb[0].mxu0
  %157 = vmatprep.mubr.f32.mxu0 0.0
  %158 = vmatmul.mubr.f32.gmra.mrb[0].mxu0 %v21
  %v159 = vpop.f32.mrb[0].mxu0
  %v160 = vadd.f32 0.0, %v159
  %v161 = vpop.f32.mrb[0].mxu0
  %162 = vmatprep.mubr.f32.mxu0 0.0
  %163 = vmatmul.mubr.f32.gmra.mrb[0].mxu0 %v22
  %v164 = vpop.f32.mrb[0].mxu0
  %v165 = vadd.f32 0.0, %v164
  %v166 = vpop.f32.mrb[0].mxu0
  %167 = vmatprep.mubr.f32.mxu0 0.0
  %168 = vmatmul.mubr.f32.gmra.mrb[0].mxu0 %v23
  %v169 = vpop.f32.mrb[0].mxu0
  %v170 = vadd.f32 0.0, %v169
  %v171 = vpop.f32.mrb[0].mxu0
  %172 = vmatprep.mubr.f32.mxu0 0.0
  %173 = vmatmul.mubr.f32.gmra.mrb[0].mxu0 %v24
  %v174 = vpop.f32.mrb[0].mxu0
  %v175 = vadd.f32 0.0, %v174
  %v176 = vpop.f32.mrb[0].mxu0
  %177 = vmatprep.mubr.f32.mxu0 0.0
  %178 = vmatmul.mubr.f32.gmra.mrb[0].mxu0 %v25
  %v179 = vpop.f32.mrb[0].mxu0
  %v180 = vadd.f32 0.0, %v179
  %v181 = vpop.f32.mrb[0].mxu0
  %182 = vmatprep.mubr.f32.mxu0 0.0
  %183 = vmatmul.mubr.f32.gmra.mrb[0].mxu0 %v26
  %v184 = vpop.f32.mrb[0].mxu0
  %v185 = vadd.f32 0.0, %v184
  %v186 = vpop.f32.mrb[0].mxu0
  %187 = vdwg.mxu0
  %vm188 = vcmask 523264
  %189 = vst.msk [vmem:[%s2] sm:$0xff] %vm188, %v110
  %190 = vst.msk [vmem:[%s2 + $0x8] sm:$0xff] %vm188, %v115
  %191 = vst.msk [vmem:[%s2 + $0x10] sm:$0xff] %vm188, %v120
  %192 = vst.msk [vmem:[%s2 + $0x18] sm:$0xff] %vm188, %v125
  %193 = vst.msk [vmem:[%s2 + $0x20] sm:$0xff] %vm188, %v130
  %194 = vst.msk [vmem:[%s2 + $0x28] sm:$0xff] %vm188, %v135
  %195 = vst.msk [vmem:[%s2 + $0x30] sm:$0xff] %vm188, %v140
  %196 = vst.msk [vmem:[%s2 + $0x38] sm:$0xff] %vm188, %v145
  %197 = vst.msk [vmem:[%s2 + $0x40] sm:$0xff] %vm188, %v150
  %198 = vst.msk [vmem:[%s2 + $0x48] sm:$0xff] %vm188, %v155
  %199 = vst.msk [vmem:[%s2 + $0x50] sm:$0xff] %vm188, %v160
  %200 = vst.msk [vmem:[%s2 + $0x58] sm:$0xff] %vm188, %v165
  %201 = vst.msk [vmem:[%s2 + $0x60] sm:$0xff] %vm188, %v170
  %202 = vst.msk [vmem:[%s2 + $0x68] sm:$0xff] %vm188, %v175
  %203 = vst.msk [vmem:[%s2 + $0x70] sm:$0xff] %vm188, %v180
  %204 = vst.msk [vmem:[%s2 + $0x78] sm:$0xff] %vm188, %v185
  // Predicated region
  $region10: #{efficient_self_attention.5} parent=0 // pred_check
    _
  $region11: #{efficient_self_attention.5} parent=0 // pred_check_branch
    %206 = sbr.rel (0) target = $region13
  $region12: #{efficient_self_attention.5} parent=0 // pred_region
    _
  $region13: #{efficient_self_attention.5} parent=0 // pred_fallthru
    _
  // Predicated region
  $region14: #{efficient_self_attention.5} parent=0 // pred_check
    _
  $region15: #{efficient_self_attention.5} parent=0 // pred_check_branch
    %208 = sbr.rel (0) target = $region17
  $region16: #{efficient_self_attention.5} parent=0 // pred_region
    _
  $region17: #{efficient_self_attention.5} parent=0 // pred_fallthru
    _

// kernel: efficient_self_attention.4
$region0: #{efficient_self_attention.4}
  #allocation0 [shape = 'u32[]', space=smem, size = 0x4, offset = 0x4, fixed_abs, tag = 'smem constant byte address 0x4 - core index']
  #allocation1 [shape = 'u32[144,128]{1,0:T(1,128)}', space=vmem, size = 0x12000, scoped, tag = 'internal scratch']
  %s0 = inlined_call_operand.vmem [shape: f32[512,32], index: 0, kind: input, shape index: {}]
  %s1 = inlined_call_operand.vmem [shape: f32[32,32], index: 1, kind: input, shape index: {}]
  %s2 = inlined_call_operand.vmem [shape: f32[512,32], index: 2, kind: output, shape index: {}]
  %s3 = sld [smem:[#allocation0]]
  $region18: #{efficient_self_attention.4} parent=0
    _
  %s5 = ssub.s32 1, %s3
  %s6 = scalar_select 0, %s5, %s3
  // Predicated region
  $region2: #{efficient_self_attention.4} parent=0 // pred_check
    _
  $region3: #{efficient_self_attention.4} parent=0 // pred_check_branch
    %8 = sbr.rel (0) target = $region5
  $region4: #{efficient_self_attention.4} parent=0 // pred_region
    _
  $region5: #{efficient_self_attention.4} parent=0 // pred_fallthru
    _
  // Predicated region
  $region6: #{efficient_self_attention.4} parent=0 // pred_check
    _
  $region7: #{efficient_self_attention.4} parent=0 // pred_check_branch
    %10 = sbr.rel (0) target = $region9
  $region8: #{efficient_self_attention.4} parent=0 // pred_region
    _
  $region9: #{efficient_self_attention.4} parent=0 // pred_fallthru
    _
  %v11 = vld [vmem:[%s0] sm:$0xff]
  %v12 = vld [vmem:[%s0 + $0x8] sm:$0xff]
  %v13 = vld [vmem:[%s0 + $0x10] sm:$0xff]
  %v14 = vld [vmem:[%s0 + $0x18] sm:$0xff]
  %v15 = vld [vmem:[%s0 + $0x20] sm:$0xff]
  %v16 = vld [vmem:[%s0 + $0x28] sm:$0xff]
  %v17 = vld [vmem:[%s0 + $0x30] sm:$0xff]
  %v18 = vld [vmem:[%s0 + $0x38] sm:$0xff]
  %v19 = vld [vmem:[%s0 + $0x40] sm:$0xff]
  %v20 = vld [vmem:[%s0 + $0x48] sm:$0xff]
  %v21 = vld [vmem:[%s0 + $0x50] sm:$0xff]
  %v22 = vld [vmem:[%s0 + $0x58] sm:$0xff]
  %v23 = vld [vmem:[%s0 + $0x60] sm:$0xff]
  %v24 = vld [vmem:[%s0 + $0x68] sm:$0xff]
  %v25 = vld [vmem:[%s0 + $0x70] sm:$0xff]
  %v26 = vld [vmem:[%s0 + $0x78] sm:$0xff]
  %v27 = vld [vmem:[%s0 + $0x80] sm:$0xff]
  %v28 = vld [vmem:[%s0 + $0x88] sm:$0xff]
  %v29 = vld [vmem:[%s0 + $0x90] sm:$0xff]
  %v30 = vld [vmem:[%s0 + $0x98] sm:$0xff]
  %v31 = vld [vmem:[%s0 + $0xa0] sm:$0xff]
  %v32 = vld [vmem:[%s0 + $0xa8] sm:$0xff]
  %v33 = vld [vmem:[%s0 + $0xb0] sm:$0xff]
  %v34 = vld [vmem:[%s0 + $0xb8] sm:$0xff]
  %v35 = vld [vmem:[%s0 + $0xc0] sm:$0xff]
  %v36 = vld [vmem:[%s0 + $0xc8] sm:$0xff]
  %v37 = vld [vmem:[%s0 + $0xd0] sm:$0xff]
  %v38 = vld [vmem:[%s0 + $0xd8] sm:$0xff]
  %v39 = vld [vmem:[%s0 + $0xe0] sm:$0xff]
  %v40 = vld [vmem:[%s0 + $0xe8] sm:$0xff]
  %v41 = vld [vmem:[%s0 + $0xf0] sm:$0xff]
  %v42 = vld [vmem:[%s0 + $0xf8] sm:$0xff]
  %v43 = vld [vmem:[%s0 + $0x100] sm:$0xff]
  %v44 = vld [vmem:[%s0 + $0x108] sm:$0xff]
  %v45 = vld [vmem:[%s0 + $0x110] sm:$0xff]
  %v46 = vld [vmem:[%s0 + $0x118] sm:$0xff]
  %v47 = vld [vmem:[%s0 + $0x120] sm:$0xff]
  %v48 = vld [vmem:[%s0 + $0x128] sm:$0xff]
  %v49 = vld [vmem:[%s0 + $0x130] sm:$0xff]
  %v50 = vld [vmem:[%s0 + $0x138] sm:$0xff]
  %v51 = vld [vmem:[%s0 + $0x140] sm:$0xff]
  %v52 = vld [vmem:[%s0 + $0x148] sm:$0xff]
  %v53 = vld [vmem:[%s0 + $0x150] sm:$0xff]
  %v54 = vld [vmem:[%s0 + $0x158] sm:$0xff]
  %v55 = vld [vmem:[%s0 + $0x160] sm:$0xff]
  %v56 = vld [vmem:[%s0 + $0x168] sm:$0xff]
  %v57 = vld [vmem:[%s0 + $0x170] sm:$0xff]
  %v58 = vld [vmem:[%s0 + $0x178] sm:$0xff]
  %v59 = vld [vmem:[%s0 + $0x180] sm:$0xff]
  %v60 = vld [vmem:[%s0 + $0x188] sm:$0xff]
  %v61 = vld [vmem:[%s0 + $0x190] sm:$0xff]
  %v62 = vld [vmem:[%s0 + $0x198] sm:$0xff]
  %v63 = vld [vmem:[%s0 + $0x1a0] sm:$0xff]
  %v64 = vld [vmem:[%s0 + $0x1a8] sm:$0xff]
  %v65 = vld [vmem:[%s0 + $0x1b0] sm:$0xff]
  %v66 = vld [vmem:[%s0 + $0x1b8] sm:$0xff]
  %v67 = vld [vmem:[%s0 + $0x1c0] sm:$0xff]
  %v68 = vld [vmem:[%s0 + $0x1c8] sm:$0xff]
  %v69 = vld [vmem:[%s0 + $0x1d0] sm:$0xff]
  %v70 = vld [vmem:[%s0 + $0x1d8] sm:$0xff]
  %v71 = vld [vmem:[%s0 + $0x1e0] sm:$0xff]
  %v72 = vld [vmem:[%s0 + $0x1e8] sm:$0xff]
  %v73 = vld [vmem:[%s0 + $0x1f0] sm:$0xff]
  %v74 = vld [vmem:[%s0 + $0x1f8] sm:$0xff]
  %v75 = vld [vmem:[%s1] sm:$0xff]
  %v76 = vld [vmem:[%s1 + $0x8] sm:$0xff]
  %v77 = vld [vmem:[%s1 + $0x10] sm:$0xff]
  %v78 = vld [vmem:[%s1 + $0x18] sm:$0xff]
  %vm79 = vcmask 261120
  %v81 = vsel %vm79, %v11, 0
  %v84 = vsel %vm79, %v12, 0
  %v87 = vsel %vm79, %v13, 0
  %v90 = vsel %vm79, %v14, 0
  %v93 = vsel %vm79, %v15, 0
  %v96 = vsel %vm79, %v16, 0
  %v99 = vsel %vm79, %v17, 0
  %v102 = vsel %vm79, %v18, 0
  %v105 = vsel %vm79, %v19, 0
  %v108 = vsel %vm79, %v20, 0
  %v111 = vsel %vm79, %v21, 0
  %v114 = vsel %vm79, %v22, 0
  %v117 = vsel %vm79, %v23, 0
  %v120 = vsel %vm79, %v24, 0
  %v123 = vsel %vm79, %v25, 0
  %v126 = vsel %vm79, %v26, 0
  %v129 = vsel %vm79, %v27, 0
  %v132 = vsel %vm79, %v28, 0
  %v135 = vsel %vm79, %v29, 0
  %v138 = vsel %vm79, %v30, 0
  %v141 = vsel %vm79, %v31, 0
  %v144 = vsel %vm79, %v32, 0
  %v147 = vsel %vm79, %v33, 0
  %v150 = vsel %vm79, %v34, 0
  %v153 = vsel %vm79, %v35, 0
  %v156 = vsel %vm79, %v36, 0
  %v159 = vsel %vm79, %v37, 0
  %v162 = vsel %vm79, %v38, 0
  %v165 = vsel %vm79, %v39, 0
  %v168 = vsel %vm79, %v40, 0
  %v171 = vsel %vm79, %v41, 0
  %v174 = vsel %vm79, %v42, 0
  %v177 = vsel %vm79, %v43, 0
  %v180 = vsel %vm79, %v44, 0
  %v183 = vsel %vm79, %v45, 0
  %v186 = vsel %vm79, %v46, 0
  %v189 = vsel %vm79, %v47, 0
  %v192 = vsel %vm79, %v48, 0
  %v195 = vsel %vm79, %v49, 0
  %v198 = vsel %vm79, %v50, 0
  %v201 = vsel %vm79, %v51, 0
  %v204 = vsel %vm79, %v52, 0
  %v207 = vsel %vm79, %v53, 0
  %v210 = vsel %vm79, %v54, 0
  %v213 = vsel %vm79, %v55, 0
  %v216 = vsel %vm79, %v56, 0
  %v219 = vsel %vm79, %v57, 0
  %v222 = vsel %vm79, %v58, 0
  %v225 = vsel %vm79, %v59, 0
  %v228 = vsel %vm79, %v60, 0
  %v231 = vsel %vm79, %v61, 0
  %v234 = vsel %vm79, %v62, 0
  %v237 = vsel %vm79, %v63, 0
  %v240 = vsel %vm79, %v64, 0
  %v243 = vsel %vm79, %v65, 0
  %v246 = vsel %vm79, %v66, 0
  %v249 = vsel %vm79, %v67, 0
  %v252 = vsel %vm79, %v68, 0
  %v255 = vsel %vm79, %v69, 0
  %v258 = vsel %vm79, %v70, 0
  %v261 = vsel %vm79, %v71, 0
  %v264 = vsel %vm79, %v72, 0
  %v267 = vsel %vm79, %v73, 0
  %v270 = vsel %vm79, %v74, 0
  %272 = vmatprep.subr.mxu0 0.0
  %273 = vmatpush1.msra.mxu0 %v75
  %274 = vmatprep.subr.mxu0 0.0
  %275 = vmatpush1.msra.mxu0 %v76
  %276 = vmatprep.subr.mxu0 0.0
  %277 = vmatpush1.msra.mxu0 %v77
  %278 = vmatprep.subr.mxu0 0.0
  %279 = vmatpush1.msra.mxu0 %v78
  %280 = vmatprep.subr.mxu0 0.0
  %281 = vmatpush1.msra.mxu0 0.0
  %282 = vmatprep.subr.mxu0 0.0
  %283 = vmatpush1.msra.mxu0 0.0
  %284 = vmatprep.subr.mxu0 0.0
  %285 = vmatpush1.msra.mxu0 0.0
  %286 = vmatprep.subr.mxu0 0.0
  %287 = vmatpush1.msra.mxu0 0.0
  %288 = vmatprep.subr.mxu0 0.0
  %289 = vmatpush1.msra.mxu0 0.0
  %290 = vmatprep.subr.mxu0 0.0
  %291 = vmatpush1.msra.mxu0 0.0
  %292 = vmatprep.subr.mxu0 0.0
  %293 = vmatpush1.msra.mxu0 0.0
  %294 = vmatprep.subr.mxu0 0.0
  %295 = vmatpush1.msra.mxu0 0.0
  %296 = vmatprep.subr.mxu0 0.0
  %297 = vmatpush1.msra.mxu0 0.0
  %298 = vmatprep.subr.mxu0 0.0
  %299 = vmatpush1.msra.mxu0 0.0
  %300 = vmatprep.subr.mxu0 0.0
  %301 = vmatpush1.msra.mxu0 0.0
  %302 = vmatprep.subr.mxu0 0.0
  %303 = vmatpush1.msra.mxu0 0.0
  %304 = vmatprep.subr.mxu0 0.0
  %305 = vmatpush1.msra.mxu0 0.0
  %306 = vmatprep.subr.mxu0 0.0
  %307 = vmatpush1.msra.mxu0 0.0
  %308 = vmatprep.subr.mxu0 0.0
  %309 = vmatpush1.msra.mxu0 0.0
  %310 = vmatprep.subr.mxu0 0.0
  %311 = vmatpush1.msra.mxu0 0.0
  %312 = vmatprep.subr.mxu0 0.0
  %313 = vmatpush1.msra.mxu0 0.0
  %314 = vmatprep.subr.mxu0 0.0
  %315 = vmatpush1.msra.mxu0 0.0
  %316 = vmatprep.subr.mxu0 0.0
  %317 = vmatpush1.msra.mxu0 0.0
  %318 = vmatprep.subr.mxu0 0.0
  %319 = vmatpush1.msra.mxu0 0.0
  %320 = vmatprep.subr.mxu0 0.0
  %321 = vmatpush1.msra.mxu0 0.0
  %322 = vmatprep.subr.mxu0 0.0
  %323 = vmatpush1.msra.mxu0 0.0
  %324 = vmatprep.subr.mxu0 0.0
  %325 = vmatpush1.msra.mxu0 0.0
  %326 = vmatprep.subr.mxu0 0.0
  %327 = vmatpush1.msra.mxu0 0.0
  %328 = vmatprep.subr.mxu0 0.0
  %329 = vmatpush1.msra.mxu0 0.0
  %330 = vmatprep.subr.mxu0 0.0
  %331 = vmatpush1.msra.mxu0 0.0
  %332 = vmatprep.subr.mxu0 0.0
  %333 = vmatpush1.msra.mxu0 0.0
  %334 = vmatprep.subr.mxu0 0.0
  %335 = vmatpush1.msra.mxu0 0.0
  %336 = vmatprep.mubr.f32.mxu0 0.0
  %337 = vmatmul.mubr.f32.gmra.mrb[0].mxu0 %v81
  %v338 = vpop.f32.mrb[0].mxu0
  %v339 = vadd.f32 0.0, %v338
  %v340 = vpop.f32.mrb[0].mxu0
  %341 = vmatprep.mubr.f32.mxu0 0.0
  %342 = vmatmul.mubr.f32.gmra.mrb[0].mxu0 %v84
  %v343 = vpop.f32.mrb[0].mxu0
  %v344 = vadd.f32 0.0, %v343
  %v345 = vpop.f32.mrb[0].mxu0
  %346 = vmatprep.mubr.f32.mxu0 0.0
  %347 = vmatmul.mubr.f32.gmra.mrb[0].mxu0 %v87
  %v348 = vpop.f32.mrb[0].mxu0
  %v349 = vadd.f32 0.0, %v348
  %v350 = vpop.f32.mrb[0].mxu0
  %351 = vmatprep.mubr.f32.mxu0 0.0
  %352 = vmatmul.mubr.f32.gmra.mrb[0].mxu0 %v90
  %v353 = vpop.f32.mrb[0].mxu0
  %v354 = vadd.f32 0.0, %v353
  %v355 = vpop.f32.mrb[0].mxu0
  %356 = vmatprep.mubr.f32.mxu0 0.0
  %357 = vmatmul.mubr.f32.gmra.mrb[0].mxu0 %v93
  %v358 = vpop.f32.mrb[0].mxu0
  %v359 = vadd.f32 0.0, %v358
  %v360 = vpop.f32.mrb[0].mxu0
  %361 = vmatprep.mubr.f32.mxu0 0.0
  %362 = vmatmul.mubr.f32.gmra.mrb[0].mxu0 %v96
  %v363 = vpop.f32.mrb[0].mxu0
  %v364 = vadd.f32 0.0, %v363
  %v365 = vpop.f32.mrb[0].mxu0
  %366 = vmatprep.mubr.f32.mxu0 0.0
  %367 = vmatmul.mubr.f32.gmra.mrb[0].mxu0 %v99
  %v368 = vpop.f32.mrb[0].mxu0
  %v369 = vadd.f32 0.0, %v368
  %v370 = vpop.f32.mrb[0].mxu0
  %371 = vmatprep.mubr.f32.mxu0 0.0
  %372 = vmatmul.mubr.f32.gmra.mrb[0].mxu0 %v102
  %v373 = vpop.f32.mrb[0].mxu0
  %v374 = vadd.f32 0.0, %v373
  %v375 = vpop.f32.mrb[0].mxu0
  %376 = vmatprep.mubr.f32.mxu0 0.0
  %377 = vmatmul.mubr.f32.gmra.mrb[0].mxu0 %v105
  %v378 = vpop.f32.mrb[0].mxu0
  %v379 = vadd.f32 0.0, %v378
  %v380 = vpop.f32.mrb[0].mxu0
  %381 = vmatprep.mubr.f32.mxu0 0.0
  %382 = vmatmul.mubr.f32.gmra.mrb[0].mxu0 %v108
  %v383 = vpop.f32.mrb[0].mxu0
  %v384 = vadd.f32 0.0, %v383
  %v385 = vpop.f32.mrb[0].mxu0
  %386 = vmatprep.mubr.f32.mxu0 0.0
  %387 = vmatmul.mubr.f32.gmra.mrb[0].mxu0 %v111
  %v388 = vpop.f32.mrb[0].mxu0
  %v389 = vadd.f32 0.0, %v388
  %v390 = vpop.f32.mrb[0].mxu0
  %391 = vmatprep.mubr.f32.mxu0 0.0
  %392 = vmatmul.mubr.f32.gmra.mrb[0].mxu0 %v114
  %v393 = vpop.f32.mrb[0].mxu0
  %v394 = vadd.f32 0.0, %v393
  %v395 = vpop.f32.mrb[0].mxu0
  %396 = vmatprep.mubr.f32.mxu0 0.0
  %397 = vmatmul.mubr.f32.gmra.mrb[0].mxu0 %v117
  %v398 = vpop.f32.mrb[0].mxu0
  %v399 = vadd.f32 0.0, %v398
  %v400 = vpop.f32.mrb[0].mxu0
  %401 = vmatprep.mubr.f32.mxu0 0.0
  %402 = vmatmul.mubr.f32.gmra.mrb[0].mxu0 %v120
  %v403 = vpop.f32.mrb[0].mxu0
  %v404 = vadd.f32 0.0, %v403
  %v405 = vpop.f32.mrb[0].mxu0
  %406 = vmatprep.mubr.f32.mxu0 0.0
  %407 = vmatmul.mubr.f32.gmra.mrb[0].mxu0 %v123
  %v408 = vpop.f32.mrb[0].mxu0
  %v409 = vadd.f32 0.0, %v408
  %v410 = vpop.f32.mrb[0].mxu0
  %411 = vmatprep.mubr.f32.mxu0 0.0
  %412 = vmatmul.mubr.f32.gmra.mrb[0].mxu0 %v126
  %v413 = vpop.f32.mrb[0].mxu0
  %v414 = vadd.f32 0.0, %v413
  %v415 = vpop.f32.mrb[0].mxu0
  %416 = vmatprep.mubr.f32.mxu0 0.0
  %417 = vmatmul.mubr.f32.gmra.mrb[0].mxu0 %v129
  %v418 = vpop.f32.mrb[0].mxu0
  %v419 = vadd.f32 0.0, %v418
  %v420 = vpop.f32.mrb[0].mxu0
  %421 = vmatprep.mubr.f32.mxu0 0.0
  %422 = vmatmul.mubr.f32.gmra.mrb[0].mxu0 %v132
  %v423 = vpop.f32.mrb[0].mxu0
  %v424 = vadd.f32 0.0, %v423
  %v425 = vpop.f32.mrb[0].mxu0
  %426 = vmatprep.mubr.f32.mxu0 0.0
  %427 = vmatmul.mubr.f32.gmra.mrb[0].mxu0 %v135
  %v428 = vpop.f32.mrb[0].mxu0
  %v429 = vadd.f32 0.0, %v428
  %v430 = vpop.f32.mrb[0].mxu0
  %431 = vmatprep.mubr.f32.mxu0 0.0
  %432 = vmatmul.mubr.f32.gmra.mrb[0].mxu0 %v138
  %v433 = vpop.f32.mrb[0].mxu0
  %v434 = vadd.f32 0.0, %v433
  %v435 = vpop.f32.mrb[0].mxu0
  %436 = vmatprep.mubr.f32.mxu0 0.0
  %437 = vmatmul.mubr.f32.gmra.mrb[0].mxu0 %v141
  %v438 = vpop.f32.mrb[0].mxu0
  %v439 = vadd.f32 0.0, %v438
  %v440 = vpop.f32.mrb[0].mxu0
  %441 = vmatprep.mubr.f32.mxu0 0.0
  %442 = vmatmul.mubr.f32.gmra.mrb[0].mxu0 %v144
  %v443 = vpop.f32.mrb[0].mxu0
  %v444 = vadd.f32 0.0, %v443
  %v445 = vpop.f32.mrb[0].mxu0
  %446 = vmatprep.mubr.f32.mxu0 0.0
  %447 = vmatmul.mubr.f32.gmra.mrb[0].mxu0 %v147
  %v448 = vpop.f32.mrb[0].mxu0
  %v449 = vadd.f32 0.0, %v448
  %v450 = vpop.f32.mrb[0].mxu0
  %451 = vmatprep.mubr.f32.mxu0 0.0
  %452 = vmatmul.mubr.f32.gmra.mrb[0].mxu0 %v150
  %v453 = vpop.f32.mrb[0].mxu0
  %v454 = vadd.f32 0.0, %v453
  %v455 = vpop.f32.mrb[0].mxu0
  %456 = vmatprep.mubr.f32.mxu0 0.0
  %457 = vmatmul.mubr.f32.gmra.mrb[0].mxu0 %v153
  %v458 = vpop.f32.mrb[0].mxu0
  %v459 = vadd.f32 0.0, %v458
  %v460 = vpop.f32.mrb[0].mxu0
  %461 = vmatprep.mubr.f32.mxu0 0.0
  %462 = vmatmul.mubr.f32.gmra.mrb[0].mxu0 %v156
  %v463 = vpop.f32.mrb[0].mxu0
  %v464 = vadd.f32 0.0, %v463
  %v465 = vpop.f32.mrb[0].mxu0
  %466 = vmatprep.mubr.f32.mxu0 0.0
  %467 = vmatmul.mubr.f32.gmra.mrb[0].mxu0 %v159
  %v468 = vpop.f32.mrb[0].mxu0
  %v469 = vadd.f32 0.0, %v468
  %v470 = vpop.f32.mrb[0].mxu0
  %471 = vmatprep.mubr.f32.mxu0 0.0
  %472 = vmatmul.mubr.f32.gmra.mrb[0].mxu0 %v162
  %v473 = vpop.f32.mrb[0].mxu0
  %v474 = vadd.f32 0.0, %v473
  %v475 = vpop.f32.mrb[0].mxu0
  %476 = vmatprep.mubr.f32.mxu0 0.0
  %477 = vmatmul.mubr.f32.gmra.mrb[0].mxu0 %v165
  %v478 = vpop.f32.mrb[0].mxu0
  %v479 = vadd.f32 0.0, %v478
  %v480 = vpop.f32.mrb[0].mxu0
  %481 = vmatprep.mubr.f32.mxu0 0.0
  %482 = vmatmul.mubr.f32.gmra.mrb[0].mxu0 %v168
  %v483 = vpop.f32.mrb[0].mxu0
  %v484 = vadd.f32 0.0, %v483
  %v485 = vpop.f32.mrb[0].mxu0
  %486 = vmatprep.mubr.f32.mxu0 0.0
  %487 = vmatmul.mubr.f32.gmra.mrb[0].mxu0 %v171
  %v488 = vpop.f32.mrb[0].mxu0
  %v489 = vadd.f32 0.0, %v488
  %v490 = vpop.f32.mrb[0].mxu0
  %491 = vmatprep.mubr.f32.mxu0 0.0
  %492 = vmatmul.mubr.f32.gmra.mrb[0].mxu0 %v174
  %v493 = vpop.f32.mrb[0].mxu0
  %v494 = vadd.f32 0.0, %v493
  %v495 = vpop.f32.mrb[0].mxu0
  %496 = vmatprep.mubr.f32.mxu0 0.0
  %497 = vmatmul.mubr.f32.gmra.mrb[0].mxu0 %v177
  %v498 = vpop.f32.mrb[0].mxu0
  %v499 = vadd.f32 0.0, %v498
  %v500 = vpop.f32.mrb[0].mxu0
  %501 = vmatprep.mubr.f32.mxu0 0.0
  %502 = vmatmul.mubr.f32.gmra.mrb[0].mxu0 %v180
  %v503 = vpop.f32.mrb[0].mxu0
  %v504 = vadd.f32 0.0, %v503
  %v505 = vpop.f32.mrb[0].mxu0
  %506 = vmatprep.mubr.f32.mxu0 0.0
  %507 = vmatmul.mubr.f32.gmra.mrb[0].mxu0 %v183
  %v508 = vpop.f32.mrb[0].mxu0
  %v509 = vadd.f32 0.0, %v508
  %v510 = vpop.f32.mrb[0].mxu0
  %511 = vmatprep.mubr.f32.mxu0 0.0
  %512 = vmatmul.mubr.f32.gmra.mrb[0].mxu0 %v186
  %v513 = vpop.f32.mrb[0].mxu0
  %v514 = vadd.f32 0.0, %v513
  %v515 = vpop.f32.mrb[0].mxu0
  %516 = vmatprep.mubr.f32.mxu0 0.0
  %517 = vmatmul.mubr.f32.gmra.mrb[0].mxu0 %v189
  %v518 = vpop.f32.mrb[0].mxu0
  %v519 = vadd.f32 0.0, %v518
  %v520 = vpop.f32.mrb[0].mxu0
  %521 = vmatprep.mubr.f32.mxu0 0.0
  %522 = vmatmul.mubr.f32.gmra.mrb[0].mxu0 %v192
  %v523 = vpop.f32.mrb[0].mxu0
  %v524 = vadd.f32 0.0, %v523
  %v525 = vpop.f32.mrb[0].mxu0
  %526 = vmatprep.mubr.f32.mxu0 0.0
  %527 = vmatmul.mubr.f32.gmra.mrb[0].mxu0 %v195
  %v528 = vpop.f32.mrb[0].mxu0
  %v529 = vadd.f32 0.0, %v528
  %v530 = vpop.f32.mrb[0].mxu0
  %531 = vmatprep.mubr.f32.mxu0 0.0
  %532 = vmatmul.mubr.f32.gmra.mrb[0].mxu0 %v198
  %v533 = vpop.f32.mrb[0].mxu0
  %v534 = vadd.f32 0.0, %v533
  %v535 = vpop.f32.mrb[0].mxu0
  %536 = vmatprep.mubr.f32.mxu0 0.0
  %537 = vmatmul.mubr.f32.gmra.mrb[0].mxu0 %v201
  %v538 = vpop.f32.mrb[0].mxu0
  %v539 = vadd.f32 0.0, %v538
  %v540 = vpop.f32.mrb[0].mxu0
  %541 = vmatprep.mubr.f32.mxu0 0.0
  %542 = vmatmul.mubr.f32.gmra.mrb[0].mxu0 %v204
  %v543 = vpop.f32.mrb[0].mxu0
  %v544 = vadd.f32 0.0, %v543
  %v545 = vpop.f32.mrb[0].mxu0
  %546 = vmatprep.mubr.f32.mxu0 0.0
  %547 = vmatmul.mubr.f32.gmra.mrb[0].mxu0 %v207
  %v548 = vpop.f32.mrb[0].mxu0
  %v549 = vadd.f32 0.0, %v548
  %v550 = vpop.f32.mrb[0].mxu0
  %551 = vmatprep.mubr.f32.mxu0 0.0
  %552 = vmatmul.mubr.f32.gmra.mrb[0].mxu0 %v210
  %v553 = vpop.f32.mrb[0].mxu0
  %v554 = vadd.f32 0.0, %v553
  %v555 = vpop.f32.mrb[0].mxu0
  %556 = vmatprep.mubr.f32.mxu0 0.0
  %557 = vmatmul.mubr.f32.gmra.mrb[0].mxu0 %v213
  %v558 = vpop.f32.mrb[0].mxu0
  %v559 = vadd.f32 0.0, %v558
  %v560 = vpop.f32.mrb[0].mxu0
  %561 = vmatprep.mubr.f32.mxu0 0.0
  %562 = vmatmul.mubr.f32.gmra.mrb[0].mxu0 %v216
  %v563 = vpop.f32.mrb[0].mxu0
  %v564 = vadd.f32 0.0, %v563
  %v565 = vpop.f32.mrb[0].mxu0
  %566 = vmatprep.mubr.f32.mxu0 0.0
  %567 = vmatmul.mubr.f32.gmra.mrb[0].mxu0 %v219
  %v568 = vpop.f32.mrb[0].mxu0
  %v569 = vadd.f32 0.0, %v568
  %v570 = vpop.f32.mrb[0].mxu0
  %571 = vmatprep.mubr.f32.mxu0 0.0
  %572 = vmatmul.mubr.f32.gmra.mrb[0].mxu0 %v222
  %v573 = vpop.f32.mrb[0].mxu0
  %v574 = vadd.f32 0.0, %v573
  %v575 = vpop.f32.mrb[0].mxu0
  %576 = vmatprep.mubr.f32.mxu0 0.0
  %577 = vmatmul.mubr.f32.gmra.mrb[0].mxu0 %v225
  %v578 = vpop.f32.mrb[0].mxu0
  %v579 = vadd.f32 0.0, %v578
  %v580 = vpop.f32.mrb[0].mxu0
  %581 = vmatprep.mubr.f32.mxu0 0.0
  %582 = vmatmul.mubr.f32.gmra.mrb[0].mxu0 %v228
  %v583 = vpop.f32.mrb[0].mxu0
  %v584 = vadd.f32 0.0, %v583
  %v585 = vpop.f32.mrb[0].mxu0
  %586 = vmatprep.mubr.f32.mxu0 0.0
  %587 = vmatmul.mubr.f32.gmra.mrb[0].mxu0 %v231
  %v588 = vpop.f32.mrb[0].mxu0
  %v589 = vadd.f32 0.0, %v588
  %v590 = vpop.f32.mrb[0].mxu0
  %591 = vmatprep.mubr.f32.mxu0 0.0
  %592 = vmatmul.mubr.f32.gmra.mrb[0].mxu0 %v234
  %v593 = vpop.f32.mrb[0].mxu0
  %v594 = vadd.f32 0.0, %v593
  %v595 = vpop.f32.mrb[0].mxu0
  %596 = vmatprep.mubr.f32.mxu0 0.0
  %597 = vmatmul.mubr.f32.gmra.mrb[0].mxu0 %v237
  %v598 = vpop.f32.mrb[0].mxu0
  %v599 = vadd.f32 0.0, %v598
  %v600 = vpop.f32.mrb[0].mxu0
  %601 = vmatprep.mubr.f32.mxu0 0.0
  %602 = vmatmul.mubr.f32.gmra.mrb[0].mxu0 %v240
  %v603 = vpop.f32.mrb[0].mxu0
  %v604 = vadd.f32 0.0, %v603
  %v605 = vpop.f32.mrb[0].mxu0
  %606 = vmatprep.mubr.f32.mxu0 0.0
  %607 = vmatmul.mubr.f32.gmra.mrb[0].mxu0 %v243
  %v608 = vpop.f32.mrb[0].mxu0
  %v609 = vadd.f32 0.0, %v608
  %v610 = vpop.f32.mrb[0].mxu0
  %611 = vmatprep.mubr.f32.mxu0 0.0
  %612 = vmatmul.mubr.f32.gmra.mrb[0].mxu0 %v246
  %v613 = vpop.f32.mrb[0].mxu0
  %v614 = vadd.f32 0.0, %v613
  %v615 = vpop.f32.mrb[0].mxu0
  %616 = vmatprep.mubr.f32.mxu0 0.0
  %617 = vmatmul.mubr.f32.gmra.mrb[0].mxu0 %v249
  %v618 = vpop.f32.mrb[0].mxu0
  %v619 = vadd.f32 0.0, %v618
  %v620 = vpop.f32.mrb[0].mxu0
  %621 = vmatprep.mubr.f32.mxu0 0.0
  %622 = vmatmul.mubr.f32.gmra.mrb[0].mxu0 %v252
  %v623 = vpop.f32.mrb[0].mxu0
  %v624 = vadd.f32 0.0, %v623
  %v625 = vpop.f32.mrb[0].mxu0
  %626 = vmatprep.mubr.f32.mxu0 0.0
  %627 = vmatmul.mubr.f32.gmra.mrb[0].mxu0 %v255
  %v628 = vpop.f32.mrb[0].mxu0
  %v629 = vadd.f32 0.0, %v628
  %v630 = vpop.f32.mrb[0].mxu0
  %631 = vmatprep.mubr.f32.mxu0 0.0
  %632 = vmatmul.mubr.f32.gmra.mrb[0].mxu0 %v258
  %v633 = vpop.f32.mrb[0].mxu0
  %v634 = vadd.f32 0.0, %v633
  %v635 = vpop.f32.mrb[0].mxu0
  %636 = vmatprep.mubr.f32.mxu0 0.0
  %637 = vmatmul.mubr.f32.gmra.mrb[0].mxu0 %v261
  %v638 = vpop.f32.mrb[0].mxu0
  %v639 = vadd.f32 0.0, %v638
  %v640 = vpop.f32.mrb[0].mxu0
  %641 = vmatprep.mubr.f32.mxu0 0.0
  %642 = vmatmul.mubr.f32.gmra.mrb[0].mxu0 %v264
  %v643 = vpop.f32.mrb[0].mxu0
  %v644 = vadd.f32 0.0, %v643
  %v645 = vpop.f32.mrb[0].mxu0
  %646 = vmatprep.mubr.f32.mxu0 0.0
  %647 = vmatmul.mubr.f32.gmra.mrb[0].mxu0 %v267
  %v648 = vpop.f32.mrb[0].mxu0
  %v649 = vadd.f32 0.0, %v648
  %v650 = vpop.f32.mrb[0].mxu0
  %651 = vmatprep.mubr.f32.mxu0 0.0
  %652 = vmatmul.mubr.f32.gmra.mrb[0].mxu0 %v270
  %v653 = vpop.f32.mrb[0].mxu0
  %v654 = vadd.f32 0.0, %v653
  %v655 = vpop.f32.mrb[0].mxu0
  %656 = vdwg.mxu0
  %657 = vst.msk [vmem:[%s2] sm:$0xff] %vm79, %v339
  %658 = vst.msk [vmem:[%s2 + $0x8] sm:$0xff] %vm79, %v344
  %659 = vst.msk [vmem:[%s2 + $0x10] sm:$0xff] %vm79, %v349
  %660 = vst.msk [vmem:[%s2 + $0x18] sm:$0xff] %vm79, %v354
  %661 = vst.msk [vmem:[%s2 + $0x20] sm:$0xff] %vm79, %v359
  %662 = vst.msk [vmem:[%s2 + $0x28] sm:$0xff] %vm79, %v364
  %663 = vst.msk [vmem:[%s2 + $0x30] sm:$0xff] %vm79, %v369
  %664 = vst.msk [vmem:[%s2 + $0x38] sm:$0xff] %vm79, %v374
  %665 = vst.msk [vmem:[%s2 + $0x40] sm:$0xff] %vm79, %v379
  %666 = vst.msk [vmem:[%s2 + $0x48] sm:$0xff] %vm79, %v384
  %667 = vst.msk [vmem:[%s2 + $0x50] sm:$0xff] %vm79, %v389
  %668 = vst.msk [vmem:[%s2 + $0x58] sm:$0xff] %vm79, %v394
  %669 = vst.msk [vmem:[%s2 + $0x60] sm:$0xff] %vm79, %v399
  %670 = vst.msk [vmem:[%s2 + $0x68] sm:$0xff] %vm79, %v404
  %671 = vst.msk [vmem:[%s2 + $0x70] sm:$0xff] %vm79, %v409
  %672 = vst.msk [vmem:[%s2 + $0x78] sm:$0xff] %vm79, %v414
  %673 = vst.msk [vmem:[%s2 + $0x80] sm:$0xff] %vm79, %v419
  %674 = vst.msk [vmem:[%s2 + $0x88] sm:$0xff] %vm79, %v424
  %675 = vst.msk [vmem:[%s2 + $0x90] sm:$0xff] %vm79, %v429
  %676 = vst.msk [vmem:[%s2 + $0x98] sm:$0xff] %vm79, %v434
  %677 = vst.msk [vmem:[%s2 + $0xa0] sm:$0xff] %vm79, %v439
  %678 = vst.msk [vmem:[%s2 + $0xa8] sm:$0xff] %vm79, %v444
  %679 = vst.msk [vmem:[%s2 + $0xb0] sm:$0xff] %vm79, %v449
  %680 = vst.msk [vmem:[%s2 + $0xb8] sm:$0xff] %vm79, %v454
  %681 = vst.msk [vmem:[%s2 + $0xc0] sm:$0xff] %vm79, %v459
  %682 = vst.msk [vmem:[%s2 + $0xc8] sm:$0xff] %vm79, %v464
  %683 = vst.msk [vmem:[%s2 + $0xd0] sm:$0xff] %vm79, %v469
  %684 = vst.msk [vmem:[%s2 + $0xd8] sm:$0xff] %vm79, %v474
  %685 = vst.msk [vmem:[%s2 + $0xe0] sm:$0xff] %vm79, %v479
  %686 = vst.msk [vmem:[%s2 + $0xe8] sm:$0xff] %vm79, %v484
  %687 = vst.msk [vmem:[%s2 + $0xf0] sm:$0xff] %vm79, %v489
  %688 = vst.msk [vmem:[%s2 + $0xf8] sm:$0xff] %vm79, %v494
  %689 = vst.msk [vmem:[%s2 + $0x100] sm:$0xff] %vm79, %v499
  %690 = vst.msk [vmem:[%s2 + $0x108] sm:$0xff] %vm79, %v504
  %691 = vst.msk [vmem:[%s2 + $0x110] sm:$0xff] %vm79, %v509
  %692 = vst.msk [vmem:[%s2 + $0x118] sm:$0xff] %vm79, %v514
  %693 = vst.msk [vmem:[%s2 + $0x120] sm:$0xff] %vm79, %v519
  %694 = vst.msk [vmem:[%s2 + $0x128] sm:$0xff] %vm79, %v524
  %695 = vst.msk [vmem:[%s2 + $0x130] sm:$0xff] %vm79, %v529
  %696 = vst.msk [vmem:[%s2 + $0x138] sm:$0xff] %vm79, %v534
  %697 = vst.msk [vmem:[%s2 + $0x140] sm:$0xff] %vm79, %v539
  %698 = vst.msk [vmem:[%s2 + $0x148] sm:$0xff] %vm79, %v544
  %699 = vst.msk [vmem:[%s2 + $0x150] sm:$0xff] %vm79, %v549
  %700 = vst.msk [vmem:[%s2 + $0x158] sm:$0xff] %vm79, %v554
  %701 = vst.msk [vmem:[%s2 + $0x160] sm:$0xff] %vm79, %v559
  %702 = vst.msk [vmem:[%s2 + $0x168] sm:$0xff] %vm79, %v564
  %703 = vst.msk [vmem:[%s2 + $0x170] sm:$0xff] %vm79, %v569
  %704 = vst.msk [vmem:[%s2 + $0x178] sm:$0xff] %vm79, %v574
  %705 = vst.msk [vmem:[%s2 + $0x180] sm:$0xff] %vm79, %v579
  %706 = vst.msk [vmem:[%s2 + $0x188] sm:$0xff] %vm79, %v584
  %707 = vst.msk [vmem:[%s2 + $0x190] sm:$0xff] %vm79, %v589
  %708 = vst.msk [vmem:[%s2 + $0x198] sm:$0xff] %vm79, %v594
  %709 = vst.msk [vmem:[%s2 + $0x1a0] sm:$0xff] %vm79, %v599
  %710 = vst.msk [vmem:[%s2 + $0x1a8] sm:$0xff] %vm79, %v604
  %711 = vst.msk [vmem:[%s2 + $0x1b0] sm:$0xff] %vm79, %v609
  %712 = vst.msk [vmem:[%s2 + $0x1b8] sm:$0xff] %vm79, %v614
  %713 = vst.msk [vmem:[%s2 + $0x1c0] sm:$0xff] %vm79, %v619
  %714 = vst.msk [vmem:[%s2 + $0x1c8] sm:$0xff] %vm79, %v624
  %715 = vst.msk [vmem:[%s2 + $0x1d0] sm:$0xff] %vm79, %v629
  %716 = vst.msk [vmem:[%s2 + $0x1d8] sm:$0xff] %vm79, %v634
  %717 = vst.msk [vmem:[%s2 + $0x1e0] sm:$0xff] %vm79, %v639
  %718 = vst.msk [vmem:[%s2 + $0x1e8] sm:$0xff] %vm79, %v644
  %719 = vst.msk [vmem:[%s2 + $0x1f0] sm:$0xff] %vm79, %v649
  %720 = vst.msk [vmem:[%s2 + $0x1f8] sm:$0xff] %vm79, %v654
  // Predicated region
  $region10: #{efficient_self_attention.4} parent=0 // pred_check
    _
  $region11: #{efficient_self_attention.4} parent=0 // pred_check_branch
    %722 = sbr.rel (0) target = $region13
  $region12: #{efficient_self_attention.4} parent=0 // pred_region
    _
  $region13: #{efficient_self_attention.4} parent=0 // pred_fallthru
    _
  // Predicated region
  $region14: #{efficient_self_attention.4} parent=0 // pred_check
    _
  $region15: #{efficient_self_attention.4} parent=0 // pred_check_branch
    %724 = sbr.rel (0) target = $region17
  $region16: #{efficient_self_attention.4} parent=0 // pred_region
    _
  $region17: #{efficient_self_attention.4} parent=0 // pred_fallthru
    _

// kernel: efficient_self_attention.6
$region0: #{efficient_self_attention.6}
  #allocation0 [shape = 'u32[]', space=smem, size = 0x4, offset = 0x4, fixed_abs, tag = 'smem constant byte address 0x4 - core index']
  #allocation1 [shape = 'u32[144,128]{1,0:T(1,128)}', space=vmem, size = 0x12000, scoped, tag = 'internal scratch']
  %s0 = inlined_call_operand.vmem [shape: f32[2,256,32], index: 0, kind: input, shape index: {}]
  %s1 = inlined_call_operand.vmem [shape: f32[2,64,64], index: 1, kind: input, shape index: {}]
  %s2 = inlined_call_operand.vmem [shape: f32[2,256,32], index: 2, kind: output, shape index: {}]
  %s3 = sld [smem:[#allocation0]]
  $region41: #{efficient_self_attention.6} parent=0
    _
  %s5 = ssub.s32 1, %s3
  %s6 = scalar_select 0, %s5, %s3
  loop: start=0, step=1, limit=4
  $region2: #{efficient_self_attention.6} parent=0 // loop_pre_header
    _
  $region3: #{efficient_self_attention.6} parent=0 // loop_header
    %s8 = sphi 0, %s12
    %p9 = scmp.ge.s32.totalorder %s8, 4
    %s15 = sphi 0, %s27
    %s16 = sphi 0, %s23
    %s17 = sphi 0, %s15
    %s18 = sphi 0, %s16
    %s19 = sphi 0, %s17
    %s20 = sphi 0, %s18
    %s32 = sphi 0, %s34
    %s35 = sphi 0, %s32
    %s36 = sphi 0, %s35
    %s52 = sphi 0, %s36
    %s58 = sphi 0, %s60
    %s61 = sphi 0, %s58
    %s62 = sphi 0, %s61
    %s78 = sphi 0, %s62
    %s86 = sphi 0, %s88
    %s89 = sphi 0, %s86
    %s90 = sphi 0, %s89
    %s106 = sphi 0, %s90
  $region4: #{efficient_self_attention.6} parent=0 // loop_header_branch
    %11 = sbr.rel (%p9) target = $region8
  $region5: #{efficient_self_attention.6} parent=0 // loop_body
    %s13 = ssub.s32 %s8, 1
    %s14 = ssub.s32 %s8, 2
    %s21 = sadd.s32 1, %s16
    %p22 = scmp.ge.s32.totalorder %s21, 1
    %s23 = scalar_select %p22, 0, %s21
    %s24 = sadd.s32 1, %s15
    %s25 = scalar_select %p22, %s24, %s15
    %p26 = scmp.ge.s32.totalorder %s25, 2
    %s27 = scalar_select %p26, 0, %s25
    %s28 = ssub.s32 %s15, %s27
    %s29 = ssub.s32 %s16, %s23
    %s30 = sor.u32 %s28, %s29
    %p31 = scmp.eq.s32.totalorder %s30, 0
    %s33 = sadd.s32 %s32, 1
    %s34 = scalar_select %p31, %s32, %s33
    %p37 = pneg %p31
    %p38 = scmp.eq.s32.totalorder %s8, 1
    %p39 = por %p37, %p38
    %p40 = scmp.ne.s32.totalorder %s32, %s35
    %p41 = scmp.eq.s32.totalorder %s8, 0
    %p42 = por %p40, %p41
    %p43 = scmp.ne.s32.totalorder %s32, %s35
    %p44 = scmp.eq.s32.totalorder %s13, 1
    %p45 = por %p43, %p44
    %p46 = scmp.ne.s32.totalorder %s35, %s36
    %p47 = scmp.eq.s32.totalorder %s13, 0
    %p48 = por %p46, %p47
    %p49 = scmp.ne.s32.totalorder %s35, %s36
    %p50 = scmp.eq.s32.totalorder %s14, 1
    %p51 = por %p49, %p50
    %p53 = scmp.ne.s32.totalorder %s36, %s52
    %p54 = scmp.eq.s32.totalorder %s14, 0
    %p55 = por %p53, %p54
    %s56 = ssub.s32 %s15, %s27
    %p57 = scmp.eq.s32.totalorder %s56, 0
    %s59 = sadd.s32 %s58, 1
    %s60 = scalar_select %p57, %s58, %s59
    %p63 = pneg %p57
    %p64 = scmp.eq.s32.totalorder %s8, 1
    %p65 = por %p63, %p64
    %p66 = scmp.ne.s32.totalorder %s58, %s61
    %p67 = scmp.eq.s32.totalorder %s8, 0
    %p68 = por %p66, %p67
    %p69 = scmp.ne.s32.totalorder %s58, %s61
    %p70 = scmp.eq.s32.totalorder %s13, 1
    %p71 = por %p69, %p70
    %p72 = scmp.ne.s32.totalorder %s61, %s62
    %p73 = scmp.eq.s32.totalorder %s13, 0
    %p74 = por %p72, %p73
    %p75 = scmp.ne.s32.totalorder %s61, %s62
    %p76 = scmp.eq.s32.totalorder %s14, 1
    %p77 = por %p75, %p76
    %p79 = scmp.ne.s32.totalorder %s62, %s78
    %p80 = scmp.eq.s32.totalorder %s14, 0
    %p81 = por %p79, %p80
    %s82 = ssub.s32 %s15, %s27
    %s83 = ssub.s32 %s16, %s23
    %s84 = sor.u32 %s82, %s83
    %p85 = scmp.eq.s32.totalorder %s84, 0
    %s87 = sadd.s32 %s86, 1
    %s88 = scalar_select %p85, %s86, %s87
    %p91 = pneg %p85
    %p92 = scmp.eq.s32.totalorder %s8, 1
    %p93 = por %p91, %p92
    %p94 = scmp.ne.s32.totalorder %s86, %s89
    %p95 = scmp.eq.s32.totalorder %s8, 0
    %p96 = por %p94, %p95
    %p97 = scmp.ne.s32.totalorder %s86, %s89
    %p98 = scmp.eq.s32.totalorder %s13, 1
    %p99 = por %p97, %p98
    %p100 = scmp.ne.s32.totalorder %s89, %s90
    %p101 = scmp.eq.s32.totalorder %s13, 0
    %p102 = por %p100, %p101
    %p103 = scmp.ne.s32.totalorder %s89, %s90
    %p104 = scmp.eq.s32.totalorder %s14, 1
    %p105 = por %p103, %p104
    %p107 = scmp.ne.s32.totalorder %s90, %s106
    %p108 = scmp.eq.s32.totalorder %s14, 0
    %p109 = por %p107, %p108
    %p110 = scmp.le.s32.totalorder 1, %s8
    %p111 = scmp.lt.s32.totalorder %s8, 3
    %p112 = pnand %p110, %p111
    %p113 = pneg %p112
    // Predicated region
    $region9: #{efficient_self_attention.6} parent=5 // pred_check
      _
    $region10: #{efficient_self_attention.6} parent=5 // pred_check_branch
      %115 = sbr.rel (%p112) target = $region12
    $region11: #{efficient_self_attention.6} parent=5 // pred_region
      %s116 = ssub.s32 %s8, 1
    $region12: #{efficient_self_attention.6} parent=5 // pred_fallthru
      _
    %p117 = scmp.lt.s32.totalorder %s8, 2
    // Predicated region
    $region13: #{efficient_self_attention.6} parent=5 // pred_check
      %p118 = pneg %p117
    $region14: #{efficient_self_attention.6} parent=5 // pred_check_branch
      %120 = sbr.rel (%p118) target = $region16
    $region15: #{efficient_self_attention.6} parent=5 // pred_region
      // Predicated region
      $region17: #{efficient_self_attention.6} parent=15 // pred_check
        %p121 = pneg %p42
      $region18: #{efficient_self_attention.6} parent=15 // pred_check_branch
        %123 = sbr.rel (%p121) target = $region20
      $region19: #{efficient_self_attention.6} parent=15 // pred_region
        %s124 = smul.u32 32, %s16
        %p125 = scmp.lt.s32.totalorder %s15, 1
        %s126 = scalar_select %p125, %s15, 1
        %p127 = scmp.lt.s32.totalorder %s124, 31
        %s128 = scalar_select %p127, %s124, 31
        %s129 = smul.addr %s126, 32
        %s130 = sadd.s32 %s128, %s129
        %s131 = smul.addr %s130, 8
        %s132 = scalar_lea.vmem %s0, %s131
        %s133 = smul.u32 32, %s16
      $region20: #{efficient_self_attention.6} parent=15 // pred_fallthru
        _
      // Predicated region
      $region21: #{efficient_self_attention.6} parent=15 // pred_check
        %p134 = pneg %p68
      $region22: #{efficient_self_attention.6} parent=15 // pred_check_branch
        %136 = sbr.rel (%p134) target = $region24
      $region23: #{efficient_self_attention.6} parent=15 // pred_region
        %p137 = scmp.lt.s32.totalorder %s15, 1
        %s138 = scalar_select %p137, %s15, 1
        %s139 = smul.addr %s138, 8
        %s140 = smul.addr %s139, 8
        %s141 = scalar_lea.vmem %s1, %s140
      $region24: #{efficient_self_attention.6} parent=15 // pred_fallthru
        _
    $region16: #{efficient_self_attention.6} parent=5 // pred_fallthru
      _
    %p142 = scmp.le.s32.totalorder 1, %s8
    %p143 = scmp.lt.s32.totalorder %s8, 3
    %p144 = pnand %p142, %p143
    %p145 = pneg %p144
    // Predicated region
    $region25: #{efficient_self_attention.6} parent=5 // pred_check
      _
    $region26: #{efficient_self_attention.6} parent=5 // pred_check_branch
      %147 = sbr.rel (%p144) target = $region28
    $region27: #{efficient_self_attention.6} parent=5 // pred_region
      %s148 = ssub.s32 %s8, 1
      %s149 = smul.u32 32, %s18
      %p150 = scmp.lt.s32.totalorder %s17, 1
      %s151 = scalar_select %p150, %s17, 1
      %p152 = scmp.lt.s32.totalorder %s149, 31
      %s153 = scalar_select %p152, %s149, 31
      %s154 = smul.addr %s151, 32
      %s155 = sadd.s32 %s153, %s154
      %s156 = smul.addr %s155, 8
      %s157 = scalar_lea.vmem %s0, %s156
      %p158 = pneg %p48
      %p159 = pneg %p45
      %p160 = scmp.lt.s32.totalorder %s17, 1
      %s161 = scalar_select %p160, %s17, 1
      %s162 = smul.addr %s161, 8
      %s163 = smul.addr %s162, 8
      %s164 = scalar_lea.vmem %s1, %s163
      %p165 = pneg %p74
      %p166 = pneg %p71
      %p167 = pneg %p102
      %p168 = pneg %p99
      %s169 = smul.u32 32, %s18
      %p170 = scmp.lt.s32.totalorder %s17, 1
      %s171 = scalar_select %p170, %s17, 1
      %p172 = scmp.lt.s32.totalorder %s169, 31
      %s173 = scalar_select %p172, %s169, 31
      %s174 = smul.addr %s171, 32
      %s175 = sadd.s32 %s173, %s174
      %s176 = smul.addr %s175, 8
      %s177 = scalar_lea.vmem %s2, %s176
      %s178 = smul.u32 32, %s18
      %p179 = scmp.lt.s32.totalorder %s17, 1
      %s180 = scalar_select %p179, %s17, 1
      %p181 = scmp.lt.s32.totalorder %s178, 31
      %s182 = scalar_select %p181, %s178, 31
      %s183 = smul.addr %s180, 32
      %s184 = sadd.s32 %s182, %s183
      %s185 = smul.addr %s184, 8
      %s186 = scalar_lea.vmem %s0, %s185
      %s187 = smul.u32 32, %s18
      %p188 = scmp.lt.s32.totalorder %s17, 1
      %s189 = scalar_select %p188, %s17, 1
      %s190 = smul.addr %s189, 8
      %s191 = smul.addr %s190, 8
      %s192 = scalar_lea.vmem %s1, %s191
      %s193 = smul.u32 32, %s18
      %p194 = scmp.lt.s32.totalorder %s17, 1
      %s195 = scalar_select %p194, %s17, 1
      %p196 = scmp.lt.s32.totalorder %s193, 31
      %s197 = scalar_select %p196, %s193, 31
      %s198 = smul.addr %s195, 32
      %s199 = sadd.s32 %s197, %s198
      %s200 = smul.addr %s199, 8
      %s201 = scalar_lea.vmem %s2, %s200
      %s202 = smul.u32 32, %s18
      %v203 = vld [vmem:[%s186] sm:$0xff]
      %v204 = vld [vmem:[%s186 + $0x8] sm:$0xff]
      %v205 = vld [vmem:[%s186 + $0x10] sm:$0xff]
      %v206 = vld [vmem:[%s186 + $0x18] sm:$0xff]
      %v207 = vld [vmem:[%s186 + $0x20] sm:$0xff]
      %v208 = vld [vmem:[%s186 + $0x28] sm:$0xff]
      %v209 = vld [vmem:[%s186 + $0x30] sm:$0xff]
      %v210 = vld [vmem:[%s186 + $0x38] sm:$0xff]
      %v211 = vld [vmem:[%s186 + $0x40] sm:$0xff]
      %v212 = vld [vmem:[%s186 + $0x48] sm:$0xff]
      %v213 = vld [vmem:[%s186 + $0x50] sm:$0xff]
      %v214 = vld [vmem:[%s186 + $0x58] sm:$0xff]
      %v215 = vld [vmem:[%s186 + $0x60] sm:$0xff]
      %v216 = vld [vmem:[%s186 + $0x68] sm:$0xff]
      %v217 = vld [vmem:[%s186 + $0x70] sm:$0xff]
      %v218 = vld [vmem:[%s186 + $0x78] sm:$0xff]
      %v219 = vld [vmem:[%s186 + $0x80] sm:$0xff]
      %v220 = vld [vmem:[%s186 + $0x88] sm:$0xff]
      %v221 = vld [vmem:[%s186 + $0x90] sm:$0xff]
      %v222 = vld [vmem:[%s186 + $0x98] sm:$0xff]
      %v223 = vld [vmem:[%s186 + $0xa0] sm:$0xff]
      %v224 = vld [vmem:[%s186 + $0xa8] sm:$0xff]
      %v225 = vld [vmem:[%s186 + $0xb0] sm:$0xff]
      %v226 = vld [vmem:[%s186 + $0xb8] sm:$0xff]
      %v227 = vld [vmem:[%s186 + $0xc0] sm:$0xff]
      %v228 = vld [vmem:[%s186 + $0xc8] sm:$0xff]
      %v229 = vld [vmem:[%s186 + $0xd0] sm:$0xff]
      %v230 = vld [vmem:[%s186 + $0xd8] sm:$0xff]
      %v231 = vld [vmem:[%s186 + $0xe0] sm:$0xff]
      %v232 = vld [vmem:[%s186 + $0xe8] sm:$0xff]
      %v233 = vld [vmem:[%s186 + $0xf0] sm:$0xff]
      %v234 = vld [vmem:[%s186 + $0xf8] sm:$0xff]
      %v235 = vmul.f32 %v203, 0.25
      %v236 = vmul.f32 %v204, 0.25
      %v237 = vmul.f32 %v205, 0.25
      %v238 = vmul.f32 %v206, 0.25
      %v239 = vmul.f32 %v207, 0.25
      %v240 = vmul.f32 %v208, 0.25
      %v241 = vmul.f32 %v209, 0.25
      %v242 = vmul.f32 %v210, 0.25
      %v243 = vmul.f32 %v211, 0.25
      %v244 = vmul.f32 %v212, 0.25
      %v245 = vmul.f32 %v213, 0.25
      %v246 = vmul.f32 %v214, 0.25
      %v247 = vmul.f32 %v215, 0.25
      %v248 = vmul.f32 %v216, 0.25
      %v249 = vmul.f32 %v217, 0.25
      %v250 = vmul.f32 %v218, 0.25
      %v251 = vmul.f32 %v219, 0.25
      %v252 = vmul.f32 %v220, 0.25
      %v253 = vmul.f32 %v221, 0.25
      %v254 = vmul.f32 %v222, 0.25
      %v255 = vmul.f32 %v223, 0.25
      %v256 = vmul.f32 %v224, 0.25
      %v257 = vmul.f32 %v225, 0.25
      %v258 = vmul.f32 %v226, 0.25
      %v259 = vmul.f32 %v227, 0.25
      %v260 = vmul.f32 %v228, 0.25
      %v261 = vmul.f32 %v229, 0.25
      %v262 = vmul.f32 %v230, 0.25
      %v263 = vmul.f32 %v231, 0.25
      %v264 = vmul.f32 %v232, 0.25
      %v265 = vmul.f32 %v233, 0.25
      %v266 = vmul.f32 %v234, 0.25
      %v267 = vld [vmem:[%s192] sm:$0xff]
      %v268 = vld [vmem:[%s192 + $0x8] sm:$0xff]
      %v269 = vld [vmem:[%s192 + $0x10] sm:$0xff]
      %v270 = vld [vmem:[%s192 + $0x18] sm:$0xff]
      %v271 = vld [vmem:[%s192 + $0x20] sm:$0xff]
      %v272 = vld [vmem:[%s192 + $0x28] sm:$0xff]
      %v273 = vld [vmem:[%s192 + $0x30] sm:$0xff]
      %v274 = vld [vmem:[%s192 + $0x38] sm:$0xff]
      %vm275 = vcmask 130048
      %v277 = vsel %vm275, %v235, 0
      %v280 = vsel %vm275, %v236, 0
      %v283 = vsel %vm275, %v237, 0
      %v286 = vsel %vm275, %v238, 0
      %v289 = vsel %vm275, %v239, 0
      %v292 = vsel %vm275, %v240, 0
      %v295 = vsel %vm275, %v241, 0
      %v298 = vsel %vm275, %v242, 0
      %v301 = vsel %vm275, %v243, 0
      %v304 = vsel %vm275, %v244, 0
      %v307 = vsel %vm275, %v245, 0
      %v310 = vsel %vm275, %v246, 0
      %v313 = vsel %vm275, %v247, 0
      %v316 = vsel %vm275, %v248, 0
      %v319 = vsel %vm275, %v249, 0
      %v322 = vsel %vm275, %v250, 0
      %v325 = vsel %vm275, %v251, 0
      %v328 = vsel %vm275, %v252, 0
      %v331 = vsel %vm275, %v253, 0
      %v334 = vsel %vm275, %v254, 0
      %v337 = vsel %vm275, %v255, 0
      %v340 = vsel %vm275, %v256, 0
      %v343 = vsel %vm275, %v257, 0
      %v346 = vsel %vm275, %v258, 0
      %v349 = vsel %vm275, %v259, 0
      %v352 = vsel %vm275, %v260, 0
      %v355 = vsel %vm275, %v261, 0
      %v358 = vsel %vm275, %v262, 0
      %v361 = vsel %vm275, %v263, 0
      %v364 = vsel %vm275, %v264, 0
      %v367 = vsel %vm275, %v265, 0
      %v370 = vsel %vm275, %v266, 0
      %v373 = vsel %vm275, %v267, 0
      %v376 = vsel %vm275, %v268, 0
      %v379 = vsel %vm275, %v269, 0
      %v382 = vsel %vm275, %v270, 0
      %v385 = vsel %vm275, %v271, 0
      %v388 = vsel %vm275, %v272, 0
      %v391 = vsel %vm275, %v273, 0
      %v394 = vsel %vm275, %v274, 0
      %396 = vmatprep.subr.mxu0 0.0
      %397 = vmatpush1.xpose.msra.mxu0 %v373
      %398 = vmatprep.subr.mxu0 0.0
      %399 = vmatpush1.xpose.msra.mxu0 %v376
      %400 = vmatprep.subr.mxu0 0.0
      %401 = vmatpush1.xpose.msra.mxu0 %v379
      %402 = vmatprep.subr.mxu0 0.0
      %403 = vmatpush1.xpose.msra.mxu0 %v382
      %404 = vmatprep.subr.mxu0 0.0
      %405 = vmatpush1.xpose.msra.mxu0 %v385
      %406 = vmatprep.subr.mxu0 0.0
      %407 = vmatpush1.xpose.msra.mxu0 %v388
      %408 = vmatprep.subr.mxu0 0.0
      %409 = vmatpush1.xpose.msra.mxu0 %v391
      %410 = vmatprep.subr.mxu0 0.0
      %411 = vmatpush1.xpose.msra.mxu0 %v394
      %412 = vmatprep.subr.mxu0 0.0
      %413 = vmatpush1.xpose.msra.mxu0 0.0
      %414 = vmatprep.subr.mxu0 0.0
      %415 = vmatpush1.xpose.msra.mxu0 0.0
      %416 = vmatprep.subr.mxu0 0.0
      %417 = vmatpush1.xpose.msra.mxu0 0.0
      %418 = vmatprep.subr.mxu0 0.0
      %419 = vmatpush1.xpose.msra.mxu0 0.0
      %420 = vmatprep.subr.mxu0 0.0
      %421 = vmatpush1.xpose.msra.mxu0 0.0
      %422 = vmatprep.subr.mxu0 0.0
      %423 = vmatpush1.xpose.msra.mxu0 0.0
      %424 = vmatprep.subr.mxu0 0.0
      %425 = vmatpush1.xpose.msra.mxu0 0.0
      %426 = vmatprep.subr.mxu0 0.0
      %427 = vmatpush1.xpose.msra.mxu0 0.0
      %428 = vmatprep.subr.mxu0 0.0
      %429 = vmatpush1.xpose.msra.mxu0 0.0
      %430 = vmatprep.subr.mxu0 0.0
      %431 = vmatpush1.xpose.msra.mxu0 0.0
      %432 = vmatprep.subr.mxu0 0.0
      %433 = vmatpush1.xpose.msra.mxu0 0.0
      %434 = vmatprep.subr.mxu0 0.0
      %435 = vmatpush1.xpose.msra.mxu0 0.0
      %436 = vmatprep.subr.mxu0 0.0
      %437 = vmatpush1.xpose.msra.mxu0 0.0
      %438 = vmatprep.subr.mxu0 0.0
      %439 = vmatpush1.xpose.msra.mxu0 0.0
      %440 = vmatprep.subr.mxu0 0.0
      %441 = vmatpush1.xpose.msra.mxu0 0.0
      %442 = vmatprep.subr.mxu0 0.0
      %443 = vmatpush1.xpose.msra.mxu0 0.0
      %444 = vmatprep.subr.mxu0 0.0
      %445 = vmatpush1.xpose.msra.mxu0 0.0
      %446 = vmatprep.subr.mxu0 0.0
      %447 = vmatpush1.xpose.msra.mxu0 0.0
      %448 = vmatprep.subr.mxu0 0.0
      %449 = vmatpush1.xpose.msra.mxu0 0.0
      %450 = vmatprep.subr.mxu0 0.0
      %451 = vmatpush1.xpose.msra.mxu0 0.0
      %452 = vmatprep.subr.mxu0 0.0
      %453 = vmatpush1.xpose.msra.mxu0 0.0
      %454 = vmatprep.subr.mxu0 0.0
      %455 = vmatpush1.xpose.msra.mxu0 0.0
      %456 = vmatprep.subr.mxu0 0.0
      %457 = vmatpush1.xpose.msra.mxu0 0.0
      %458 = vmatprep.subr.mxu0 0.0
      %459 = vmatpush1.xpose.msra.mxu0 0.0
      %460 = vmatprep.mubr.f32.mxu0 0.0
      %461 = vmatmul.mubr.f32.gmra.mrb[0].mxu0 %v277
      %v462 = vpop.f32.mrb[0].mxu0
      %v463 = vadd.f32 0.0, %v462
      %v464 = vpop.f32.mrb[0].mxu0
      %465 = vmatprep.mubr.f32.mxu0 0.0
      %466 = vmatmul.mubr.f32.gmra.mrb[0].mxu0 %v280
      %v467 = vpop.f32.mrb[0].mxu0
      %v468 = vadd.f32 0.0, %v467
      %v469 = vpop.f32.mrb[0].mxu0
      %470 = vmatprep.mubr.f32.mxu0 0.0
      %471 = vmatmul.mubr.f32.gmra.mrb[0].mxu0 %v283
      %v472 = vpop.f32.mrb[0].mxu0
      %v473 = vadd.f32 0.0, %v472
      %v474 = vpop.f32.mrb[0].mxu0
      %475 = vmatprep.mubr.f32.mxu0 0.0
      %476 = vmatmul.mubr.f32.gmra.mrb[0].mxu0 %v286
      %v477 = vpop.f32.mrb[0].mxu0
      %v478 = vadd.f32 0.0, %v477
      %v479 = vpop.f32.mrb[0].mxu0
      %480 = vmatprep.mubr.f32.mxu0 0.0
      %481 = vmatmul.mubr.f32.gmra.mrb[0].mxu0 %v289
      %v482 = vpop.f32.mrb[0].mxu0
      %v483 = vadd.f32 0.0, %v482
      %v484 = vpop.f32.mrb[0].mxu0
      %485 = vmatprep.mubr.f32.mxu0 0.0
      %486 = vmatmul.mubr.f32.gmra.mrb[0].mxu0 %v292
      %v487 = vpop.f32.mrb[0].mxu0
      %v488 = vadd.f32 0.0, %v487
      %v489 = vpop.f32.mrb[0].mxu0
      %490 = vmatprep.mubr.f32.mxu0 0.0
      %491 = vmatmul.mubr.f32.gmra.mrb[0].mxu0 %v295
      %v492 = vpop.f32.mrb[0].mxu0
      %v493 = vadd.f32 0.0, %v492
      %v494 = vpop.f32.mrb[0].mxu0
      %495 = vmatprep.mubr.f32.mxu0 0.0
      %496 = vmatmul.mubr.f32.gmra.mrb[0].mxu0 %v298
      %v497 = vpop.f32.mrb[0].mxu0
      %v498 = vadd.f32 0.0, %v497
      %v499 = vpop.f32.mrb[0].mxu0
      %500 = vmatprep.mubr.f32.mxu0 0.0
      %501 = vmatmul.mubr.f32.gmra.mrb[0].mxu0 %v301
      %v502 = vpop.f32.mrb[0].mxu0
      %v503 = vadd.f32 0.0, %v502
      %v504 = vpop.f32.mrb[0].mxu0
      %505 = vmatprep.mubr.f32.mxu0 0.0
      %506 = vmatmul.mubr.f32.gmra.mrb[0].mxu0 %v304
      %v507 = vpop.f32.mrb[0].mxu0
      %v508 = vadd.f32 0.0, %v507
      %v509 = vpop.f32.mrb[0].mxu0
      %510 = vmatprep.mubr.f32.mxu0 0.0
      %511 = vmatmul.mubr.f32.gmra.mrb[0].mxu0 %v307
      %v512 = vpop.f32.mrb[0].mxu0
      %v513 = vadd.f32 0.0, %v512
      %v514 = vpop.f32.mrb[0].mxu0
      %515 = vmatprep.mubr.f32.mxu0 0.0
      %516 = vmatmul.mubr.f32.gmra.mrb[0].mxu0 %v310
      %v517 = vpop.f32.mrb[0].mxu0
      %v518 = vadd.f32 0.0, %v517
      %v519 = vpop.f32.mrb[0].mxu0
      %520 = vmatprep.mubr.f32.mxu0 0.0
      %521 = vmatmul.mubr.f32.gmra.mrb[0].mxu0 %v313
      %v522 = vpop.f32.mrb[0].mxu0
      %v523 = vadd.f32 0.0, %v522
      %v524 = vpop.f32.mrb[0].mxu0
      %525 = vmatprep.mubr.f32.mxu0 0.0
      %526 = vmatmul.mubr.f32.gmra.mrb[0].mxu0 %v316
      %v527 = vpop.f32.mrb[0].mxu0
      %v528 = vadd.f32 0.0, %v527
      %v529 = vpop.f32.mrb[0].mxu0
      %530 = vmatprep.mubr.f32.mxu0 0.0
      %531 = vmatmul.mubr.f32.gmra.mrb[0].mxu0 %v319
      %v532 = vpop.f32.mrb[0].mxu0
      %v533 = vadd.f32 0.0, %v532
      %v534 = vpop.f32.mrb[0].mxu0
      %535 = vmatprep.mubr.f32.mxu0 0.0
      %536 = vmatmul.mubr.f32.gmra.mrb[0].mxu0 %v322
      %v537 = vpop.f32.mrb[0].mxu0
      %v538 = vadd.f32 0.0, %v537
      %v539 = vpop.f32.mrb[0].mxu0
      %540 = vmatprep.mubr.f32.mxu0 0.0
      %541 = vmatmul.mubr.f32.gmra.mrb[0].mxu0 %v325
      %v542 = vpop.f32.mrb[0].mxu0
      %v543 = vadd.f32 0.0, %v542
      %v544 = vpop.f32.mrb[0].mxu0
      %545 = vmatprep.mubr.f32.mxu0 0.0
      %546 = vmatmul.mubr.f32.gmra.mrb[0].mxu0 %v328
      %v547 = vpop.f32.mrb[0].mxu0
      %v548 = vadd.f32 0.0, %v547
      %v549 = vpop.f32.mrb[0].mxu0
      %550 = vmatprep.mubr.f32.mxu0 0.0
      %551 = vmatmul.mubr.f32.gmra.mrb[0].mxu0 %v331
      %v552 = vpop.f32.mrb[0].mxu0
      %v553 = vadd.f32 0.0, %v552
      %v554 = vpop.f32.mrb[0].mxu0
      %555 = vmatprep.mubr.f32.mxu0 0.0
      %556 = vmatmul.mubr.f32.gmra.mrb[0].mxu0 %v334
      %v557 = vpop.f32.mrb[0].mxu0
      %v558 = vadd.f32 0.0, %v557
      %v559 = vpop.f32.mrb[0].mxu0
      %560 = vmatprep.mubr.f32.mxu0 0.0
      %561 = vmatmul.mubr.f32.gmra.mrb[0].mxu0 %v337
      %v562 = vpop.f32.mrb[0].mxu0
      %v563 = vadd.f32 0.0, %v562
      %v564 = vpop.f32.mrb[0].mxu0
      %565 = vmatprep.mubr.f32.mxu0 0.0
      %566 = vmatmul.mubr.f32.gmra.mrb[0].mxu0 %v340
      %v567 = vpop.f32.mrb[0].mxu0
      %v568 = vadd.f32 0.0, %v567
      %v569 = vpop.f32.mrb[0].mxu0
      %570 = vmatprep.mubr.f32.mxu0 0.0
      %571 = vmatmul.mubr.f32.gmra.mrb[0].mxu0 %v343
      %v572 = vpop.f32.mrb[0].mxu0
      %v573 = vadd.f32 0.0, %v572
      %v574 = vpop.f32.mrb[0].mxu0
      %575 = vmatprep.mubr.f32.mxu0 0.0
      %576 = vmatmul.mubr.f32.gmra.mrb[0].mxu0 %v346
      %v577 = vpop.f32.mrb[0].mxu0
      %v578 = vadd.f32 0.0, %v577
      %v579 = vpop.f32.mrb[0].mxu0
      %580 = vmatprep.mubr.f32.mxu0 0.0
      %581 = vmatmul.mubr.f32.gmra.mrb[0].mxu0 %v349
      %v582 = vpop.f32.mrb[0].mxu0
      %v583 = vadd.f32 0.0, %v582
      %v584 = vpop.f32.mrb[0].mxu0
      %585 = vmatprep.mubr.f32.mxu0 0.0
      %586 = vmatmul.mubr.f32.gmra.mrb[0].mxu0 %v352
      %v587 = vpop.f32.mrb[0].mxu0
      %v588 = vadd.f32 0.0, %v587
      %v589 = vpop.f32.mrb[0].mxu0
      %590 = vmatprep.mubr.f32.mxu0 0.0
      %591 = vmatmul.mubr.f32.gmra.mrb[0].mxu0 %v355
      %v592 = vpop.f32.mrb[0].mxu0
      %v593 = vadd.f32 0.0, %v592
      %v594 = vpop.f32.mrb[0].mxu0
      %595 = vmatprep.mubr.f32.mxu0 0.0
      %596 = vmatmul.mubr.f32.gmra.mrb[0].mxu0 %v358
      %v597 = vpop.f32.mrb[0].mxu0
      %v598 = vadd.f32 0.0, %v597
      %v599 = vpop.f32.mrb[0].mxu0
      %600 = vmatprep.mubr.f32.mxu0 0.0
      %601 = vmatmul.mubr.f32.gmra.mrb[0].mxu0 %v361
      %v602 = vpop.f32.mrb[0].mxu0
      %v603 = vadd.f32 0.0, %v602
      %v604 = vpop.f32.mrb[0].mxu0
      %605 = vmatprep.mubr.f32.mxu0 0.0
      %606 = vmatmul.mubr.f32.gmra.mrb[0].mxu0 %v364
      %v607 = vpop.f32.mrb[0].mxu0
      %v608 = vadd.f32 0.0, %v607
      %v609 = vpop.f32.mrb[0].mxu0
      %610 = vmatprep.mubr.f32.mxu0 0.0
      %611 = vmatmul.mubr.f32.gmra.mrb[0].mxu0 %v367
      %v612 = vpop.f32.mrb[0].mxu0
      %v613 = vadd.f32 0.0, %v612
      %v614 = vpop.f32.mrb[0].mxu0
      %615 = vmatprep.mubr.f32.mxu0 0.0
      %616 = vmatmul.mubr.f32.gmra.mrb[0].mxu0 %v370
      %v617 = vpop.f32.mrb[0].mxu0
      %v618 = vadd.f32 0.0, %v617
      %v619 = vpop.f32.mrb[0].mxu0
      %620 = vdwg.mxu0
      %vm621 = vcmask 523264
      %v622 = vsel %vm621, %v463, -inf
      %623 = vmax.xlane.f32.xlu0 %v622
      %v624 = vpop.xlane.xlu0 %623
      %v625 = vsel %vm621, %v468, -inf
      %626 = vmax.xlane.f32.xlu0 %v625
      %v627 = vpop.xlane.xlu0 %626
      %v628 = vsel %vm621, %v473, -inf
      %629 = vmax.xlane.f32.xlu0 %v628
      %v630 = vpop.xlane.xlu0 %629
      %v631 = vsel %vm621, %v478, -inf
      %632 = vmax.xlane.f32.xlu0 %v631
      %v633 = vpop.xlane.xlu0 %632
      %v634 = vsel %vm621, %v483, -inf
      %635 = vmax.xlane.f32.xlu0 %v634
      %v636 = vpop.xlane.xlu0 %635
      %v637 = vsel %vm621, %v488, -inf
      %638 = vmax.xlane.f32.xlu0 %v637
      %v639 = vpop.xlane.xlu0 %638
      %v640 = vsel %vm621, %v493, -inf
      %641 = vmax.xlane.f32.xlu0 %v640
      %v642 = vpop.xlane.xlu0 %641
      %v643 = vsel %vm621, %v498, -inf
      %644 = vmax.xlane.f32.xlu0 %v643
      %v645 = vpop.xlane.xlu0 %644
      %v646 = vsel %vm621, %v503, -inf
      %647 = vmax.xlane.f32.xlu0 %v646
      %v648 = vpop.xlane.xlu0 %647
      %v649 = vsel %vm621, %v508, -inf
      %650 = vmax.xlane.f32.xlu0 %v649
      %v651 = vpop.xlane.xlu0 %650
      %v652 = vsel %vm621, %v513, -inf
      %653 = vmax.xlane.f32.xlu0 %v652
      %v654 = vpop.xlane.xlu0 %653
      %v655 = vsel %vm621, %v518, -inf
      %656 = vmax.xlane.f32.xlu0 %v655
      %v657 = vpop.xlane.xlu0 %656
      %v658 = vsel %vm621, %v523, -inf
      %659 = vmax.xlane.f32.xlu0 %v658
      %v660 = vpop.xlane.xlu0 %659
      %v661 = vsel %vm621, %v528, -inf
      %662 = vmax.xlane.f32.xlu0 %v661
      %v663 = vpop.xlane.xlu0 %662
      %v664 = vsel %vm621, %v533, -inf
      %665 = vmax.xlane.f32.xlu0 %v664
      %v666 = vpop.xlane.xlu0 %665
      %v667 = vsel %vm621, %v538, -inf
      %668 = vmax.xlane.f32.xlu0 %v667
      %v669 = vpop.xlane.xlu0 %668
      %v670 = vsel %vm621, %v543, -inf
      %671 = vmax.xlane.f32.xlu0 %v670
      %v672 = vpop.xlane.xlu0 %671
      %v673 = vsel %vm621, %v548, -inf
      %674 = vmax.xlane.f32.xlu0 %v673
      %v675 = vpop.xlane.xlu0 %674
      %v676 = vsel %vm621, %v553, -inf
      %677 = vmax.xlane.f32.xlu0 %v676
      %v678 = vpop.xlane.xlu0 %677
      %v679 = vsel %vm621, %v558, -inf
      %680 = vmax.xlane.f32.xlu0 %v679
      %v681 = vpop.xlane.xlu0 %680
      %v682 = vsel %vm621, %v563, -inf
      %683 = vmax.xlane.f32.xlu0 %v682
      %v684 = vpop.xlane.xlu0 %683
      %v685 = vsel %vm621, %v568, -inf
      %686 = vmax.xlane.f32.xlu0 %v685
      %v687 = vpop.xlane.xlu0 %686
      %v688 = vsel %vm621, %v573, -inf
      %689 = vmax.xlane.f32.xlu0 %v688
      %v690 = vpop.xlane.xlu0 %689
      %v691 = vsel %vm621, %v578, -inf
      %692 = vmax.xlane.f32.xlu0 %v691
      %v693 = vpop.xlane.xlu0 %692
      %v694 = vsel %vm621, %v583, -inf
      %695 = vmax.xlane.f32.xlu0 %v694
      %v696 = vpop.xlane.xlu0 %695
      %v697 = vsel %vm621, %v588, -inf
      %698 = vmax.xlane.f32.xlu0 %v697
      %v699 = vpop.xlane.xlu0 %698
      %v700 = vsel %vm621, %v593, -inf
      %701 = vmax.xlane.f32.xlu0 %v700
      %v702 = vpop.xlane.xlu0 %701
      %v703 = vsel %vm621, %v598, -inf
      %704 = vmax.xlane.f32.xlu0 %v703
      %v705 = vpop.xlane.xlu0 %704
      %v706 = vsel %vm621, %v603, -inf
      %707 = vmax.xlane.f32.xlu0 %v706
      %v708 = vpop.xlane.xlu0 %707
      %v709 = vsel %vm621, %v608, -inf
      %710 = vmax.xlane.f32.xlu0 %v709
      %v711 = vpop.xlane.xlu0 %710
      %v712 = vsel %vm621, %v613, -inf
      %713 = vmax.xlane.f32.xlu0 %v712
      %v714 = vpop.xlane.xlu0 %713
      %v715 = vsel %vm621, %v618, -inf
      %716 = vmax.xlane.f32.xlu0 %v715
      %v717 = vpop.xlane.xlu0 %716
      %v718 = vsub.f32 %v463, %v624
      %v719 = vsub.f32 %v468, %v627
      %v720 = vsub.f32 %v473, %v630
      %v721 = vsub.f32 %v478, %v633
      %v722 = vsub.f32 %v483, %v636
      %v723 = vsub.f32 %v488, %v639
      %v724 = vsub.f32 %v493, %v642
      %v725 = vsub.f32 %v498, %v645
      %v726 = vsub.f32 %v503, %v648
      %v727 = vsub.f32 %v508, %v651
      %v728 = vsub.f32 %v513, %v654
      %v729 = vsub.f32 %v518, %v657
      %v730 = vsub.f32 %v523, %v660
      %v731 = vsub.f32 %v528, %v663
      %v732 = vsub.f32 %v533, %v666
      %v733 = vsub.f32 %v538, %v669
      %v734 = vsub.f32 %v543, %v672
      %v735 = vsub.f32 %v548, %v675
      %v736 = vsub.f32 %v553, %v678
      %v737 = vsub.f32 %v558, %v681
      %v738 = vsub.f32 %v563, %v684
      %v739 = vsub.f32 %v568, %v687
      %v740 = vsub.f32 %v573, %v690
      %v741 = vsub.f32 %v578, %v693
      %v742 = vsub.f32 %v583, %v696
      %v743 = vsub.f32 %v588, %v699
      %v744 = vsub.f32 %v593, %v702
      %v745 = vsub.f32 %v598, %v705
      %v746 = vsub.f32 %v603, %v708
      %v747 = vsub.f32 %v608, %v711
      %v748 = vsub.f32 %v613, %v714
      %v749 = vsub.f32 %v618, %v717
      %v750 = vmul.f32 %v718, 1.442695
      %v751 = vpow.pop %v750
      %v752 = vmul.f32 %v719, 1.442695
      %v753 = vpow.pop %v752
      %v754 = vmul.f32 %v720, 1.442695
      %v755 = vpow.pop %v754
      %v756 = vmul.f32 %v721, 1.442695
      %v757 = vpow.pop %v756
      %v758 = vmul.f32 %v722, 1.442695
      %v759 = vpow.pop %v758
      %v760 = vmul.f32 %v723, 1.442695
      %v761 = vpow.pop %v760
      %v762 = vmul.f32 %v724, 1.442695
      %v763 = vpow.pop %v762
      %v764 = vmul.f32 %v725, 1.442695
      %v765 = vpow.pop %v764
      %v766 = vmul.f32 %v726, 1.442695
      %v767 = vpow.pop %v766
      %v768 = vmul.f32 %v727, 1.442695
      %v769 = vpow.pop %v768
      %v770 = vmul.f32 %v728, 1.442695
      %v771 = vpow.pop %v770
      %v772 = vmul.f32 %v729, 1.442695
      %v773 = vpow.pop %v772
      %v774 = vmul.f32 %v730, 1.442695
      %v775 = vpow.pop %v774
      %v776 = vmul.f32 %v731, 1.442695
      %v777 = vpow.pop %v776
      %v778 = vmul.f32 %v732, 1.442695
      %v779 = vpow.pop %v778
      %v780 = vmul.f32 %v733, 1.442695
      %v781 = vpow.pop %v780
      %v782 = vmul.f32 %v734, 1.442695
      %v783 = vpow.pop %v782
      %v784 = vmul.f32 %v735, 1.442695
      %v785 = vpow.pop %v784
      %v786 = vmul.f32 %v736, 1.442695
      %v787 = vpow.pop %v786
      %v788 = vmul.f32 %v737, 1.442695
      %v789 = vpow.pop %v788
      %v790 = vmul.f32 %v738, 1.442695
      %v791 = vpow.pop %v790
      %v792 = vmul.f32 %v739, 1.442695
      %v793 = vpow.pop %v792
      %v794 = vmul.f32 %v740, 1.442695
      %v795 = vpow.pop %v794
      %v796 = vmul.f32 %v741, 1.442695
      %v797 = vpow.pop %v796
      %v798 = vmul.f32 %v742, 1.442695
      %v799 = vpow.pop %v798
      %v800 = vmul.f32 %v743, 1.442695
      %v801 = vpow.pop %v800
      %v802 = vmul.f32 %v744, 1.442695
      %v803 = vpow.pop %v802
      %v804 = vmul.f32 %v745, 1.442695
      %v805 = vpow.pop %v804
      %v806 = vmul.f32 %v746, 1.442695
      %v807 = vpow.pop %v806
      %v808 = vmul.f32 %v747, 1.442695
      %v809 = vpow.pop %v808
      %v810 = vmul.f32 %v748, 1.442695
      %v811 = vpow.pop %v810
      %v812 = vmul.f32 %v749, 1.442695
      %v813 = vpow.pop %v812
      %v814 = vsel %vm621, %v751, 0.0
      %815 = vadd.xlane.f32.xlu0 %v814
      %v816 = vpop.xlane.xlu0 %815
      %v817 = vsel %vm621, %v753, 0.0
      %818 = vadd.xlane.f32.xlu0 %v817
      %v819 = vpop.xlane.xlu0 %818
      %v820 = vsel %vm621, %v755, 0.0
      %821 = vadd.xlane.f32.xlu0 %v820
      %v822 = vpop.xlane.xlu0 %821
      %v823 = vsel %vm621, %v757, 0.0
      %824 = vadd.xlane.f32.xlu0 %v823
      %v825 = vpop.xlane.xlu0 %824
      %v826 = vsel %vm621, %v759, 0.0
      %827 = vadd.xlane.f32.xlu0 %v826
      %v828 = vpop.xlane.xlu0 %827
      %v829 = vsel %vm621, %v761, 0.0
      %830 = vadd.xlane.f32.xlu0 %v829
      %v831 = vpop.xlane.xlu0 %830
      %v832 = vsel %vm621, %v763, 0.0
      %833 = vadd.xlane.f32.xlu0 %v832
      %v834 = vpop.xlane.xlu0 %833
      %v835 = vsel %vm621, %v765, 0.0
      %836 = vadd.xlane.f32.xlu0 %v835
      %v837 = vpop.xlane.xlu0 %836
      %v838 = vsel %vm621, %v767, 0.0
      %839 = vadd.xlane.f32.xlu0 %v838
      %v840 = vpop.xlane.xlu0 %839
      %v841 = vsel %vm621, %v769, 0.0
      %842 = vadd.xlane.f32.xlu0 %v841
      %v843 = vpop.xlane.xlu0 %842
      %v844 = vsel %vm621, %v771, 0.0
      %845 = vadd.xlane.f32.xlu0 %v844
      %v846 = vpop.xlane.xlu0 %845
      %v847 = vsel %vm621, %v773, 0.0
      %848 = vadd.xlane.f32.xlu0 %v847
      %v849 = vpop.xlane.xlu0 %848
      %v850 = vsel %vm621, %v775, 0.0
      %851 = vadd.xlane.f32.xlu0 %v850
      %v852 = vpop.xlane.xlu0 %851
      %v853 = vsel %vm621, %v777, 0.0
      %854 = vadd.xlane.f32.xlu0 %v853
      %v855 = vpop.xlane.xlu0 %854
      %v856 = vsel %vm621, %v779, 0.0
      %857 = vadd.xlane.f32.xlu0 %v856
      %v858 = vpop.xlane.xlu0 %857
      %v859 = vsel %vm621, %v781, 0.0
      %860 = vadd.xlane.f32.xlu0 %v859
      %v861 = vpop.xlane.xlu0 %860
      %v862 = vsel %vm621, %v783, 0.0
      %863 = vadd.xlane.f32.xlu0 %v862
      %v864 = vpop.xlane.xlu0 %863
      %v865 = vsel %vm621, %v785, 0.0
      %866 = vadd.xlane.f32.xlu0 %v865
      %v867 = vpop.xlane.xlu0 %866
      %v868 = vsel %vm621, %v787, 0.0
      %869 = vadd.xlane.f32.xlu0 %v868
      %v870 = vpop.xlane.xlu0 %869
      %v871 = vsel %vm621, %v789, 0.0
      %872 = vadd.xlane.f32.xlu0 %v871
      %v873 = vpop.xlane.xlu0 %872
      %v874 = vsel %vm621, %v791, 0.0
      %875 = vadd.xlane.f32.xlu0 %v874
      %v876 = vpop.xlane.xlu0 %875
      %v877 = vsel %vm621, %v793, 0.0
      %878 = vadd.xlane.f32.xlu0 %v877
      %v879 = vpop.xlane.xlu0 %878
      %v880 = vsel %vm621, %v795, 0.0
      %881 = vadd.xlane.f32.xlu0 %v880
      %v882 = vpop.xlane.xlu0 %881
      %v883 = vsel %vm621, %v797, 0.0
      %884 = vadd.xlane.f32.xlu0 %v883
      %v885 = vpop.xlane.xlu0 %884
      %v886 = vsel %vm621, %v799, 0.0
      %887 = vadd.xlane.f32.xlu0 %v886
      %v888 = vpop.xlane.xlu0 %887
      %v889 = vsel %vm621, %v801, 0.0
      %890 = vadd.xlane.f32.xlu0 %v889
      %v891 = vpop.xlane.xlu0 %890
      %v892 = vsel %vm621, %v803, 0.0
      %893 = vadd.xlane.f32.xlu0 %v892
      %v894 = vpop.xlane.xlu0 %893
      %v895 = vsel %vm621, %v805, 0.0
      %896 = vadd.xlane.f32.xlu0 %v895
      %v897 = vpop.xlane.xlu0 %896
      %v898 = vsel %vm621, %v807, 0.0
      %899 = vadd.xlane.f32.xlu0 %v898
      %v900 = vpop.xlane.xlu0 %899
      %v901 = vsel %vm621, %v809, 0.0
      %902 = vadd.xlane.f32.xlu0 %v901
      %v903 = vpop.xlane.xlu0 %902
      %v904 = vsel %vm621, %v811, 0.0
      %905 = vadd.xlane.f32.xlu0 %v904
      %v906 = vpop.xlane.xlu0 %905
      %v907 = vsel %vm621, %v813, 0.0
      %908 = vadd.xlane.f32.xlu0 %v907
      %v909 = vpop.xlane.xlu0 %908
      %v910 = vrcp.pop %v816
      %v911 = vrcp.pop %v819
      %v912 = vrcp.pop %v822
      %v913 = vrcp.pop %v825
      %v914 = vrcp.pop %v828
      %v915 = vrcp.pop %v831
      %v916 = vrcp.pop %v834
      %v917 = vrcp.pop %v837
      %v918 = vrcp.pop %v840
      %v919 = vrcp.pop %v843
      %v920 = vrcp.pop %v846
      %v921 = vrcp.pop %v849
      %v922 = vrcp.pop %v852
      %v923 = vrcp.pop %v855
      %v924 = vrcp.pop %v858
      %v925 = vrcp.pop %v861
      %v926 = vrcp.pop %v864
      %v927 = vrcp.pop %v867
      %v928 = vrcp.pop %v870
      %v929 = vrcp.pop %v873
      %v930 = vrcp.pop %v876
      %v931 = vrcp.pop %v879
      %v932 = vrcp.pop %v882
      %v933 = vrcp.pop %v885
      %v934 = vrcp.pop %v888
      %v935 = vrcp.pop %v891
      %v936 = vrcp.pop %v894
      %v937 = vrcp.pop %v897
      %v938 = vrcp.pop %v900
      %v939 = vrcp.pop %v903
      %v940 = vrcp.pop %v906
      %v941 = vrcp.pop %v909
      %v942 = vmul.f32 %v751, %v910
      %v943 = vmul.f32 %v753, %v911
      %v944 = vmul.f32 %v755, %v912
      %v945 = vmul.f32 %v757, %v913
      %v946 = vmul.f32 %v759, %v914
      %v947 = vmul.f32 %v761, %v915
      %v948 = vmul.f32 %v763, %v916
      %v949 = vmul.f32 %v765, %v917
      %v950 = vmul.f32 %v767, %v918
      %v951 = vmul.f32 %v769, %v919
      %v952 = vmul.f32 %v771, %v920
      %v953 = vmul.f32 %v773, %v921
      %v954 = vmul.f32 %v775, %v922
      %v955 = vmul.f32 %v777, %v923
      %v956 = vmul.f32 %v779, %v924
      %v957 = vmul.f32 %v781, %v925
      %v958 = vmul.f32 %v783, %v926
      %v959 = vmul.f32 %v785, %v927
      %v960 = vmul.f32 %v787, %v928
      %v961 = vmul.f32 %v789, %v929
      %v962 = vmul.f32 %v791, %v930
      %v963 = vmul.f32 %v793, %v931
      %v964 = vmul.f32 %v795, %v932
      %v965 = vmul.f32 %v797, %v933
      %v966 = vmul.f32 %v799, %v934
      %v967 = vmul.f32 %v801, %v935
      %v968 = vmul.f32 %v803, %v936
      %v969 = vmul.f32 %v805, %v937
      %v970 = vmul.f32 %v807, %v938
      %v971 = vmul.f32 %v809, %v939
      %v972 = vmul.f32 %v811, %v940
      %v973 = vmul.f32 %v813, %v941
      %974 = vrot.lane.b32.xlu0 %v267, 96
      %v975 = vpop.permute.xlu0 %974
      %976 = vrot.lane.b32.xlu0 %v268, 96
      %v977 = vpop.permute.xlu0 %976
      %978 = vrot.lane.b32.xlu0 %v269, 96
      %v979 = vpop.permute.xlu0 %978
      %980 = vrot.lane.b32.xlu0 %v270, 96
      %v981 = vpop.permute.xlu0 %980
      %982 = vrot.lane.b32.xlu0 %v271, 96
      %v983 = vpop.permute.xlu0 %982
      %984 = vrot.lane.b32.xlu0 %v272, 96
      %v985 = vpop.permute.xlu0 %984
      %986 = vrot.lane.b32.xlu0 %v273, 96
      %v987 = vpop.permute.xlu0 %986
      %988 = vrot.lane.b32.xlu0 %v274, 96
      %v989 = vpop.permute.xlu0 %988
      %v999 = vsel %vm621, %v942, 0
      %v1002 = vsel %vm621, %v943, 0
      %v1005 = vsel %vm621, %v944, 0
      %v1008 = vsel %vm621, %v945, 0
      %v1011 = vsel %vm621, %v946, 0
      %v1014 = vsel %vm621, %v947, 0
      %v1017 = vsel %vm621, %v948, 0
      %v1020 = vsel %vm621, %v949, 0
      %v1023 = vsel %vm621, %v950, 0
      %v1026 = vsel %vm621, %v951, 0
      %v1029 = vsel %vm621, %v952, 0
      %v1032 = vsel %vm621, %v953, 0
      %v1035 = vsel %vm621, %v954, 0
      %v1038 = vsel %vm621, %v955, 0
      %v1041 = vsel %vm621, %v956, 0
      %v1044 = vsel %vm621, %v957, 0
      %v1047 = vsel %vm621, %v958, 0
      %v1050 = vsel %vm621, %v959, 0
      %v1053 = vsel %vm621, %v960, 0
      %v1056 = vsel %vm621, %v961, 0
      %v1059 = vsel %vm621, %v962, 0
      %v1062 = vsel %vm621, %v963, 0
      %v1065 = vsel %vm621, %v964, 0
      %v1068 = vsel %vm621, %v965, 0
      %v1071 = vsel %vm621, %v966, 0
      %v1074 = vsel %vm621, %v967, 0
      %v1077 = vsel %vm621, %v968, 0
      %v1080 = vsel %vm621, %v969, 0
      %v1083 = vsel %vm621, %v970, 0
      %v1086 = vsel %vm621, %v971, 0
      %v1089 = vsel %vm621, %v972, 0
      %v1092 = vsel %vm621, %v973, 0
      %1094 = vmatprep.subr.mxu0 0.0
      %1095 = vmatpush1.msra.mxu0 %v975
      %1096 = vmatprep.subr.mxu0 0.0
      %1097 = vmatpush1.msra.mxu0 %v977
      %1098 = vmatprep.subr.mxu0 0.0
      %1099 = vmatpush1.msra.mxu0 %v979
      %1100 = vmatprep.subr.mxu0 0.0
      %1101 = vmatpush1.msra.mxu0 %v981
      %1102 = vmatprep.subr.mxu0 0.0
      %1103 = vmatpush1.msra.mxu0 %v983
      %1104 = vmatprep.subr.mxu0 0.0
      %1105 = vmatpush1.msra.mxu0 %v985
      %1106 = vmatprep.subr.mxu0 0.0
      %1107 = vmatpush1.msra.mxu0 %v987
      %1108 = vmatprep.subr.mxu0 0.0
      %1109 = vmatpush1.msra.mxu0 %v989
      %1110 = vmatprep.subr.mxu0 0.0
      %1111 = vmatpush1.msra.mxu0 0.0
      %1112 = vmatprep.subr.mxu0 0.0
      %1113 = vmatpush1.msra.mxu0 0.0
      %1114 = vmatprep.subr.mxu0 0.0
      %1115 = vmatpush1.msra.mxu0 0.0
      %1116 = vmatprep.subr.mxu0 0.0
      %1117 = vmatpush1.msra.mxu0 0.0
      %1118 = vmatprep.subr.mxu0 0.0
      %1119 = vmatpush1.msra.mxu0 0.0
      %1120 = vmatprep.subr.mxu0 0.0
      %1121 = vmatpush1.msra.mxu0 0.0
      %1122 = vmatprep.subr.mxu0 0.0
      %1123 = vmatpush1.msra.mxu0 0.0
      %1124 = vmatprep.subr.mxu0 0.0
      %1125 = vmatpush1.msra.mxu0 0.0
      %1126 = vmatprep.subr.mxu0 0.0
      %1127 = vmatpush1.msra.mxu0 0.0
      %1128 = vmatprep.subr.mxu0 0.0
      %1129 = vmatpush1.msra.mxu0 0.0
      %1130 = vmatprep.subr.mxu0 0.0
      %1131 = vmatpush1.msra.mxu0 0.0
      %1132 = vmatprep.subr.mxu0 0.0
      %1133 = vmatpush1.msra.mxu0 0.0
      %1134 = vmatprep.subr.mxu0 0.0
      %1135 = vmatpush1.msra.mxu0 0.0
      %1136 = vmatprep.subr.mxu0 0.0
      %1137 = vmatpush1.msra.mxu0 0.0
      %1138 = vmatprep.subr.mxu0 0.0
      %1139 = vmatpush1.msra.mxu0 0.0
      %1140 = vmatprep.subr.mxu0 0.0
      %1141 = vmatpush1.msra.mxu0 0.0
      %1142 = vmatprep.subr.mxu0 0.0
      %1143 = vmatpush1.msra.mxu0 0.0
      %1144 = vmatprep.subr.mxu0 0.0
      %1145 = vmatpush1.msra.mxu0 0.0
      %1146 = vmatprep.subr.mxu0 0.0
      %1147 = vmatpush1.msra.mxu0 0.0
      %1148 = vmatprep.subr.mxu0 0.0
      %1149 = vmatpush1.msra.mxu0 0.0
      %1150 = vmatprep.subr.mxu0 0.0
      %1151 = vmatpush1.msra.mxu0 0.0
      %1152 = vmatprep.subr.mxu0 0.0
      %1153 = vmatpush1.msra.mxu0 0.0
      %1154 = vmatprep.subr.mxu0 0.0
      %1155 = vmatpush1.msra.mxu0 0.0
      %1156 = vmatprep.subr.mxu0 0.0
      %1157 = vmatpush1.msra.mxu0 0.0
      %1158 = vmatprep.mubr.f32.mxu0 0.0
      %1159 = vmatmul.mubr.f32.gmra.mrb[0].mxu0 %v999
      %v1160 = vpop.f32.mrb[0].mxu0
      %v1161 = vadd.f32 0.0, %v1160
      %v1162 = vpop.f32.mrb[0].mxu0
      %1163 = vmatprep.mubr.f32.mxu0 0.0
      %1164 = vmatmul.mubr.f32.gmra.mrb[0].mxu0 %v1002
      %v1165 = vpop.f32.mrb[0].mxu0
      %v1166 = vadd.f32 0.0, %v1165
      %v1167 = vpop.f32.mrb[0].mxu0
      %1168 = vmatprep.mubr.f32.mxu0 0.0
      %1169 = vmatmul.mubr.f32.gmra.mrb[0].mxu0 %v1005
      %v1170 = vpop.f32.mrb[0].mxu0
      %v1171 = vadd.f32 0.0, %v1170
      %v1172 = vpop.f32.mrb[0].mxu0
      %1173 = vmatprep.mubr.f32.mxu0 0.0
      %1174 = vmatmul.mubr.f32.gmra.mrb[0].mxu0 %v1008
      %v1175 = vpop.f32.mrb[0].mxu0
      %v1176 = vadd.f32 0.0, %v1175
      %v1177 = vpop.f32.mrb[0].mxu0
      %1178 = vmatprep.mubr.f32.mxu0 0.0
      %1179 = vmatmul.mubr.f32.gmra.mrb[0].mxu0 %v1011
      %v1180 = vpop.f32.mrb[0].mxu0
      %v1181 = vadd.f32 0.0, %v1180
      %v1182 = vpop.f32.mrb[0].mxu0
      %1183 = vmatprep.mubr.f32.mxu0 0.0
      %1184 = vmatmul.mubr.f32.gmra.mrb[0].mxu0 %v1014
      %v1185 = vpop.f32.mrb[0].mxu0
      %v1186 = vadd.f32 0.0, %v1185
      %v1187 = vpop.f32.mrb[0].mxu0
      %1188 = vmatprep.mubr.f32.mxu0 0.0
      %1189 = vmatmul.mubr.f32.gmra.mrb[0].mxu0 %v1017
      %v1190 = vpop.f32.mrb[0].mxu0
      %v1191 = vadd.f32 0.0, %v1190
      %v1192 = vpop.f32.mrb[0].mxu0
      %1193 = vmatprep.mubr.f32.mxu0 0.0
      %1194 = vmatmul.mubr.f32.gmra.mrb[0].mxu0 %v1020
      %v1195 = vpop.f32.mrb[0].mxu0
      %v1196 = vadd.f32 0.0, %v1195
      %v1197 = vpop.f32.mrb[0].mxu0
      %1198 = vmatprep.mubr.f32.mxu0 0.0
      %1199 = vmatmul.mubr.f32.gmra.mrb[0].mxu0 %v1023
      %v1200 = vpop.f32.mrb[0].mxu0
      %v1201 = vadd.f32 0.0, %v1200
      %v1202 = vpop.f32.mrb[0].mxu0
      %1203 = vmatprep.mubr.f32.mxu0 0.0
      %1204 = vmatmul.mubr.f32.gmra.mrb[0].mxu0 %v1026
      %v1205 = vpop.f32.mrb[0].mxu0
      %v1206 = vadd.f32 0.0, %v1205
      %v1207 = vpop.f32.mrb[0].mxu0
      %1208 = vmatprep.mubr.f32.mxu0 0.0
      %1209 = vmatmul.mubr.f32.gmra.mrb[0].mxu0 %v1029
      %v1210 = vpop.f32.mrb[0].mxu0
      %v1211 = vadd.f32 0.0, %v1210
      %v1212 = vpop.f32.mrb[0].mxu0
      %1213 = vmatprep.mubr.f32.mxu0 0.0
      %1214 = vmatmul.mubr.f32.gmra.mrb[0].mxu0 %v1032
      %v1215 = vpop.f32.mrb[0].mxu0
      %v1216 = vadd.f32 0.0, %v1215
      %v1217 = vpop.f32.mrb[0].mxu0
      %1218 = vmatprep.mubr.f32.mxu0 0.0
      %1219 = vmatmul.mubr.f32.gmra.mrb[0].mxu0 %v1035
      %v1220 = vpop.f32.mrb[0].mxu0
      %v1221 = vadd.f32 0.0, %v1220
      %v1222 = vpop.f32.mrb[0].mxu0
      %1223 = vmatprep.mubr.f32.mxu0 0.0
      %1224 = vmatmul.mubr.f32.gmra.mrb[0].mxu0 %v1038
      %v1225 = vpop.f32.mrb[0].mxu0
      %v1226 = vadd.f32 0.0, %v1225
      %v1227 = vpop.f32.mrb[0].mxu0
      %1228 = vmatprep.mubr.f32.mxu0 0.0
      %1229 = vmatmul.mubr.f32.gmra.mrb[0].mxu0 %v1041
      %v1230 = vpop.f32.mrb[0].mxu0
      %v1231 = vadd.f32 0.0, %v1230
      %v1232 = vpop.f32.mrb[0].mxu0
      %1233 = vmatprep.mubr.f32.mxu0 0.0
      %1234 = vmatmul.mubr.f32.gmra.mrb[0].mxu0 %v1044
      %v1235 = vpop.f32.mrb[0].mxu0
      %v1236 = vadd.f32 0.0, %v1235
      %v1237 = vpop.f32.mrb[0].mxu0
      %1238 = vmatprep.mubr.f32.mxu0 0.0
      %1239 = vmatmul.mubr.f32.gmra.mrb[0].mxu0 %v1047
      %v1240 = vpop.f32.mrb[0].mxu0
      %v1241 = vadd.f32 0.0, %v1240
      %v1242 = vpop.f32.mrb[0].mxu0
      %1243 = vmatprep.mubr.f32.mxu0 0.0
      %1244 = vmatmul.mubr.f32.gmra.mrb[0].mxu0 %v1050
      %v1245 = vpop.f32.mrb[0].mxu0
      %v1246 = vadd.f32 0.0, %v1245
      %v1247 = vpop.f32.mrb[0].mxu0
      %1248 = vmatprep.mubr.f32.mxu0 0.0
      %1249 = vmatmul.mubr.f32.gmra.mrb[0].mxu0 %v1053
      %v1250 = vpop.f32.mrb[0].mxu0
      %v1251 = vadd.f32 0.0, %v1250
      %v1252 = vpop.f32.mrb[0].mxu0
      %1253 = vmatprep.mubr.f32.mxu0 0.0
      %1254 = vmatmul.mubr.f32.gmra.mrb[0].mxu0 %v1056
      %v1255 = vpop.f32.mrb[0].mxu0
      %v1256 = vadd.f32 0.0, %v1255
      %v1257 = vpop.f32.mrb[0].mxu0
      %1258 = vmatprep.mubr.f32.mxu0 0.0
      %1259 = vmatmul.mubr.f32.gmra.mrb[0].mxu0 %v1059
      %v1260 = vpop.f32.mrb[0].mxu0
      %v1261 = vadd.f32 0.0, %v1260
      %v1262 = vpop.f32.mrb[0].mxu0
      %1263 = vmatprep.mubr.f32.mxu0 0.0
      %1264 = vmatmul.mubr.f32.gmra.mrb[0].mxu0 %v1062
      %v1265 = vpop.f32.mrb[0].mxu0
      %v1266 = vadd.f32 0.0, %v1265
      %v1267 = vpop.f32.mrb[0].mxu0
      %1268 = vmatprep.mubr.f32.mxu0 0.0
      %1269 = vmatmul.mubr.f32.gmra.mrb[0].mxu0 %v1065
      %v1270 = vpop.f32.mrb[0].mxu0
      %v1271 = vadd.f32 0.0, %v1270
      %v1272 = vpop.f32.mrb[0].mxu0
      %1273 = vmatprep.mubr.f32.mxu0 0.0
      %1274 = vmatmul.mubr.f32.gmra.mrb[0].mxu0 %v1068
      %v1275 = vpop.f32.mrb[0].mxu0
      %v1276 = vadd.f32 0.0, %v1275
      %v1277 = vpop.f32.mrb[0].mxu0
      %1278 = vmatprep.mubr.f32.mxu0 0.0
      %1279 = vmatmul.mubr.f32.gmra.mrb[0].mxu0 %v1071
      %v1280 = vpop.f32.mrb[0].mxu0
      %v1281 = vadd.f32 0.0, %v1280
      %v1282 = vpop.f32.mrb[0].mxu0
      %1283 = vmatprep.mubr.f32.mxu0 0.0
      %1284 = vmatmul.mubr.f32.gmra.mrb[0].mxu0 %v1074
      %v1285 = vpop.f32.mrb[0].mxu0
      %v1286 = vadd.f32 0.0, %v1285
      %v1287 = vpop.f32.mrb[0].mxu0
      %1288 = vmatprep.mubr.f32.mxu0 0.0
      %1289 = vmatmul.mubr.f32.gmra.mrb[0].mxu0 %v1077
      %v1290 = vpop.f32.mrb[0].mxu0
      %v1291 = vadd.f32 0.0, %v1290
      %v1292 = vpop.f32.mrb[0].mxu0
      %1293 = vmatprep.mubr.f32.mxu0 0.0
      %1294 = vmatmul.mubr.f32.gmra.mrb[0].mxu0 %v1080
      %v1295 = vpop.f32.mrb[0].mxu0
      %v1296 = vadd.f32 0.0, %v1295
      %v1297 = vpop.f32.mrb[0].mxu0
      %1298 = vmatprep.mubr.f32.mxu0 0.0
      %1299 = vmatmul.mubr.f32.gmra.mrb[0].mxu0 %v1083
      %v1300 = vpop.f32.mrb[0].mxu0
      %v1301 = vadd.f32 0.0, %v1300
      %v1302 = vpop.f32.mrb[0].mxu0
      %1303 = vmatprep.mubr.f32.mxu0 0.0
      %1304 = vmatmul.mubr.f32.gmra.mrb[0].mxu0 %v1086
      %v1305 = vpop.f32.mrb[0].mxu0
      %v1306 = vadd.f32 0.0, %v1305
      %v1307 = vpop.f32.mrb[0].mxu0
      %1308 = vmatprep.mubr.f32.mxu0 0.0
      %1309 = vmatmul.mubr.f32.gmra.mrb[0].mxu0 %v1089
      %v1310 = vpop.f32.mrb[0].mxu0
      %v1311 = vadd.f32 0.0, %v1310
      %v1312 = vpop.f32.mrb[0].mxu0
      %1313 = vmatprep.mubr.f32.mxu0 0.0
      %1314 = vmatmul.mubr.f32.gmra.mrb[0].mxu0 %v1092
      %v1315 = vpop.f32.mrb[0].mxu0
      %v1316 = vadd.f32 0.0, %v1315
      %v1317 = vpop.f32.mrb[0].mxu0
      %1318 = vdwg.mxu0
      %1319 = vrot.lane.b32.xlu0 %v235, 112
      %v1320 = vpop.permute.xlu0 %1319
      %1321 = vrot.lane.b32.xlu0 %v236, 112
      %v1322 = vpop.permute.xlu0 %1321
      %1323 = vrot.lane.b32.xlu0 %v237, 112
      %v1324 = vpop.permute.xlu0 %1323
      %1325 = vrot.lane.b32.xlu0 %v238, 112
      %v1326 = vpop.permute.xlu0 %1325
      %1327 = vrot.lane.b32.xlu0 %v239, 112
      %v1328 = vpop.permute.xlu0 %1327
      %1329 = vrot.lane.b32.xlu0 %v240, 112
      %v1330 = vpop.permute.xlu0 %1329
      %1331 = vrot.lane.b32.xlu0 %v241, 112
      %v1332 = vpop.permute.xlu0 %1331
      %1333 = vrot.lane.b32.xlu0 %v242, 112
      %v1334 = vpop.permute.xlu0 %1333
      %1335 = vrot.lane.b32.xlu0 %v243, 112
      %v1336 = vpop.permute.xlu0 %1335
      %1337 = vrot.lane.b32.xlu0 %v244, 112
      %v1338 = vpop.permute.xlu0 %1337
      %1339 = vrot.lane.b32.xlu0 %v245, 112
      %v1340 = vpop.permute.xlu0 %1339
      %1341 = vrot.lane.b32.xlu0 %v246, 112
      %v1342 = vpop.permute.xlu0 %1341
      %1343 = vrot.lane.b32.xlu0 %v247, 112
      %v1344 = vpop.permute.xlu0 %1343
      %1345 = vrot.lane.b32.xlu0 %v248, 112
      %v1346 = vpop.permute.xlu0 %1345
      %1347 = vrot.lane.b32.xlu0 %v249, 112
      %v1348 = vpop.permute.xlu0 %1347
      %1349 = vrot.lane.b32.xlu0 %v250, 112
      %v1350 = vpop.permute.xlu0 %1349
      %1351 = vrot.lane.b32.xlu0 %v251, 112
      %v1352 = vpop.permute.xlu0 %1351
      %1353 = vrot.lane.b32.xlu0 %v252, 112
      %v1354 = vpop.permute.xlu0 %1353
      %1355 = vrot.lane.b32.xlu0 %v253, 112
      %v1356 = vpop.permute.xlu0 %1355
      %1357 = vrot.lane.b32.xlu0 %v254, 112
      %v1358 = vpop.permute.xlu0 %1357
      %1359 = vrot.lane.b32.xlu0 %v255, 112
      %v1360 = vpop.permute.xlu0 %1359
      %1361 = vrot.lane.b32.xlu0 %v256, 112
      %v1362 = vpop.permute.xlu0 %1361
      %1363 = vrot.lane.b32.xlu0 %v257, 112
      %v1364 = vpop.permute.xlu0 %1363
      %1365 = vrot.lane.b32.xlu0 %v258, 112
      %v1366 = vpop.permute.xlu0 %1365
      %1367 = vrot.lane.b32.xlu0 %v259, 112
      %v1368 = vpop.permute.xlu0 %1367
      %1369 = vrot.lane.b32.xlu0 %v260, 112
      %v1370 = vpop.permute.xlu0 %1369
      %1371 = vrot.lane.b32.xlu0 %v261, 112
      %v1372 = vpop.permute.xlu0 %1371
      %1373 = vrot.lane.b32.xlu0 %v262, 112
      %v1374 = vpop.permute.xlu0 %1373
      %1375 = vrot.lane.b32.xlu0 %v263, 112
      %v1376 = vpop.permute.xlu0 %1375
      %1377 = vrot.lane.b32.xlu0 %v264, 112
      %v1378 = vpop.permute.xlu0 %1377
      %1379 = vrot.lane.b32.xlu0 %v265, 112
      %v1380 = vpop.permute.xlu0 %1379
      %1381 = vrot.lane.b32.xlu0 %v266, 112
      %v1382 = vpop.permute.xlu0 %1381
      %1383 = vrot.lane.b32.xlu0 %v267, 112
      %v1384 = vpop.permute.xlu0 %1383
      %1385 = vrot.lane.b32.xlu0 %v268, 112
      %v1386 = vpop.permute.xlu0 %1385
      %1387 = vrot.lane.b32.xlu0 %v269, 112
      %v1388 = vpop.permute.xlu0 %1387
      %1389 = vrot.lane.b32.xlu0 %v270, 112
      %v1390 = vpop.permute.xlu0 %1389
      %1391 = vrot.lane.b32.xlu0 %v271, 112
      %v1392 = vpop.permute.xlu0 %1391
      %1393 = vrot.lane.b32.xlu0 %v272, 112
      %v1394 = vpop.permute.xlu0 %1393
      %1395 = vrot.lane.b32.xlu0 %v273, 112
      %v1396 = vpop.permute.xlu0 %1395
      %1397 = vrot.lane.b32.xlu0 %v274, 112
      %v1398 = vpop.permute.xlu0 %1397
      %v1399 = vsel %vm275, %v1320, 0
      %v1401 = vsel %vm275, %v1322, 0
      %v1403 = vsel %vm275, %v1324, 0
      %v1405 = vsel %vm275, %v1326, 0
      %v1407 = vsel %vm275, %v1328, 0
      %v1409 = vsel %vm275, %v1330, 0
      %v1411 = vsel %vm275, %v1332, 0
      %v1413 = vsel %vm275, %v1334, 0
      %v1415 = vsel %vm275, %v1336, 0
      %v1417 = vsel %vm275, %v1338, 0
      %v1419 = vsel %vm275, %v1340, 0
      %v1421 = vsel %vm275, %v1342, 0
      %v1423 = vsel %vm275, %v1344, 0
      %v1425 = vsel %vm275, %v1346, 0
      %v1427 = vsel %vm275, %v1348, 0
      %v1429 = vsel %vm275, %v1350, 0
      %v1431 = vsel %vm275, %v1352, 0
      %v1433 = vsel %vm275, %v1354, 0
      %v1435 = vsel %vm275, %v1356, 0
      %v1437 = vsel %vm275, %v1358, 0
      %v1439 = vsel %vm275, %v1360, 0
      %v1441 = vsel %vm275, %v1362, 0
      %v1443 = vsel %vm275, %v1364, 0
      %v1445 = vsel %vm275, %v1366, 0
      %v1447 = vsel %vm275, %v1368, 0
      %v1449 = vsel %vm275, %v1370, 0
      %v1451 = vsel %vm275, %v1372, 0
      %v1453 = vsel %vm275, %v1374, 0
      %v1455 = vsel %vm275, %v1376, 0
      %v1457 = vsel %vm275, %v1378, 0
      %v1459 = vsel %vm275, %v1380, 0
      %v1461 = vsel %vm275, %v1382, 0
      %v1463 = vsel %vm275, %v1384, 0
      %v1465 = vsel %vm275, %v1386, 0
      %v1467 = vsel %vm275, %v1388, 0
      %v1469 = vsel %vm275, %v1390, 0
      %v1471 = vsel %vm275, %v1392, 0
      %v1473 = vsel %vm275, %v1394, 0
      %v1475 = vsel %vm275, %v1396, 0
      %v1477 = vsel %vm275, %v1398, 0
      %1479 = vmatprep.subr.mxu0 0.0
      %1480 = vmatpush1.xpose.msra.mxu0 %v1463
      %1481 = vmatprep.subr.mxu0 0.0
      %1482 = vmatpush1.xpose.msra.mxu0 %v1465
      %1483 = vmatprep.subr.mxu0 0.0
      %1484 = vmatpush1.xpose.msra.mxu0 %v1467
      %1485 = vmatprep.subr.mxu0 0.0
      %1486 = vmatpush1.xpose.msra.mxu0 %v1469
      %1487 = vmatprep.subr.mxu0 0.0
      %1488 = vmatpush1.xpose.msra.mxu0 %v1471
      %1489 = vmatprep.subr.mxu0 0.0
      %1490 = vmatpush1.xpose.msra.mxu0 %v1473
      %1491 = vmatprep.subr.mxu0 0.0
      %1492 = vmatpush1.xpose.msra.mxu0 %v1475
      %1493 = vmatprep.subr.mxu0 0.0
      %1494 = vmatpush1.xpose.msra.mxu0 %v1477
      %1495 = vmatprep.subr.mxu0 0.0
      %1496 = vmatpush1.xpose.msra.mxu0 0.0
      %1497 = vmatprep.subr.mxu0 0.0
      %1498 = vmatpush1.xpose.msra.mxu0 0.0
      %1499 = vmatprep.subr.mxu0 0.0
      %1500 = vmatpush1.xpose.msra.mxu0 0.0
      %1501 = vmatprep.subr.mxu0 0.0
      %1502 = vmatpush1.xpose.msra.mxu0 0.0
      %1503 = vmatprep.subr.mxu0 0.0
      %1504 = vmatpush1.xpose.msra.mxu0 0.0
      %1505 = vmatprep.subr.mxu0 0.0
      %1506 = vmatpush1.xpose.msra.mxu0 0.0
      %1507 = vmatprep.subr.mxu0 0.0
      %1508 = vmatpush1.xpose.msra.mxu0 0.0
      %1509 = vmatprep.subr.mxu0 0.0
      %1510 = vmatpush1.xpose.msra.mxu0 0.0
      %1511 = vmatprep.subr.mxu0 0.0
      %1512 = vmatpush1.xpose.msra.mxu0 0.0
      %1513 = vmatprep.subr.mxu0 0.0
      %1514 = vmatpush1.xpose.msra.mxu0 0.0
      %1515 = vmatprep.subr.mxu0 0.0
      %1516 = vmatpush1.xpose.msra.mxu0 0.0
      %1517 = vmatprep.subr.mxu0 0.0
      %1518 = vmatpush1.xpose.msra.mxu0 0.0
      %1519 = vmatprep.subr.mxu0 0.0
      %1520 = vmatpush1.xpose.msra.mxu0 0.0
      %1521 = vmatprep.subr.mxu0 0.0
      %1522 = vmatpush1.xpose.msra.mxu0 0.0
      %1523 = vmatprep.subr.mxu0 0.0
      %1524 = vmatpush1.xpose.msra.mxu0 0.0
      %1525 = vmatprep.subr.mxu0 0.0
      %1526 = vmatpush1.xpose.msra.mxu0 0.0
      %1527 = vmatprep.subr.mxu0 0.0
      %1528 = vmatpush1.xpose.msra.mxu0 0.0
      %1529 = vmatprep.subr.mxu0 0.0
      %1530 = vmatpush1.xpose.msra.mxu0 0.0
      %1531 = vmatprep.subr.mxu0 0.0
      %1532 = vmatpush1.xpose.msra.mxu0 0.0
      %1533 = vmatprep.subr.mxu0 0.0
      %1534 = vmatpush1.xpose.msra.mxu0 0.0
      %1535 = vmatprep.subr.mxu0 0.0
      %1536 = vmatpush1.xpose.msra.mxu0 0.0
      %1537 = vmatprep.subr.mxu0 0.0
      %1538 = vmatpush1.xpose.msra.mxu0 0.0
      %1539 = vmatprep.subr.mxu0 0.0
      %1540 = vmatpush1.xpose.msra.mxu0 0.0
      %1541 = vmatprep.subr.mxu0 0.0
      %1542 = vmatpush1.xpose.msra.mxu0 0.0
      %1543 = vmatprep.mubr.f32.mxu0 0.0
      %1544 = vmatmul.mubr.f32.gmra.mrb[0].mxu0 %v1399
      %v1545 = vpop.f32.mrb[0].mxu0
      %v1546 = vadd.f32 0.0, %v1545
      %v1547 = vpop.f32.mrb[0].mxu0
      %1548 = vmatprep.mubr.f32.mxu0 0.0
      %1549 = vmatmul.mubr.f32.gmra.mrb[0].mxu0 %v1401
      %v1550 = vpop.f32.mrb[0].mxu0
      %v1551 = vadd.f32 0.0, %v1550
      %v1552 = vpop.f32.mrb[0].mxu0
      %1553 = vmatprep.mubr.f32.mxu0 0.0
      %1554 = vmatmul.mubr.f32.gmra.mrb[0].mxu0 %v1403
      %v1555 = vpop.f32.mrb[0].mxu0
      %v1556 = vadd.f32 0.0, %v1555
      %v1557 = vpop.f32.mrb[0].mxu0
      %1558 = vmatprep.mubr.f32.mxu0 0.0
      %1559 = vmatmul.mubr.f32.gmra.mrb[0].mxu0 %v1405
      %v1560 = vpop.f32.mrb[0].mxu0
      %v1561 = vadd.f32 0.0, %v1560
      %v1562 = vpop.f32.mrb[0].mxu0
      %1563 = vmatprep.mubr.f32.mxu0 0.0
      %1564 = vmatmul.mubr.f32.gmra.mrb[0].mxu0 %v1407
      %v1565 = vpop.f32.mrb[0].mxu0
      %v1566 = vadd.f32 0.0, %v1565
      %v1567 = vpop.f32.mrb[0].mxu0
      %1568 = vmatprep.mubr.f32.mxu0 0.0
      %1569 = vmatmul.mubr.f32.gmra.mrb[0].mxu0 %v1409
      %v1570 = vpop.f32.mrb[0].mxu0
      %v1571 = vadd.f32 0.0, %v1570
      %v1572 = vpop.f32.mrb[0].mxu0
      %1573 = vmatprep.mubr.f32.mxu0 0.0
      %1574 = vmatmul.mubr.f32.gmra.mrb[0].mxu0 %v1411
      %v1575 = vpop.f32.mrb[0].mxu0
      %v1576 = vadd.f32 0.0, %v1575
      %v1577 = vpop.f32.mrb[0].mxu0
      %1578 = vmatprep.mubr.f32.mxu0 0.0
      %1579 = vmatmul.mubr.f32.gmra.mrb[0].mxu0 %v1413
      %v1580 = vpop.f32.mrb[0].mxu0
      %v1581 = vadd.f32 0.0, %v1580
      %v1582 = vpop.f32.mrb[0].mxu0
      %1583 = vmatprep.mubr.f32.mxu0 0.0
      %1584 = vmatmul.mubr.f32.gmra.mrb[0].mxu0 %v1415
      %v1585 = vpop.f32.mrb[0].mxu0
      %v1586 = vadd.f32 0.0, %v1585
      %v1587 = vpop.f32.mrb[0].mxu0
      %1588 = vmatprep.mubr.f32.mxu0 0.0
      %1589 = vmatmul.mubr.f32.gmra.mrb[0].mxu0 %v1417
      %v1590 = vpop.f32.mrb[0].mxu0
      %v1591 = vadd.f32 0.0, %v1590
      %v1592 = vpop.f32.mrb[0].mxu0
      %1593 = vmatprep.mubr.f32.mxu0 0.0
      %1594 = vmatmul.mubr.f32.gmra.mrb[0].mxu0 %v1419
      %v1595 = vpop.f32.mrb[0].mxu0
      %v1596 = vadd.f32 0.0, %v1595
      %v1597 = vpop.f32.mrb[0].mxu0
      %1598 = vmatprep.mubr.f32.mxu0 0.0
      %1599 = vmatmul.mubr.f32.gmra.mrb[0].mxu0 %v1421
      %v1600 = vpop.f32.mrb[0].mxu0
      %v1601 = vadd.f32 0.0, %v1600
      %v1602 = vpop.f32.mrb[0].mxu0
      %1603 = vmatprep.mubr.f32.mxu0 0.0
      %1604 = vmatmul.mubr.f32.gmra.mrb[0].mxu0 %v1423
      %v1605 = vpop.f32.mrb[0].mxu0
      %v1606 = vadd.f32 0.0, %v1605
      %v1607 = vpop.f32.mrb[0].mxu0
      %1608 = vmatprep.mubr.f32.mxu0 0.0
      %1609 = vmatmul.mubr.f32.gmra.mrb[0].mxu0 %v1425
      %v1610 = vpop.f32.mrb[0].mxu0
      %v1611 = vadd.f32 0.0, %v1610
      %v1612 = vpop.f32.mrb[0].mxu0
      %1613 = vmatprep.mubr.f32.mxu0 0.0
      %1614 = vmatmul.mubr.f32.gmra.mrb[0].mxu0 %v1427
      %v1615 = vpop.f32.mrb[0].mxu0
      %v1616 = vadd.f32 0.0, %v1615
      %v1617 = vpop.f32.mrb[0].mxu0
      %1618 = vmatprep.mubr.f32.mxu0 0.0
      %1619 = vmatmul.mubr.f32.gmra.mrb[0].mxu0 %v1429
      %v1620 = vpop.f32.mrb[0].mxu0
      %v1621 = vadd.f32 0.0, %v1620
      %v1622 = vpop.f32.mrb[0].mxu0
      %1623 = vmatprep.mubr.f32.mxu0 0.0
      %1624 = vmatmul.mubr.f32.gmra.mrb[0].mxu0 %v1431
      %v1625 = vpop.f32.mrb[0].mxu0
      %v1626 = vadd.f32 0.0, %v1625
      %v1627 = vpop.f32.mrb[0].mxu0
      %1628 = vmatprep.mubr.f32.mxu0 0.0
      %1629 = vmatmul.mubr.f32.gmra.mrb[0].mxu0 %v1433
      %v1630 = vpop.f32.mrb[0].mxu0
      %v1631 = vadd.f32 0.0, %v1630
      %v1632 = vpop.f32.mrb[0].mxu0
      %1633 = vmatprep.mubr.f32.mxu0 0.0
      %1634 = vmatmul.mubr.f32.gmra.mrb[0].mxu0 %v1435
      %v1635 = vpop.f32.mrb[0].mxu0
      %v1636 = vadd.f32 0.0, %v1635
      %v1637 = vpop.f32.mrb[0].mxu0
      %1638 = vmatprep.mubr.f32.mxu0 0.0
      %1639 = vmatmul.mubr.f32.gmra.mrb[0].mxu0 %v1437
      %v1640 = vpop.f32.mrb[0].mxu0
      %v1641 = vadd.f32 0.0, %v1640
      %v1642 = vpop.f32.mrb[0].mxu0
      %1643 = vmatprep.mubr.f32.mxu0 0.0
      %1644 = vmatmul.mubr.f32.gmra.mrb[0].mxu0 %v1439
      %v1645 = vpop.f32.mrb[0].mxu0
      %v1646 = vadd.f32 0.0, %v1645
      %v1647 = vpop.f32.mrb[0].mxu0
      %1648 = vmatprep.mubr.f32.mxu0 0.0
      %1649 = vmatmul.mubr.f32.gmra.mrb[0].mxu0 %v1441
      %v1650 = vpop.f32.mrb[0].mxu0
      %v1651 = vadd.f32 0.0, %v1650
      %v1652 = vpop.f32.mrb[0].mxu0
      %1653 = vmatprep.mubr.f32.mxu0 0.0
      %1654 = vmatmul.mubr.f32.gmra.mrb[0].mxu0 %v1443
      %v1655 = vpop.f32.mrb[0].mxu0
      %v1656 = vadd.f32 0.0, %v1655
      %v1657 = vpop.f32.mrb[0].mxu0
      %1658 = vmatprep.mubr.f32.mxu0 0.0
      %1659 = vmatmul.mubr.f32.gmra.mrb[0].mxu0 %v1445
      %v1660 = vpop.f32.mrb[0].mxu0
      %v1661 = vadd.f32 0.0, %v1660
      %v1662 = vpop.f32.mrb[0].mxu0
      %1663 = vmatprep.mubr.f32.mxu0 0.0
      %1664 = vmatmul.mubr.f32.gmra.mrb[0].mxu0 %v1447
      %v1665 = vpop.f32.mrb[0].mxu0
      %v1666 = vadd.f32 0.0, %v1665
      %v1667 = vpop.f32.mrb[0].mxu0
      %1668 = vmatprep.mubr.f32.mxu0 0.0
      %1669 = vmatmul.mubr.f32.gmra.mrb[0].mxu0 %v1449
      %v1670 = vpop.f32.mrb[0].mxu0
      %v1671 = vadd.f32 0.0, %v1670
      %v1672 = vpop.f32.mrb[0].mxu0
      %1673 = vmatprep.mubr.f32.mxu0 0.0
      %1674 = vmatmul.mubr.f32.gmra.mrb[0].mxu0 %v1451
      %v1675 = vpop.f32.mrb[0].mxu0
      %v1676 = vadd.f32 0.0, %v1675
      %v1677 = vpop.f32.mrb[0].mxu0
      %1678 = vmatprep.mubr.f32.mxu0 0.0
      %1679 = vmatmul.mubr.f32.gmra.mrb[0].mxu0 %v1453
      %v1680 = vpop.f32.mrb[0].mxu0
      %v1681 = vadd.f32 0.0, %v1680
      %v1682 = vpop.f32.mrb[0].mxu0
      %1683 = vmatprep.mubr.f32.mxu0 0.0
      %1684 = vmatmul.mubr.f32.gmra.mrb[0].mxu0 %v1455
      %v1685 = vpop.f32.mrb[0].mxu0
      %v1686 = vadd.f32 0.0, %v1685
      %v1687 = vpop.f32.mrb[0].mxu0
      %1688 = vmatprep.mubr.f32.mxu0 0.0
      %1689 = vmatmul.mubr.f32.gmra.mrb[0].mxu0 %v1457
      %v1690 = vpop.f32.mrb[0].mxu0
      %v1691 = vadd.f32 0.0, %v1690
      %v1692 = vpop.f32.mrb[0].mxu0
      %1693 = vmatprep.mubr.f32.mxu0 0.0
      %1694 = vmatmul.mubr.f32.gmra.mrb[0].mxu0 %v1459
      %v1695 = vpop.f32.mrb[0].mxu0
      %v1696 = vadd.f32 0.0, %v1695
      %v1697 = vpop.f32.mrb[0].mxu0
      %1698 = vmatprep.mubr.f32.mxu0 0.0
      %1699 = vmatmul.mubr.f32.gmra.mrb[0].mxu0 %v1461
      %v1700 = vpop.f32.mrb[0].mxu0
      %v1701 = vadd.f32 0.0, %v1700
      %v1702 = vpop.f32.mrb[0].mxu0
      %1703 = vdwg.mxu0
      %v1704 = vsel %vm621, %v1546, -inf
      %1705 = vmax.xlane.f32.xlu0 %v1704
      %v1706 = vpop.xlane.xlu0 %1705
      %v1707 = vsel %vm621, %v1551, -inf
      %1708 = vmax.xlane.f32.xlu0 %v1707
      %v1709 = vpop.xlane.xlu0 %1708
      %v1710 = vsel %vm621, %v1556, -inf
      %1711 = vmax.xlane.f32.xlu0 %v1710
      %v1712 = vpop.xlane.xlu0 %1711
      %v1713 = vsel %vm621, %v1561, -inf
      %1714 = vmax.xlane.f32.xlu0 %v1713
      %v1715 = vpop.xlane.xlu0 %1714
      %v1716 = vsel %vm621, %v1566, -inf
      %1717 = vmax.xlane.f32.xlu0 %v1716
      %v1718 = vpop.xlane.xlu0 %1717
      %v1719 = vsel %vm621, %v1571, -inf
      %1720 = vmax.xlane.f32.xlu0 %v1719
      %v1721 = vpop.xlane.xlu0 %1720
      %v1722 = vsel %vm621, %v1576, -inf
      %1723 = vmax.xlane.f32.xlu0 %v1722
      %v1724 = vpop.xlane.xlu0 %1723
      %v1725 = vsel %vm621, %v1581, -inf
      %1726 = vmax.xlane.f32.xlu0 %v1725
      %v1727 = vpop.xlane.xlu0 %1726
      %v1728 = vsel %vm621, %v1586, -inf
      %1729 = vmax.xlane.f32.xlu0 %v1728
      %v1730 = vpop.xlane.xlu0 %1729
      %v1731 = vsel %vm621, %v1591, -inf
      %1732 = vmax.xlane.f32.xlu0 %v1731
      %v1733 = vpop.xlane.xlu0 %1732
      %v1734 = vsel %vm621, %v1596, -inf
      %1735 = vmax.xlane.f32.xlu0 %v1734
      %v1736 = vpop.xlane.xlu0 %1735
      %v1737 = vsel %vm621, %v1601, -inf
      %1738 = vmax.xlane.f32.xlu0 %v1737
      %v1739 = vpop.xlane.xlu0 %1738
      %v1740 = vsel %vm621, %v1606, -inf
      %1741 = vmax.xlane.f32.xlu0 %v1740
      %v1742 = vpop.xlane.xlu0 %1741
      %v1743 = vsel %vm621, %v1611, -inf
      %1744 = vmax.xlane.f32.xlu0 %v1743
      %v1745 = vpop.xlane.xlu0 %1744
      %v1746 = vsel %vm621, %v1616, -inf
      %1747 = vmax.xlane.f32.xlu0 %v1746
      %v1748 = vpop.xlane.xlu0 %1747
      %v1749 = vsel %vm621, %v1621, -inf
      %1750 = vmax.xlane.f32.xlu0 %v1749
      %v1751 = vpop.xlane.xlu0 %1750
      %v1752 = vsel %vm621, %v1626, -inf
      %1753 = vmax.xlane.f32.xlu0 %v1752
      %v1754 = vpop.xlane.xlu0 %1753
      %v1755 = vsel %vm621, %v1631, -inf
      %1756 = vmax.xlane.f32.xlu0 %v1755
      %v1757 = vpop.xlane.xlu0 %1756
      %v1758 = vsel %vm621, %v1636, -inf
      %1759 = vmax.xlane.f32.xlu0 %v1758
      %v1760 = vpop.xlane.xlu0 %1759
      %v1761 = vsel %vm621, %v1641, -inf
      %1762 = vmax.xlane.f32.xlu0 %v1761
      %v1763 = vpop.xlane.xlu0 %1762
      %v1764 = vsel %vm621, %v1646, -inf
      %1765 = vmax.xlane.f32.xlu0 %v1764
      %v1766 = vpop.xlane.xlu0 %1765
      %v1767 = vsel %vm621, %v1651, -inf
      %1768 = vmax.xlane.f32.xlu0 %v1767
      %v1769 = vpop.xlane.xlu0 %1768
      %v1770 = vsel %vm621, %v1656, -inf
      %1771 = vmax.xlane.f32.xlu0 %v1770
      %v1772 = vpop.xlane.xlu0 %1771
      %v1773 = vsel %vm621, %v1661, -inf
      %1774 = vmax.xlane.f32.xlu0 %v1773
      %v1775 = vpop.xlane.xlu0 %1774
      %v1776 = vsel %vm621, %v1666, -inf
      %1777 = vmax.xlane.f32.xlu0 %v1776
      %v1778 = vpop.xlane.xlu0 %1777
      %v1779 = vsel %vm621, %v1671, -inf
      %1780 = vmax.xlane.f32.xlu0 %v1779
      %v1781 = vpop.xlane.xlu0 %1780
      %v1782 = vsel %vm621, %v1676, -inf
      %1783 = vmax.xlane.f32.xlu0 %v1782
      %v1784 = vpop.xlane.xlu0 %1783
      %v1785 = vsel %vm621, %v1681, -inf
      %1786 = vmax.xlane.f32.xlu0 %v1785
      %v1787 = vpop.xlane.xlu0 %1786
      %v1788 = vsel %vm621, %v1686, -inf
      %1789 = vmax.xlane.f32.xlu0 %v1788
      %v1790 = vpop.xlane.xlu0 %1789
      %v1791 = vsel %vm621, %v1691, -inf
      %1792 = vmax.xlane.f32.xlu0 %v1791
      %v1793 = vpop.xlane.xlu0 %1792
      %v1794 = vsel %vm621, %v1696, -inf
      %1795 = vmax.xlane.f32.xlu0 %v1794
      %v1796 = vpop.xlane.xlu0 %1795
      %v1797 = vsel %vm621, %v1701, -inf
      %1798 = vmax.xlane.f32.xlu0 %v1797
      %v1799 = vpop.xlane.xlu0 %1798
      %v1800 = vsub.f32 %v1546, %v1706
      %v1801 = vsub.f32 %v1551, %v1709
      %v1802 = vsub.f32 %v1556, %v1712
      %v1803 = vsub.f32 %v1561, %v1715
      %v1804 = vsub.f32 %v1566, %v1718
      %v1805 = vsub.f32 %v1571, %v1721
      %v1806 = vsub.f32 %v1576, %v1724
      %v1807 = vsub.f32 %v1581, %v1727
      %v1808 = vsub.f32 %v1586, %v1730
      %v1809 = vsub.f32 %v1591, %v1733
      %v1810 = vsub.f32 %v1596, %v1736
      %v1811 = vsub.f32 %v1601, %v1739
      %v1812 = vsub.f32 %v1606, %v1742
      %v1813 = vsub.f32 %v1611, %v1745
      %v1814 = vsub.f32 %v1616, %v1748
      %v1815 = vsub.f32 %v1621, %v1751
      %v1816 = vsub.f32 %v1626, %v1754
      %v1817 = vsub.f32 %v1631, %v1757
      %v1818 = vsub.f32 %v1636, %v1760
      %v1819 = vsub.f32 %v1641, %v1763
      %v1820 = vsub.f32 %v1646, %v1766
      %v1821 = vsub.f32 %v1651, %v1769
      %v1822 = vsub.f32 %v1656, %v1772
      %v1823 = vsub.f32 %v1661, %v1775
      %v1824 = vsub.f32 %v1666, %v1778
      %v1825 = vsub.f32 %v1671, %v1781
      %v1826 = vsub.f32 %v1676, %v1784
      %v1827 = vsub.f32 %v1681, %v1787
      %v1828 = vsub.f32 %v1686, %v1790
      %v1829 = vsub.f32 %v1691, %v1793
      %v1830 = vsub.f32 %v1696, %v1796
      %v1831 = vsub.f32 %v1701, %v1799
      %v1832 = vmul.f32 %v1800, 1.442695
      %v1833 = vpow.pop %v1832
      %v1834 = vmul.f32 %v1801, 1.442695
      %v1835 = vpow.pop %v1834
      %v1836 = vmul.f32 %v1802, 1.442695
      %v1837 = vpow.pop %v1836
      %v1838 = vmul.f32 %v1803, 1.442695
      %v1839 = vpow.pop %v1838
      %v1840 = vmul.f32 %v1804, 1.442695
      %v1841 = vpow.pop %v1840
      %v1842 = vmul.f32 %v1805, 1.442695
      %v1843 = vpow.pop %v1842
      %v1844 = vmul.f32 %v1806, 1.442695
      %v1845 = vpow.pop %v1844
      %v1846 = vmul.f32 %v1807, 1.442695
      %v1847 = vpow.pop %v1846
      %v1848 = vmul.f32 %v1808, 1.442695
      %v1849 = vpow.pop %v1848
      %v1850 = vmul.f32 %v1809, 1.442695
      %v1851 = vpow.pop %v1850
      %v1852 = vmul.f32 %v1810, 1.442695
      %v1853 = vpow.pop %v1852
      %v1854 = vmul.f32 %v1811, 1.442695
      %v1855 = vpow.pop %v1854
      %v1856 = vmul.f32 %v1812, 1.442695
      %v1857 = vpow.pop %v1856
      %v1858 = vmul.f32 %v1813, 1.442695
      %v1859 = vpow.pop %v1858
      %v1860 = vmul.f32 %v1814, 1.442695
      %v1861 = vpow.pop %v1860
      %v1862 = vmul.f32 %v1815, 1.442695
      %v1863 = vpow.pop %v1862
      %v1864 = vmul.f32 %v1816, 1.442695
      %v1865 = vpow.pop %v1864
      %v1866 = vmul.f32 %v1817, 1.442695
      %v1867 = vpow.pop %v1866
      %v1868 = vmul.f32 %v1818, 1.442695
      %v1869 = vpow.pop %v1868
      %v1870 = vmul.f32 %v1819, 1.442695
      %v1871 = vpow.pop %v1870
      %v1872 = vmul.f32 %v1820, 1.442695
      %v1873 = vpow.pop %v1872
      %v1874 = vmul.f32 %v1821, 1.442695
      %v1875 = vpow.pop %v1874
      %v1876 = vmul.f32 %v1822, 1.442695
      %v1877 = vpow.pop %v1876
      %v1878 = vmul.f32 %v1823, 1.442695
      %v1879 = vpow.pop %v1878
      %v1880 = vmul.f32 %v1824, 1.442695
      %v1881 = vpow.pop %v1880
      %v1882 = vmul.f32 %v1825, 1.442695
      %v1883 = vpow.pop %v1882
      %v1884 = vmul.f32 %v1826, 1.442695
      %v1885 = vpow.pop %v1884
      %v1886 = vmul.f32 %v1827, 1.442695
      %v1887 = vpow.pop %v1886
      %v1888 = vmul.f32 %v1828, 1.442695
      %v1889 = vpow.pop %v1888
      %v1890 = vmul.f32 %v1829, 1.442695
      %v1891 = vpow.pop %v1890
      %v1892 = vmul.f32 %v1830, 1.442695
      %v1893 = vpow.pop %v1892
      %v1894 = vmul.f32 %v1831, 1.442695
      %v1895 = vpow.pop %v1894
      %v1896 = vsel %vm621, %v1833, 0.0
      %1897 = vadd.xlane.f32.xlu0 %v1896
      %v1898 = vpop.xlane.xlu0 %1897
      %v1899 = vsel %vm621, %v1835, 0.0
      %1900 = vadd.xlane.f32.xlu0 %v1899
      %v1901 = vpop.xlane.xlu0 %1900
      %v1902 = vsel %vm621, %v1837, 0.0
      %1903 = vadd.xlane.f32.xlu0 %v1902
      %v1904 = vpop.xlane.xlu0 %1903
      %v1905 = vsel %vm621, %v1839, 0.0
      %1906 = vadd.xlane.f32.xlu0 %v1905
      %v1907 = vpop.xlane.xlu0 %1906
      %v1908 = vsel %vm621, %v1841, 0.0
      %1909 = vadd.xlane.f32.xlu0 %v1908
      %v1910 = vpop.xlane.xlu0 %1909
      %v1911 = vsel %vm621, %v1843, 0.0
      %1912 = vadd.xlane.f32.xlu0 %v1911
      %v1913 = vpop.xlane.xlu0 %1912
      %v1914 = vsel %vm621, %v1845, 0.0
      %1915 = vadd.xlane.f32.xlu0 %v1914
      %v1916 = vpop.xlane.xlu0 %1915
      %v1917 = vsel %vm621, %v1847, 0.0
      %1918 = vadd.xlane.f32.xlu0 %v1917
      %v1919 = vpop.xlane.xlu0 %1918
      %v1920 = vsel %vm621, %v1849, 0.0
      %1921 = vadd.xlane.f32.xlu0 %v1920
      %v1922 = vpop.xlane.xlu0 %1921
      %v1923 = vsel %vm621, %v1851, 0.0
      %1924 = vadd.xlane.f32.xlu0 %v1923
      %v1925 = vpop.xlane.xlu0 %1924
      %v1926 = vsel %vm621, %v1853, 0.0
      %1927 = vadd.xlane.f32.xlu0 %v1926
      %v1928 = vpop.xlane.xlu0 %1927
      %v1929 = vsel %vm621, %v1855, 0.0
      %1930 = vadd.xlane.f32.xlu0 %v1929
      %v1931 = vpop.xlane.xlu0 %1930
      %v1932 = vsel %vm621, %v1857, 0.0
      %1933 = vadd.xlane.f32.xlu0 %v1932
      %v1934 = vpop.xlane.xlu0 %1933
      %v1935 = vsel %vm621, %v1859, 0.0
      %1936 = vadd.xlane.f32.xlu0 %v1935
      %v1937 = vpop.xlane.xlu0 %1936
      %v1938 = vsel %vm621, %v1861, 0.0
      %1939 = vadd.xlane.f32.xlu0 %v1938
      %v1940 = vpop.xlane.xlu0 %1939
      %v1941 = vsel %vm621, %v1863, 0.0
      %1942 = vadd.xlane.f32.xlu0 %v1941
      %v1943 = vpop.xlane.xlu0 %1942
      %v1944 = vsel %vm621, %v1865, 0.0
      %1945 = vadd.xlane.f32.xlu0 %v1944
      %v1946 = vpop.xlane.xlu0 %1945
      %v1947 = vsel %vm621, %v1867, 0.0
      %1948 = vadd.xlane.f32.xlu0 %v1947
      %v1949 = vpop.xlane.xlu0 %1948
      %v1950 = vsel %vm621, %v1869, 0.0
      %1951 = vadd.xlane.f32.xlu0 %v1950
      %v1952 = vpop.xlane.xlu0 %1951
      %v1953 = vsel %vm621, %v1871, 0.0
      %1954 = vadd.xlane.f32.xlu0 %v1953
      %v1955 = vpop.xlane.xlu0 %1954
      %v1956 = vsel %vm621, %v1873, 0.0
      %1957 = vadd.xlane.f32.xlu0 %v1956
      %v1958 = vpop.xlane.xlu0 %1957
      %v1959 = vsel %vm621, %v1875, 0.0
      %1960 = vadd.xlane.f32.xlu0 %v1959
      %v1961 = vpop.xlane.xlu0 %1960
      %v1962 = vsel %vm621, %v1877, 0.0
      %1963 = vadd.xlane.f32.xlu0 %v1962
      %v1964 = vpop.xlane.xlu0 %1963
      %v1965 = vsel %vm621, %v1879, 0.0
      %1966 = vadd.xlane.f32.xlu0 %v1965
      %v1967 = vpop.xlane.xlu0 %1966
      %v1968 = vsel %vm621, %v1881, 0.0
      %1969 = vadd.xlane.f32.xlu0 %v1968
      %v1970 = vpop.xlane.xlu0 %1969
      %v1971 = vsel %vm621, %v1883, 0.0
      %1972 = vadd.xlane.f32.xlu0 %v1971
      %v1973 = vpop.xlane.xlu0 %1972
      %v1974 = vsel %vm621, %v1885, 0.0
      %1975 = vadd.xlane.f32.xlu0 %v1974
      %v1976 = vpop.xlane.xlu0 %1975
      %v1977 = vsel %vm621, %v1887, 0.0
      %1978 = vadd.xlane.f32.xlu0 %v1977
      %v1979 = vpop.xlane.xlu0 %1978
      %v1980 = vsel %vm621, %v1889, 0.0
      %1981 = vadd.xlane.f32.xlu0 %v1980
      %v1982 = vpop.xlane.xlu0 %1981
      %v1983 = vsel %vm621, %v1891, 0.0
      %1984 = vadd.xlane.f32.xlu0 %v1983
      %v1985 = vpop.xlane.xlu0 %1984
      %v1986 = vsel %vm621, %v1893, 0.0
      %1987 = vadd.xlane.f32.xlu0 %v1986
      %v1988 = vpop.xlane.xlu0 %1987
      %v1989 = vsel %vm621, %v1895, 0.0
      %1990 = vadd.xlane.f32.xlu0 %v1989
      %v1991 = vpop.xlane.xlu0 %1990
      %v1992 = vrcp.pop %v1898
      %v1993 = vrcp.pop %v1901
      %v1994 = vrcp.pop %v1904
      %v1995 = vrcp.pop %v1907
      %v1996 = vrcp.pop %v1910
      %v1997 = vrcp.pop %v1913
      %v1998 = vrcp.pop %v1916
      %v1999 = vrcp.pop %v1919
      %v2000 = vrcp.pop %v1922
      %v2001 = vrcp.pop %v1925
      %v2002 = vrcp.pop %v1928
      %v2003 = vrcp.pop %v1931
      %v2004 = vrcp.pop %v1934
      %v2005 = vrcp.pop %v1937
      %v2006 = vrcp.pop %v1940
      %v2007 = vrcp.pop %v1943
      %v2008 = vrcp.pop %v1946
      %v2009 = vrcp.pop %v1949
      %v2010 = vrcp.pop %v1952
      %v2011 = vrcp.pop %v1955
      %v2012 = vrcp.pop %v1958
      %v2013 = vrcp.pop %v1961
      %v2014 = vrcp.pop %v1964
      %v2015 = vrcp.pop %v1967
      %v2016 = vrcp.pop %v1970
      %v2017 = vrcp.pop %v1973
      %v2018 = vrcp.pop %v1976
      %v2019 = vrcp.pop %v1979
      %v2020 = vrcp.pop %v1982
      %v2021 = vrcp.pop %v1985
      %v2022 = vrcp.pop %v1988
      %v2023 = vrcp.pop %v1991
      %v2024 = vmul.f32 %v1833, %v1992
      %v2025 = vmul.f32 %v1835, %v1993
      %v2026 = vmul.f32 %v1837, %v1994
      %v2027 = vmul.f32 %v1839, %v1995
      %v2028 = vmul.f32 %v1841, %v1996
      %v2029 = vmul.f32 %v1843, %v1997
      %v2030 = vmul.f32 %v1845, %v1998
      %v2031 = vmul.f32 %v1847, %v1999
      %v2032 = vmul.f32 %v1849, %v2000
      %v2033 = vmul.f32 %v1851, %v2001
      %v2034 = vmul.f32 %v1853, %v2002
      %v2035 = vmul.f32 %v1855, %v2003
      %v2036 = vmul.f32 %v1857, %v2004
      %v2037 = vmul.f32 %v1859, %v2005
      %v2038 = vmul.f32 %v1861, %v2006
      %v2039 = vmul.f32 %v1863, %v2007
      %v2040 = vmul.f32 %v1865, %v2008
      %v2041 = vmul.f32 %v1867, %v2009
      %v2042 = vmul.f32 %v1869, %v2010
      %v2043 = vmul.f32 %v1871, %v2011
      %v2044 = vmul.f32 %v1873, %v2012
      %v2045 = vmul.f32 %v1875, %v2013
      %v2046 = vmul.f32 %v1877, %v2014
      %v2047 = vmul.f32 %v1879, %v2015
      %v2048 = vmul.f32 %v1881, %v2016
      %v2049 = vmul.f32 %v1883, %v2017
      %v2050 = vmul.f32 %v1885, %v2018
      %v2051 = vmul.f32 %v1887, %v2019
      %v2052 = vmul.f32 %v1889, %v2020
      %v2053 = vmul.f32 %v1891, %v2021
      %v2054 = vmul.f32 %v1893, %v2022
      %v2055 = vmul.f32 %v1895, %v2023
      %2056 = vrot.lane.b32.xlu0 %v267, 80
      %v2057 = vpop.permute.xlu0 %2056
      %2058 = vrot.lane.b32.xlu0 %v268, 80
      %v2059 = vpop.permute.xlu0 %2058
      %2060 = vrot.lane.b32.xlu0 %v269, 80
      %v2061 = vpop.permute.xlu0 %2060
      %2062 = vrot.lane.b32.xlu0 %v270, 80
      %v2063 = vpop.permute.xlu0 %2062
      %2064 = vrot.lane.b32.xlu0 %v271, 80
      %v2065 = vpop.permute.xlu0 %2064
      %2066 = vrot.lane.b32.xlu0 %v272, 80
      %v2067 = vpop.permute.xlu0 %2066
      %2068 = vrot.lane.b32.xlu0 %v273, 80
      %v2069 = vpop.permute.xlu0 %2068
      %2070 = vrot.lane.b32.xlu0 %v274, 80
      %v2071 = vpop.permute.xlu0 %2070
      %v2081 = vsel %vm621, %v2024, 0
      %v2084 = vsel %vm621, %v2025, 0
      %v2087 = vsel %vm621, %v2026, 0
      %v2090 = vsel %vm621, %v2027, 0
      %v2093 = vsel %vm621, %v2028, 0
      %v2096 = vsel %vm621, %v2029, 0
      %v2099 = vsel %vm621, %v2030, 0
      %v2102 = vsel %vm621, %v2031, 0
      %v2105 = vsel %vm621, %v2032, 0
      %v2108 = vsel %vm621, %v2033, 0
      %v2111 = vsel %vm621, %v2034, 0
      %v2114 = vsel %vm621, %v2035, 0
      %v2117 = vsel %vm621, %v2036, 0
      %v2120 = vsel %vm621, %v2037, 0
      %v2123 = vsel %vm621, %v2038, 0
      %v2126 = vsel %vm621, %v2039, 0
      %v2129 = vsel %vm621, %v2040, 0
      %v2132 = vsel %vm621, %v2041, 0
      %v2135 = vsel %vm621, %v2042, 0
      %v2138 = vsel %vm621, %v2043, 0
      %v2141 = vsel %vm621, %v2044, 0
      %v2144 = vsel %vm621, %v2045, 0
      %v2147 = vsel %vm621, %v2046, 0
      %v2150 = vsel %vm621, %v2047, 0
      %v2153 = vsel %vm621, %v2048, 0
      %v2156 = vsel %vm621, %v2049, 0
      %v2159 = vsel %vm621, %v2050, 0
      %v2162 = vsel %vm621, %v2051, 0
      %v2165 = vsel %vm621, %v2052, 0
      %v2168 = vsel %vm621, %v2053, 0
      %v2171 = vsel %vm621, %v2054, 0
      %v2174 = vsel %vm621, %v2055, 0
      %2176 = vmatprep.subr.mxu0 0.0
      %2177 = vmatpush1.msra.mxu0 %v2057
      %2178 = vmatprep.subr.mxu0 0.0
      %2179 = vmatpush1.msra.mxu0 %v2059
      %2180 = vmatprep.subr.mxu0 0.0
      %2181 = vmatpush1.msra.mxu0 %v2061
      %2182 = vmatprep.subr.mxu0 0.0
      %2183 = vmatpush1.msra.mxu0 %v2063
      %2184 = vmatprep.subr.mxu0 0.0
      %2185 = vmatpush1.msra.mxu0 %v2065
      %2186 = vmatprep.subr.mxu0 0.0
      %2187 = vmatpush1.msra.mxu0 %v2067
      %2188 = vmatprep.subr.mxu0 0.0
      %2189 = vmatpush1.msra.mxu0 %v2069
      %2190 = vmatprep.subr.mxu0 0.0
      %2191 = vmatpush1.msra.mxu0 %v2071
      %2192 = vmatprep.subr.mxu0 0.0
      %2193 = vmatpush1.msra.mxu0 0.0
      %2194 = vmatprep.subr.mxu0 0.0
      %2195 = vmatpush1.msra.mxu0 0.0
      %2196 = vmatprep.subr.mxu0 0.0
      %2197 = vmatpush1.msra.mxu0 0.0
      %2198 = vmatprep.subr.mxu0 0.0
      %2199 = vmatpush1.msra.mxu0 0.0
      %2200 = vmatprep.subr.mxu0 0.0
      %2201 = vmatpush1.msra.mxu0 0.0
      %2202 = vmatprep.subr.mxu0 0.0
      %2203 = vmatpush1.msra.mxu0 0.0
      %2204 = vmatprep.subr.mxu0 0.0
      %2205 = vmatpush1.msra.mxu0 0.0
      %2206 = vmatprep.subr.mxu0 0.0
      %2207 = vmatpush1.msra.mxu0 0.0
      %2208 = vmatprep.subr.mxu0 0.0
      %2209 = vmatpush1.msra.mxu0 0.0
      %2210 = vmatprep.subr.mxu0 0.0
      %2211 = vmatpush1.msra.mxu0 0.0
      %2212 = vmatprep.subr.mxu0 0.0
      %2213 = vmatpush1.msra.mxu0 0.0
      %2214 = vmatprep.subr.mxu0 0.0
      %2215 = vmatpush1.msra.mxu0 0.0
      %2216 = vmatprep.subr.mxu0 0.0
      %2217 = vmatpush1.msra.mxu0 0.0
      %2218 = vmatprep.subr.mxu0 0.0
      %2219 = vmatpush1.msra.mxu0 0.0
      %2220 = vmatprep.subr.mxu0 0.0
      %2221 = vmatpush1.msra.mxu0 0.0
      %2222 = vmatprep.subr.mxu0 0.0
      %2223 = vmatpush1.msra.mxu0 0.0
      %2224 = vmatprep.subr.mxu0 0.0
      %2225 = vmatpush1.msra.mxu0 0.0
      %2226 = vmatprep.subr.mxu0 0.0
      %2227 = vmatpush1.msra.mxu0 0.0
      %2228 = vmatprep.subr.mxu0 0.0
      %2229 = vmatpush1.msra.mxu0 0.0
      %2230 = vmatprep.subr.mxu0 0.0
      %2231 = vmatpush1.msra.mxu0 0.0
      %2232 = vmatprep.subr.mxu0 0.0
      %2233 = vmatpush1.msra.mxu0 0.0
      %2234 = vmatprep.subr.mxu0 0.0
      %2235 = vmatpush1.msra.mxu0 0.0
      %2236 = vmatprep.subr.mxu0 0.0
      %2237 = vmatpush1.msra.mxu0 0.0
      %2238 = vmatprep.subr.mxu0 0.0
      %2239 = vmatpush1.msra.mxu0 0.0
      %2240 = vmatprep.mubr.f32.mxu0 0.0
      %2241 = vmatmul.mubr.f32.gmra.mrb[0].mxu0 %v2081
      %v2242 = vpop.f32.mrb[0].mxu0
      %v2243 = vadd.f32 0.0, %v2242
      %v2244 = vpop.f32.mrb[0].mxu0
      %2245 = vmatprep.mubr.f32.mxu0 0.0
      %2246 = vmatmul.mubr.f32.gmra.mrb[0].mxu0 %v2084
      %v2247 = vpop.f32.mrb[0].mxu0
      %v2248 = vadd.f32 0.0, %v2247
      %v2249 = vpop.f32.mrb[0].mxu0
      %2250 = vmatprep.mubr.f32.mxu0 0.0
      %2251 = vmatmul.mubr.f32.gmra.mrb[0].mxu0 %v2087
      %v2252 = vpop.f32.mrb[0].mxu0
      %v2253 = vadd.f32 0.0, %v2252
      %v2254 = vpop.f32.mrb[0].mxu0
      %2255 = vmatprep.mubr.f32.mxu0 0.0
      %2256 = vmatmul.mubr.f32.gmra.mrb[0].mxu0 %v2090
      %v2257 = vpop.f32.mrb[0].mxu0
      %v2258 = vadd.f32 0.0, %v2257
      %v2259 = vpop.f32.mrb[0].mxu0
      %2260 = vmatprep.mubr.f32.mxu0 0.0
      %2261 = vmatmul.mubr.f32.gmra.mrb[0].mxu0 %v2093
      %v2262 = vpop.f32.mrb[0].mxu0
      %v2263 = vadd.f32 0.0, %v2262
      %v2264 = vpop.f32.mrb[0].mxu0
      %2265 = vmatprep.mubr.f32.mxu0 0.0
      %2266 = vmatmul.mubr.f32.gmra.mrb[0].mxu0 %v2096
      %v2267 = vpop.f32.mrb[0].mxu0
      %v2268 = vadd.f32 0.0, %v2267
      %v2269 = vpop.f32.mrb[0].mxu0
      %2270 = vmatprep.mubr.f32.mxu0 0.0
      %2271 = vmatmul.mubr.f32.gmra.mrb[0].mxu0 %v2099
      %v2272 = vpop.f32.mrb[0].mxu0
      %v2273 = vadd.f32 0.0, %v2272
      %v2274 = vpop.f32.mrb[0].mxu0
      %2275 = vmatprep.mubr.f32.mxu0 0.0
      %2276 = vmatmul.mubr.f32.gmra.mrb[0].mxu0 %v2102
      %v2277 = vpop.f32.mrb[0].mxu0
      %v2278 = vadd.f32 0.0, %v2277
      %v2279 = vpop.f32.mrb[0].mxu0
      %2280 = vmatprep.mubr.f32.mxu0 0.0
      %2281 = vmatmul.mubr.f32.gmra.mrb[0].mxu0 %v2105
      %v2282 = vpop.f32.mrb[0].mxu0
      %v2283 = vadd.f32 0.0, %v2282
      %v2284 = vpop.f32.mrb[0].mxu0
      %2285 = vmatprep.mubr.f32.mxu0 0.0
      %2286 = vmatmul.mubr.f32.gmra.mrb[0].mxu0 %v2108
      %v2287 = vpop.f32.mrb[0].mxu0
      %v2288 = vadd.f32 0.0, %v2287
      %v2289 = vpop.f32.mrb[0].mxu0
      %2290 = vmatprep.mubr.f32.mxu0 0.0
      %2291 = vmatmul.mubr.f32.gmra.mrb[0].mxu0 %v2111
      %v2292 = vpop.f32.mrb[0].mxu0
      %v2293 = vadd.f32 0.0, %v2292
      %v2294 = vpop.f32.mrb[0].mxu0
      %2295 = vmatprep.mubr.f32.mxu0 0.0
      %2296 = vmatmul.mubr.f32.gmra.mrb[0].mxu0 %v2114
      %v2297 = vpop.f32.mrb[0].mxu0
      %v2298 = vadd.f32 0.0, %v2297
      %v2299 = vpop.f32.mrb[0].mxu0
      %2300 = vmatprep.mubr.f32.mxu0 0.0
      %2301 = vmatmul.mubr.f32.gmra.mrb[0].mxu0 %v2117
      %v2302 = vpop.f32.mrb[0].mxu0
      %v2303 = vadd.f32 0.0, %v2302
      %v2304 = vpop.f32.mrb[0].mxu0
      %2305 = vmatprep.mubr.f32.mxu0 0.0
      %2306 = vmatmul.mubr.f32.gmra.mrb[0].mxu0 %v2120
      %v2307 = vpop.f32.mrb[0].mxu0
      %v2308 = vadd.f32 0.0, %v2307
      %v2309 = vpop.f32.mrb[0].mxu0
      %2310 = vmatprep.mubr.f32.mxu0 0.0
      %2311 = vmatmul.mubr.f32.gmra.mrb[0].mxu0 %v2123
      %v2312 = vpop.f32.mrb[0].mxu0
      %v2313 = vadd.f32 0.0, %v2312
      %v2314 = vpop.f32.mrb[0].mxu0
      %2315 = vmatprep.mubr.f32.mxu0 0.0
      %2316 = vmatmul.mubr.f32.gmra.mrb[0].mxu0 %v2126
      %v2317 = vpop.f32.mrb[0].mxu0
      %v2318 = vadd.f32 0.0, %v2317
      %v2319 = vpop.f32.mrb[0].mxu0
      %2320 = vmatprep.mubr.f32.mxu0 0.0
      %2321 = vmatmul.mubr.f32.gmra.mrb[0].mxu0 %v2129
      %v2322 = vpop.f32.mrb[0].mxu0
      %v2323 = vadd.f32 0.0, %v2322
      %v2324 = vpop.f32.mrb[0].mxu0
      %2325 = vmatprep.mubr.f32.mxu0 0.0
      %2326 = vmatmul.mubr.f32.gmra.mrb[0].mxu0 %v2132
      %v2327 = vpop.f32.mrb[0].mxu0
      %v2328 = vadd.f32 0.0, %v2327
      %v2329 = vpop.f32.mrb[0].mxu0
      %2330 = vmatprep.mubr.f32.mxu0 0.0
      %2331 = vmatmul.mubr.f32.gmra.mrb[0].mxu0 %v2135
      %v2332 = vpop.f32.mrb[0].mxu0
      %v2333 = vadd.f32 0.0, %v2332
      %v2334 = vpop.f32.mrb[0].mxu0
      %2335 = vmatprep.mubr.f32.mxu0 0.0
      %2336 = vmatmul.mubr.f32.gmra.mrb[0].mxu0 %v2138
      %v2337 = vpop.f32.mrb[0].mxu0
      %v2338 = vadd.f32 0.0, %v2337
      %v2339 = vpop.f32.mrb[0].mxu0
      %2340 = vmatprep.mubr.f32.mxu0 0.0
      %2341 = vmatmul.mubr.f32.gmra.mrb[0].mxu0 %v2141
      %v2342 = vpop.f32.mrb[0].mxu0
      %v2343 = vadd.f32 0.0, %v2342
      %v2344 = vpop.f32.mrb[0].mxu0
      %2345 = vmatprep.mubr.f32.mxu0 0.0
      %2346 = vmatmul.mubr.f32.gmra.mrb[0].mxu0 %v2144
      %v2347 = vpop.f32.mrb[0].mxu0
      %v2348 = vadd.f32 0.0, %v2347
      %v2349 = vpop.f32.mrb[0].mxu0
      %2350 = vmatprep.mubr.f32.mxu0 0.0
      %2351 = vmatmul.mubr.f32.gmra.mrb[0].mxu0 %v2147
      %v2352 = vpop.f32.mrb[0].mxu0
      %v2353 = vadd.f32 0.0, %v2352
      %v2354 = vpop.f32.mrb[0].mxu0
      %2355 = vmatprep.mubr.f32.mxu0 0.0
      %2356 = vmatmul.mubr.f32.gmra.mrb[0].mxu0 %v2150
      %v2357 = vpop.f32.mrb[0].mxu0
      %v2358 = vadd.f32 0.0, %v2357
      %v2359 = vpop.f32.mrb[0].mxu0
      %2360 = vmatprep.mubr.f32.mxu0 0.0
      %2361 = vmatmul.mubr.f32.gmra.mrb[0].mxu0 %v2153
      %v2362 = vpop.f32.mrb[0].mxu0
      %v2363 = vadd.f32 0.0, %v2362
      %v2364 = vpop.f32.mrb[0].mxu0
      %2365 = vmatprep.mubr.f32.mxu0 0.0
      %2366 = vmatmul.mubr.f32.gmra.mrb[0].mxu0 %v2156
      %v2367 = vpop.f32.mrb[0].mxu0
      %v2368 = vadd.f32 0.0, %v2367
      %v2369 = vpop.f32.mrb[0].mxu0
      %2370 = vmatprep.mubr.f32.mxu0 0.0
      %2371 = vmatmul.mubr.f32.gmra.mrb[0].mxu0 %v2159
      %v2372 = vpop.f32.mrb[0].mxu0
      %v2373 = vadd.f32 0.0, %v2372
      %v2374 = vpop.f32.mrb[0].mxu0
      %2375 = vmatprep.mubr.f32.mxu0 0.0
      %2376 = vmatmul.mubr.f32.gmra.mrb[0].mxu0 %v2162
      %v2377 = vpop.f32.mrb[0].mxu0
      %v2378 = vadd.f32 0.0, %v2377
      %v2379 = vpop.f32.mrb[0].mxu0
      %2380 = vmatprep.mubr.f32.mxu0 0.0
      %2381 = vmatmul.mubr.f32.gmra.mrb[0].mxu0 %v2165
      %v2382 = vpop.f32.mrb[0].mxu0
      %v2383 = vadd.f32 0.0, %v2382
      %v2384 = vpop.f32.mrb[0].mxu0
      %2385 = vmatprep.mubr.f32.mxu0 0.0
      %2386 = vmatmul.mubr.f32.gmra.mrb[0].mxu0 %v2168
      %v2387 = vpop.f32.mrb[0].mxu0
      %v2388 = vadd.f32 0.0, %v2387
      %v2389 = vpop.f32.mrb[0].mxu0
      %2390 = vmatprep.mubr.f32.mxu0 0.0
      %2391 = vmatmul.mubr.f32.gmra.mrb[0].mxu0 %v2171
      %v2392 = vpop.f32.mrb[0].mxu0
      %v2393 = vadd.f32 0.0, %v2392
      %v2394 = vpop.f32.mrb[0].mxu0
      %2395 = vmatprep.mubr.f32.mxu0 0.0
      %2396 = vmatmul.mubr.f32.gmra.mrb[0].mxu0 %v2174
      %v2397 = vpop.f32.mrb[0].mxu0
      %v2398 = vadd.f32 0.0, %v2397
      %v2399 = vpop.f32.mrb[0].mxu0
      %2400 = vdwg.mxu0
      %2433 = vrot.lane.b32.xlu0 %v2243, 16
      %v2434 = vpop.permute.xlu0 %2433
      %2435 = vrot.lane.b32.xlu0 %v2248, 16
      %v2436 = vpop.permute.xlu0 %2435
      %2437 = vrot.lane.b32.xlu0 %v2253, 16
      %v2438 = vpop.permute.xlu0 %2437
      %2439 = vrot.lane.b32.xlu0 %v2258, 16
      %v2440 = vpop.permute.xlu0 %2439
      %2441 = vrot.lane.b32.xlu0 %v2263, 16
      %v2442 = vpop.permute.xlu0 %2441
      %2443 = vrot.lane.b32.xlu0 %v2268, 16
      %v2444 = vpop.permute.xlu0 %2443
      %2445 = vrot.lane.b32.xlu0 %v2273, 16
      %v2446 = vpop.permute.xlu0 %2445
      %2447 = vrot.lane.b32.xlu0 %v2278, 16
      %v2448 = vpop.permute.xlu0 %2447
      %2449 = vrot.lane.b32.xlu0 %v2283, 16
      %v2450 = vpop.permute.xlu0 %2449
      %2451 = vrot.lane.b32.xlu0 %v2288, 16
      %v2452 = vpop.permute.xlu0 %2451
      %2453 = vrot.lane.b32.xlu0 %v2293, 16
      %v2454 = vpop.permute.xlu0 %2453
      %2455 = vrot.lane.b32.xlu0 %v2298, 16
      %v2456 = vpop.permute.xlu0 %2455
      %2457 = vrot.lane.b32.xlu0 %v2303, 16
      %v2458 = vpop.permute.xlu0 %2457
      %2459 = vrot.lane.b32.xlu0 %v2308, 16
      %v2460 = vpop.permute.xlu0 %2459
      %2461 = vrot.lane.b32.xlu0 %v2313, 16
      %v2462 = vpop.permute.xlu0 %2461
      %2463 = vrot.lane.b32.xlu0 %v2318, 16
      %v2464 = vpop.permute.xlu0 %2463
      %2465 = vrot.lane.b32.xlu0 %v2323, 16
      %v2466 = vpop.permute.xlu0 %2465
      %2467 = vrot.lane.b32.xlu0 %v2328, 16
      %v2468 = vpop.permute.xlu0 %2467
      %2469 = vrot.lane.b32.xlu0 %v2333, 16
      %v2470 = vpop.permute.xlu0 %2469
      %2471 = vrot.lane.b32.xlu0 %v2338, 16
      %v2472 = vpop.permute.xlu0 %2471
      %2473 = vrot.lane.b32.xlu0 %v2343, 16
      %v2474 = vpop.permute.xlu0 %2473
      %2475 = vrot.lane.b32.xlu0 %v2348, 16
      %v2476 = vpop.permute.xlu0 %2475
      %2477 = vrot.lane.b32.xlu0 %v2353, 16
      %v2478 = vpop.permute.xlu0 %2477
      %2479 = vrot.lane.b32.xlu0 %v2358, 16
      %v2480 = vpop.permute.xlu0 %2479
      %2481 = vrot.lane.b32.xlu0 %v2363, 16
      %v2482 = vpop.permute.xlu0 %2481
      %2483 = vrot.lane.b32.xlu0 %v2368, 16
      %v2484 = vpop.permute.xlu0 %2483
      %2485 = vrot.lane.b32.xlu0 %v2373, 16
      %v2486 = vpop.permute.xlu0 %2485
      %2487 = vrot.lane.b32.xlu0 %v2378, 16
      %v2488 = vpop.permute.xlu0 %2487
      %2489 = vrot.lane.b32.xlu0 %v2383, 16
      %v2490 = vpop.permute.xlu0 %2489
      %2491 = vrot.lane.b32.xlu0 %v2388, 16
      %v2492 = vpop.permute.xlu0 %2491
      %2493 = vrot.lane.b32.xlu0 %v2393, 16
      %v2494 = vpop.permute.xlu0 %2493
      %2495 = vrot.lane.b32.xlu0 %v2398, 16
      %v2496 = vpop.permute.xlu0 %2495
      %v2529 = vsel %vm275, %v1161, %v2434
      %v2530 = vsel %vm275, %v1166, %v2436
      %v2531 = vsel %vm275, %v1171, %v2438
      %v2532 = vsel %vm275, %v1176, %v2440
      %v2533 = vsel %vm275, %v1181, %v2442
      %v2534 = vsel %vm275, %v1186, %v2444
      %v2535 = vsel %vm275, %v1191, %v2446
      %v2536 = vsel %vm275, %v1196, %v2448
      %v2537 = vsel %vm275, %v1201, %v2450
      %v2538 = vsel %vm275, %v1206, %v2452
      %v2539 = vsel %vm275, %v1211, %v2454
      %v2540 = vsel %vm275, %v1216, %v2456
      %v2541 = vsel %vm275, %v1221, %v2458
      %v2542 = vsel %vm275, %v1226, %v2460
      %v2543 = vsel %vm275, %v1231, %v2462
      %v2544 = vsel %vm275, %v1236, %v2464
      %v2545 = vsel %vm275, %v1241, %v2466
      %v2546 = vsel %vm275, %v1246, %v2468
      %v2547 = vsel %vm275, %v1251, %v2470
      %v2548 = vsel %vm275, %v1256, %v2472
      %v2549 = vsel %vm275, %v1261, %v2474
      %v2550 = vsel %vm275, %v1266, %v2476
      %v2551 = vsel %vm275, %v1271, %v2478
      %v2552 = vsel %vm275, %v1276, %v2480
      %v2553 = vsel %vm275, %v1281, %v2482
      %v2554 = vsel %vm275, %v1286, %v2484
      %v2555 = vsel %vm275, %v1291, %v2486
      %v2556 = vsel %vm275, %v1296, %v2488
      %v2557 = vsel %vm275, %v1301, %v2490
      %v2558 = vsel %vm275, %v1306, %v2492
      %v2559 = vsel %vm275, %v1311, %v2494
      %v2560 = vsel %vm275, %v1316, %v2496
      %vm2561 = vcmask 261120
      %2562 = vst.msk [vmem:[%s201] sm:$0xff] %vm2561, %v2529
      %2563 = vst.msk [vmem:[%s201 + $0x8] sm:$0xff] %vm2561, %v2530
      %2564 = vst.msk [vmem:[%s201 + $0x10] sm:$0xff] %vm2561, %v2531
      %2565 = vst.msk [vmem:[%s201 + $0x18] sm:$0xff] %vm2561, %v2532
      %2566 = vst.msk [vmem:[%s201 + $0x20] sm:$0xff] %vm2561, %v2533
      %2567 = vst.msk [vmem:[%s201 + $0x28] sm:$0xff] %vm2561, %v2534
      %2568 = vst.msk [vmem:[%s201 + $0x30] sm:$0xff] %vm2561, %v2535
      %2569 = vst.msk [vmem:[%s201 + $0x38] sm:$0xff] %vm2561, %v2536
      %2570 = vst.msk [vmem:[%s201 + $0x40] sm:$0xff] %vm2561, %v2537
      %2571 = vst.msk [vmem:[%s201 + $0x48] sm:$0xff] %vm2561, %v2538
      %2572 = vst.msk [vmem:[%s201 + $0x50] sm:$0xff] %vm2561, %v2539
      %2573 = vst.msk [vmem:[%s201 + $0x58] sm:$0xff] %vm2561, %v2540
      %2574 = vst.msk [vmem:[%s201 + $0x60] sm:$0xff] %vm2561, %v2541
      %2575 = vst.msk [vmem:[%s201 + $0x68] sm:$0xff] %vm2561, %v2542
      %2576 = vst.msk [vmem:[%s201 + $0x70] sm:$0xff] %vm2561, %v2543
      %2577 = vst.msk [vmem:[%s201 + $0x78] sm:$0xff] %vm2561, %v2544
      %2578 = vst.msk [vmem:[%s201 + $0x80] sm:$0xff] %vm2561, %v2545
      %2579 = vst.msk [vmem:[%s201 + $0x88] sm:$0xff] %vm2561, %v2546
      %2580 = vst.msk [vmem:[%s201 + $0x90] sm:$0xff] %vm2561, %v2547
      %2581 = vst.msk [vmem:[%s201 + $0x98] sm:$0xff] %vm2561, %v2548
      %2582 = vst.msk [vmem:[%s201 + $0xa0] sm:$0xff] %vm2561, %v2549
      %2583 = vst.msk [vmem:[%s201 + $0xa8] sm:$0xff] %vm2561, %v2550
      %2584 = vst.msk [vmem:[%s201 + $0xb0] sm:$0xff] %vm2561, %v2551
      %2585 = vst.msk [vmem:[%s201 + $0xb8] sm:$0xff] %vm2561, %v2552
      %2586 = vst.msk [vmem:[%s201 + $0xc0] sm:$0xff] %vm2561, %v2553
      %2587 = vst.msk [vmem:[%s201 + $0xc8] sm:$0xff] %vm2561, %v2554
      %2588 = vst.msk [vmem:[%s201 + $0xd0] sm:$0xff] %vm2561, %v2555
      %2589 = vst.msk [vmem:[%s201 + $0xd8] sm:$0xff] %vm2561, %v2556
      %2590 = vst.msk [vmem:[%s201 + $0xe0] sm:$0xff] %vm2561, %v2557
      %2591 = vst.msk [vmem:[%s201 + $0xe8] sm:$0xff] %vm2561, %v2558
      %2592 = vst.msk [vmem:[%s201 + $0xf0] sm:$0xff] %vm2561, %v2559
      %2593 = vst.msk [vmem:[%s201 + $0xf8] sm:$0xff] %vm2561, %v2560
      %s2594 = smul.u32 32, %s18
      %p2595 = scmp.lt.s32.totalorder %s17, 1
      %s2596 = scalar_select %p2595, %s17, 1
      %p2597 = scmp.lt.s32.totalorder %s2594, 31
      %s2598 = scalar_select %p2597, %s2594, 31
      %s2599 = smul.addr %s2596, 32
      %s2600 = sadd.s32 %s2598, %s2599
      %s2601 = smul.addr %s2600, 8
      %s2602 = scalar_lea.vmem %s2, %s2601
      // Predicated region
      $region29: #{efficient_self_attention.6} parent=27 // pred_check
        %p2603 = pneg %p99
      $region30: #{efficient_self_attention.6} parent=27 // pred_check_branch
        %2605 = sbr.rel (%p2603) target = $region32
      $region31: #{efficient_self_attention.6} parent=27 // pred_region
        %s2606 = smul.u32 32, %s18
      $region32: #{efficient_self_attention.6} parent=27 // pred_fallthru
        _
    $region28: #{efficient_self_attention.6} parent=5 // pred_fallthru
      _
    %p2607 = scmp.le.s32.totalorder 2, %s8
    // Predicated region
    $region33: #{efficient_self_attention.6} parent=5 // pred_check
      %p2608 = pneg %p2607
    $region34: #{efficient_self_attention.6} parent=5 // pred_check_branch
      %2610 = sbr.rel (%p2608) target = $region36
    $region35: #{efficient_self_attention.6} parent=5 // pred_region
      %s2611 = ssub.s32 %s8, 2
      // Predicated region
      $region37: #{efficient_self_attention.6} parent=35 // pred_check
        %p2612 = pneg %p105
      $region38: #{efficient_self_attention.6} parent=35 // pred_check_branch
        %2614 = sbr.rel (%p2612) target = $region40
      $region39: #{efficient_self_attention.6} parent=35 // pred_region
        %s2615 = smul.u32 32, %s20
        %p2616 = scmp.lt.s32.totalorder %s19, 1
        %s2617 = scalar_select %p2616, %s19, 1
        %p2618 = scmp.lt.s32.totalorder %s2615, 31
        %s2619 = scalar_select %p2618, %s2615, 31
        %s2620 = smul.addr %s2617, 32
        %s2621 = sadd.s32 %s2619, %s2620
        %s2622 = smul.addr %s2621, 8
        %s2623 = scalar_lea.vmem %s2, %s2622
      $region40: #{efficient_self_attention.6} parent=35 // pred_fallthru
        _
    $region36: #{efficient_self_attention.6} parent=5 // pred_fallthru
      _
  $region6: #{efficient_self_attention.6} parent=0 // loop_footer
    %s12 = sadd.s32 1, %s8
  $region7: #{efficient_self_attention.6} parent=0 // loop_footer_branch
    %7 = sbr.rel target = $region3
  $region8: #{efficient_self_attention.6} parent=0 // loop_exit
    _

// kernel: efficient_self_attention.7
$region0: #{efficient_self_attention.7}
  #allocation0 [shape = 'u32[]', space=smem, size = 0x4, offset = 0x4, fixed_abs, tag = 'smem constant byte address 0x4 - core index']
  #allocation1 [shape = 'u32[144,128]{1,0:T(1,128)}', space=vmem, size = 0x12000, scoped, tag = 'internal scratch']
  %s0 = inlined_call_operand.vmem [shape: f32[512,32], index: 0, kind: input, shape index: {}]
  %s1 = inlined_call_operand.vmem [shape: f32[32,32], index: 1, kind: input, shape index: {}]
  %s2 = inlined_call_operand.hbm [shape: f32[512,32], index: 2, kind: output, shape index: {}]
  %s3 = sld [smem:[#allocation0]]
  $region18: #{efficient_self_attention.7} parent=0
    _
  %s5 = ssub.s32 1, %s3
  %s6 = scalar_select 0, %s5, %s3
  $region1: #{efficient_self_attention.7} parent=0
    #allocation2 [shape = 'u8[262144]{0}', space=vmem, size = 0x40000, scoped, tag = 'output window, operand 0, single buffered']
    #allocation3 [shape = 's32[1]{0}', space=sflag, size = 0x4, scoped, tag = 'scoped memory for efficient_self_attention.7']
    %7 = vsyncpa [#allocation3], 0
    // Predicated region
    $region2: #{efficient_self_attention.7} parent=1 // pred_check
      _
    $region3: #{efficient_self_attention.7} parent=1 // pred_check_branch
      %9 = sbr.rel (0) target = $region5
    $region4: #{efficient_self_attention.7} parent=1 // pred_region
      _
    $region5: #{efficient_self_attention.7} parent=1 // pred_fallthru
      _
    // Predicated region
    $region6: #{efficient_self_attention.7} parent=1 // pred_check
      _
    $region7: #{efficient_self_attention.7} parent=1 // pred_check_branch
      %11 = sbr.rel (0) target = $region9
    $region8: #{efficient_self_attention.7} parent=1 // pred_region
      _
    $region9: #{efficient_self_attention.7} parent=1 // pred_fallthru
      _
    %v12 = vld [vmem:[%s0] sm:$0xff]
    %v13 = vld [vmem:[%s0 + $0x8] sm:$0xff]
    %v14 = vld [vmem:[%s0 + $0x10] sm:$0xff]
    %v15 = vld [vmem:[%s0 + $0x18] sm:$0xff]
    %v16 = vld [vmem:[%s0 + $0x20] sm:$0xff]
    %v17 = vld [vmem:[%s0 + $0x28] sm:$0xff]
    %v18 = vld [vmem:[%s0 + $0x30] sm:$0xff]
    %v19 = vld [vmem:[%s0 + $0x38] sm:$0xff]
    %v20 = vld [vmem:[%s0 + $0x40] sm:$0xff]
    %v21 = vld [vmem:[%s0 + $0x48] sm:$0xff]
    %v22 = vld [vmem:[%s0 + $0x50] sm:$0xff]
    %v23 = vld [vmem:[%s0 + $0x58] sm:$0xff]
    %v24 = vld [vmem:[%s0 + $0x60] sm:$0xff]
    %v25 = vld [vmem:[%s0 + $0x68] sm:$0xff]
    %v26 = vld [vmem:[%s0 + $0x70] sm:$0xff]
    %v27 = vld [vmem:[%s0 + $0x78] sm:$0xff]
    %v28 = vld [vmem:[%s0 + $0x80] sm:$0xff]
    %v29 = vld [vmem:[%s0 + $0x88] sm:$0xff]
    %v30 = vld [vmem:[%s0 + $0x90] sm:$0xff]
    %v31 = vld [vmem:[%s0 + $0x98] sm:$0xff]
    %v32 = vld [vmem:[%s0 + $0xa0] sm:$0xff]
    %v33 = vld [vmem:[%s0 + $0xa8] sm:$0xff]
    %v34 = vld [vmem:[%s0 + $0xb0] sm:$0xff]
    %v35 = vld [vmem:[%s0 + $0xb8] sm:$0xff]
    %v36 = vld [vmem:[%s0 + $0xc0] sm:$0xff]
    %v37 = vld [vmem:[%s0 + $0xc8] sm:$0xff]
    %v38 = vld [vmem:[%s0 + $0xd0] sm:$0xff]
    %v39 = vld [vmem:[%s0 + $0xd8] sm:$0xff]
    %v40 = vld [vmem:[%s0 + $0xe0] sm:$0xff]
    %v41 = vld [vmem:[%s0 + $0xe8] sm:$0xff]
    %v42 = vld [vmem:[%s0 + $0xf0] sm:$0xff]
    %v43 = vld [vmem:[%s0 + $0xf8] sm:$0xff]
    %v44 = vld [vmem:[%s0 + $0x100] sm:$0xff]
    %v45 = vld [vmem:[%s0 + $0x108] sm:$0xff]
    %v46 = vld [vmem:[%s0 + $0x110] sm:$0xff]
    %v47 = vld [vmem:[%s0 + $0x118] sm:$0xff]
    %v48 = vld [vmem:[%s0 + $0x120] sm:$0xff]
    %v49 = vld [vmem:[%s0 + $0x128] sm:$0xff]
    %v50 = vld [vmem:[%s0 + $0x130] sm:$0xff]
    %v51 = vld [vmem:[%s0 + $0x138] sm:$0xff]
    %v52 = vld [vmem:[%s0 + $0x140] sm:$0xff]
    %v53 = vld [vmem:[%s0 + $0x148] sm:$0xff]
    %v54 = vld [vmem:[%s0 + $0x150] sm:$0xff]
    %v55 = vld [vmem:[%s0 + $0x158] sm:$0xff]
    %v56 = vld [vmem:[%s0 + $0x160] sm:$0xff]
    %v57 = vld [vmem:[%s0 + $0x168] sm:$0xff]
    %v58 = vld [vmem:[%s0 + $0x170] sm:$0xff]
    %v59 = vld [vmem:[%s0 + $0x178] sm:$0xff]
    %v60 = vld [vmem:[%s0 + $0x180] sm:$0xff]
    %v61 = vld [vmem:[%s0 + $0x188] sm:$0xff]
    %v62 = vld [vmem:[%s0 + $0x190] sm:$0xff]
    %v63 = vld [vmem:[%s0 + $0x198] sm:$0xff]
    %v64 = vld [vmem:[%s0 + $0x1a0] sm:$0xff]
    %v65 = vld [vmem:[%s0 + $0x1a8] sm:$0xff]
    %v66 = vld [vmem:[%s0 + $0x1b0] sm:$0xff]
    %v67 = vld [vmem:[%s0 + $0x1b8] sm:$0xff]
    %v68 = vld [vmem:[%s0 + $0x1c0] sm:$0xff]
    %v69 = vld [vmem:[%s0 + $0x1c8] sm:$0xff]
    %v70 = vld [vmem:[%s0 + $0x1d0] sm:$0xff]
    %v71 = vld [vmem:[%s0 + $0x1d8] sm:$0xff]
    %v72 = vld [vmem:[%s0 + $0x1e0] sm:$0xff]
    %v73 = vld [vmem:[%s0 + $0x1e8] sm:$0xff]
    %v74 = vld [vmem:[%s0 + $0x1f0] sm:$0xff]
    %v75 = vld [vmem:[%s0 + $0x1f8] sm:$0xff]
    %v76 = vld [vmem:[%s1] sm:$0xff]
    %v77 = vld [vmem:[%s1 + $0x8] sm:$0xff]
    %v78 = vld [vmem:[%s1 + $0x10] sm:$0xff]
    %v79 = vld [vmem:[%s1 + $0x18] sm:$0xff]
    %vm80 = vcmask 261120
    %v82 = vsel %vm80, %v12, 0
    %v85 = vsel %vm80, %v13, 0
    %v88 = vsel %vm80, %v14, 0
    %v91 = vsel %vm80, %v15, 0
    %v94 = vsel %vm80, %v16, 0
    %v97 = vsel %vm80, %v17, 0
    %v100 = vsel %vm80, %v18, 0
    %v103 = vsel %vm80, %v19, 0
    %v106 = vsel %vm80, %v20, 0
    %v109 = vsel %vm80, %v21, 0
    %v112 = vsel %vm80, %v22, 0
    %v115 = vsel %vm80, %v23, 0
    %v118 = vsel %vm80, %v24, 0
    %v121 = vsel %vm80, %v25, 0
    %v124 = vsel %vm80, %v26, 0
    %v127 = vsel %vm80, %v27, 0
    %v130 = vsel %vm80, %v28, 0
    %v133 = vsel %vm80, %v29, 0
    %v136 = vsel %vm80, %v30, 0
    %v139 = vsel %vm80, %v31, 0
    %v142 = vsel %vm80, %v32, 0
    %v145 = vsel %vm80, %v33, 0
    %v148 = vsel %vm80, %v34, 0
    %v151 = vsel %vm80, %v35, 0
    %v154 = vsel %vm80, %v36, 0
    %v157 = vsel %vm80, %v37, 0
    %v160 = vsel %vm80, %v38, 0
    %v163 = vsel %vm80, %v39, 0
    %v166 = vsel %vm80, %v40, 0
    %v169 = vsel %vm80, %v41, 0
    %v172 = vsel %vm80, %v42, 0
    %v175 = vsel %vm80, %v43, 0
    %v178 = vsel %vm80, %v44, 0
    %v181 = vsel %vm80, %v45, 0
    %v184 = vsel %vm80, %v46, 0
    %v187 = vsel %vm80, %v47, 0
    %v190 = vsel %vm80, %v48, 0
    %v193 = vsel %vm80, %v49, 0
    %v196 = vsel %vm80, %v50, 0
    %v199 = vsel %vm80, %v51, 0
    %v202 = vsel %vm80, %v52, 0
    %v205 = vsel %vm80, %v53, 0
    %v208 = vsel %vm80, %v54, 0
    %v211 = vsel %vm80, %v55, 0
    %v214 = vsel %vm80, %v56, 0
    %v217 = vsel %vm80, %v57, 0
    %v220 = vsel %vm80, %v58, 0
    %v223 = vsel %vm80, %v59, 0
    %v226 = vsel %vm80, %v60, 0
    %v229 = vsel %vm80, %v61, 0
    %v232 = vsel %vm80, %v62, 0
    %v235 = vsel %vm80, %v63, 0
    %v238 = vsel %vm80, %v64, 0
    %v241 = vsel %vm80, %v65, 0
    %v244 = vsel %vm80, %v66, 0
    %v247 = vsel %vm80, %v67, 0
    %v250 = vsel %vm80, %v68, 0
    %v253 = vsel %vm80, %v69, 0
    %v256 = vsel %vm80, %v70, 0
    %v259 = vsel %vm80, %v71, 0
    %v262 = vsel %vm80, %v72, 0
    %v265 = vsel %vm80, %v73, 0
    %v268 = vsel %vm80, %v74, 0
    %v271 = vsel %vm80, %v75, 0
    %273 = vmatprep.subr.mxu0 0.0
    %274 = vmatpush1.msra.mxu0 %v76
    %275 = vmatprep.subr.mxu0 0.0
    %276 = vmatpush1.msra.mxu0 %v77
    %277 = vmatprep.subr.mxu0 0.0
    %278 = vmatpush1.msra.mxu0 %v78
    %279 = vmatprep.subr.mxu0 0.0
    %280 = vmatpush1.msra.mxu0 %v79
    %281 = vmatprep.subr.mxu0 0.0
    %282 = vmatpush1.msra.mxu0 0.0
    %283 = vmatprep.subr.mxu0 0.0
    %284 = vmatpush1.msra.mxu0 0.0
    %285 = vmatprep.subr.mxu0 0.0
    %286 = vmatpush1.msra.mxu0 0.0
    %287 = vmatprep.subr.mxu0 0.0
    %288 = vmatpush1.msra.mxu0 0.0
    %289 = vmatprep.subr.mxu0 0.0
    %290 = vmatpush1.msra.mxu0 0.0
    %291 = vmatprep.subr.mxu0 0.0
    %292 = vmatpush1.msra.mxu0 0.0
    %293 = vmatprep.subr.mxu0 0.0
    %294 = vmatpush1.msra.mxu0 0.0
    %295 = vmatprep.subr.mxu0 0.0
    %296 = vmatpush1.msra.mxu0 0.0
    %297 = vmatprep.subr.mxu0 0.0
    %298 = vmatpush1.msra.mxu0 0.0
    %299 = vmatprep.subr.mxu0 0.0
    %300 = vmatpush1.msra.mxu0 0.0
    %301 = vmatprep.subr.mxu0 0.0
    %302 = vmatpush1.msra.mxu0 0.0
    %303 = vmatprep.subr.mxu0 0.0
    %304 = vmatpush1.msra.mxu0 0.0
    %305 = vmatprep.subr.mxu0 0.0
    %306 = vmatpush1.msra.mxu0 0.0
    %307 = vmatprep.subr.mxu0 0.0
    %308 = vmatpush1.msra.mxu0 0.0
    %309 = vmatprep.subr.mxu0 0.0
    %310 = vmatpush1.msra.mxu0 0.0
    %311 = vmatprep.subr.mxu0 0.0
    %312 = vmatpush1.msra.mxu0 0.0
    %313 = vmatprep.subr.mxu0 0.0
    %314 = vmatpush1.msra.mxu0 0.0
    %315 = vmatprep.subr.mxu0 0.0
    %316 = vmatpush1.msra.mxu0 0.0
    %317 = vmatprep.subr.mxu0 0.0
    %318 = vmatpush1.msra.mxu0 0.0
    %319 = vmatprep.subr.mxu0 0.0
    %320 = vmatpush1.msra.mxu0 0.0
    %321 = vmatprep.subr.mxu0 0.0
    %322 = vmatpush1.msra.mxu0 0.0
    %323 = vmatprep.subr.mxu0 0.0
    %324 = vmatpush1.msra.mxu0 0.0
    %325 = vmatprep.subr.mxu0 0.0
    %326 = vmatpush1.msra.mxu0 0.0
    %327 = vmatprep.subr.mxu0 0.0
    %328 = vmatpush1.msra.mxu0 0.0
    %329 = vmatprep.subr.mxu0 0.0
    %330 = vmatpush1.msra.mxu0 0.0
    %331 = vmatprep.subr.mxu0 0.0
    %332 = vmatpush1.msra.mxu0 0.0
    %333 = vmatprep.subr.mxu0 0.0
    %334 = vmatpush1.msra.mxu0 0.0
    %335 = vmatprep.subr.mxu0 0.0
    %336 = vmatpush1.msra.mxu0 0.0
    %337 = vmatprep.mubr.f32.mxu0 0.0
    %338 = vmatmul.mubr.f32.gmra.mrb[0].mxu0 %v82
    %v339 = vpop.f32.mrb[0].mxu0
    %v340 = vadd.f32 0.0, %v339
    %v341 = vpop.f32.mrb[0].mxu0
    %342 = vmatprep.mubr.f32.mxu0 0.0
    %343 = vmatmul.mubr.f32.gmra.mrb[0].mxu0 %v85
    %v344 = vpop.f32.mrb[0].mxu0
    %v345 = vadd.f32 0.0, %v344
    %v346 = vpop.f32.mrb[0].mxu0
    %347 = vmatprep.mubr.f32.mxu0 0.0
    %348 = vmatmul.mubr.f32.gmra.mrb[0].mxu0 %v88
    %v349 = vpop.f32.mrb[0].mxu0
    %v350 = vadd.f32 0.0, %v349
    %v351 = vpop.f32.mrb[0].mxu0
    %352 = vmatprep.mubr.f32.mxu0 0.0
    %353 = vmatmul.mubr.f32.gmra.mrb[0].mxu0 %v91
    %v354 = vpop.f32.mrb[0].mxu0
    %v355 = vadd.f32 0.0, %v354
    %v356 = vpop.f32.mrb[0].mxu0
    %357 = vmatprep.mubr.f32.mxu0 0.0
    %358 = vmatmul.mubr.f32.gmra.mrb[0].mxu0 %v94
    %v359 = vpop.f32.mrb[0].mxu0
    %v360 = vadd.f32 0.0, %v359
    %v361 = vpop.f32.mrb[0].mxu0
    %362 = vmatprep.mubr.f32.mxu0 0.0
    %363 = vmatmul.mubr.f32.gmra.mrb[0].mxu0 %v97
    %v364 = vpop.f32.mrb[0].mxu0
    %v365 = vadd.f32 0.0, %v364
    %v366 = vpop.f32.mrb[0].mxu0
    %367 = vmatprep.mubr.f32.mxu0 0.0
    %368 = vmatmul.mubr.f32.gmra.mrb[0].mxu0 %v100
    %v369 = vpop.f32.mrb[0].mxu0
    %v370 = vadd.f32 0.0, %v369
    %v371 = vpop.f32.mrb[0].mxu0
    %372 = vmatprep.mubr.f32.mxu0 0.0
    %373 = vmatmul.mubr.f32.gmra.mrb[0].mxu0 %v103
    %v374 = vpop.f32.mrb[0].mxu0
    %v375 = vadd.f32 0.0, %v374
    %v376 = vpop.f32.mrb[0].mxu0
    %377 = vmatprep.mubr.f32.mxu0 0.0
    %378 = vmatmul.mubr.f32.gmra.mrb[0].mxu0 %v106
    %v379 = vpop.f32.mrb[0].mxu0
    %v380 = vadd.f32 0.0, %v379
    %v381 = vpop.f32.mrb[0].mxu0
    %382 = vmatprep.mubr.f32.mxu0 0.0
    %383 = vmatmul.mubr.f32.gmra.mrb[0].mxu0 %v109
    %v384 = vpop.f32.mrb[0].mxu0
    %v385 = vadd.f32 0.0, %v384
    %v386 = vpop.f32.mrb[0].mxu0
    %387 = vmatprep.mubr.f32.mxu0 0.0
    %388 = vmatmul.mubr.f32.gmra.mrb[0].mxu0 %v112
    %v389 = vpop.f32.mrb[0].mxu0
    %v390 = vadd.f32 0.0, %v389
    %v391 = vpop.f32.mrb[0].mxu0
    %392 = vmatprep.mubr.f32.mxu0 0.0
    %393 = vmatmul.mubr.f32.gmra.mrb[0].mxu0 %v115
    %v394 = vpop.f32.mrb[0].mxu0
    %v395 = vadd.f32 0.0, %v394
    %v396 = vpop.f32.mrb[0].mxu0
    %397 = vmatprep.mubr.f32.mxu0 0.0
    %398 = vmatmul.mubr.f32.gmra.mrb[0].mxu0 %v118
    %v399 = vpop.f32.mrb[0].mxu0
    %v400 = vadd.f32 0.0, %v399
    %v401 = vpop.f32.mrb[0].mxu0
    %402 = vmatprep.mubr.f32.mxu0 0.0
    %403 = vmatmul.mubr.f32.gmra.mrb[0].mxu0 %v121
    %v404 = vpop.f32.mrb[0].mxu0
    %v405 = vadd.f32 0.0, %v404
    %v406 = vpop.f32.mrb[0].mxu0
    %407 = vmatprep.mubr.f32.mxu0 0.0
    %408 = vmatmul.mubr.f32.gmra.mrb[0].mxu0 %v124
    %v409 = vpop.f32.mrb[0].mxu0
    %v410 = vadd.f32 0.0, %v409
    %v411 = vpop.f32.mrb[0].mxu0
    %412 = vmatprep.mubr.f32.mxu0 0.0
    %413 = vmatmul.mubr.f32.gmra.mrb[0].mxu0 %v127
    %v414 = vpop.f32.mrb[0].mxu0
    %v415 = vadd.f32 0.0, %v414
    %v416 = vpop.f32.mrb[0].mxu0
    %417 = vmatprep.mubr.f32.mxu0 0.0
    %418 = vmatmul.mubr.f32.gmra.mrb[0].mxu0 %v130
    %v419 = vpop.f32.mrb[0].mxu0
    %v420 = vadd.f32 0.0, %v419
    %v421 = vpop.f32.mrb[0].mxu0
    %422 = vmatprep.mubr.f32.mxu0 0.0
    %423 = vmatmul.mubr.f32.gmra.mrb[0].mxu0 %v133
    %v424 = vpop.f32.mrb[0].mxu0
    %v425 = vadd.f32 0.0, %v424
    %v426 = vpop.f32.mrb[0].mxu0
    %427 = vmatprep.mubr.f32.mxu0 0.0
    %428 = vmatmul.mubr.f32.gmra.mrb[0].mxu0 %v136
    %v429 = vpop.f32.mrb[0].mxu0
    %v430 = vadd.f32 0.0, %v429
    %v431 = vpop.f32.mrb[0].mxu0
    %432 = vmatprep.mubr.f32.mxu0 0.0
    %433 = vmatmul.mubr.f32.gmra.mrb[0].mxu0 %v139
    %v434 = vpop.f32.mrb[0].mxu0
    %v435 = vadd.f32 0.0, %v434
    %v436 = vpop.f32.mrb[0].mxu0
    %437 = vmatprep.mubr.f32.mxu0 0.0
    %438 = vmatmul.mubr.f32.gmra.mrb[0].mxu0 %v142
    %v439 = vpop.f32.mrb[0].mxu0
    %v440 = vadd.f32 0.0, %v439
    %v441 = vpop.f32.mrb[0].mxu0
    %442 = vmatprep.mubr.f32.mxu0 0.0
    %443 = vmatmul.mubr.f32.gmra.mrb[0].mxu0 %v145
    %v444 = vpop.f32.mrb[0].mxu0
    %v445 = vadd.f32 0.0, %v444
    %v446 = vpop.f32.mrb[0].mxu0
    %447 = vmatprep.mubr.f32.mxu0 0.0
    %448 = vmatmul.mubr.f32.gmra.mrb[0].mxu0 %v148
    %v449 = vpop.f32.mrb[0].mxu0
    %v450 = vadd.f32 0.0, %v449
    %v451 = vpop.f32.mrb[0].mxu0
    %452 = vmatprep.mubr.f32.mxu0 0.0
    %453 = vmatmul.mubr.f32.gmra.mrb[0].mxu0 %v151
    %v454 = vpop.f32.mrb[0].mxu0
    %v455 = vadd.f32 0.0, %v454
    %v456 = vpop.f32.mrb[0].mxu0
    %457 = vmatprep.mubr.f32.mxu0 0.0
    %458 = vmatmul.mubr.f32.gmra.mrb[0].mxu0 %v154
    %v459 = vpop.f32.mrb[0].mxu0
    %v460 = vadd.f32 0.0, %v459
    %v461 = vpop.f32.mrb[0].mxu0
    %462 = vmatprep.mubr.f32.mxu0 0.0
    %463 = vmatmul.mubr.f32.gmra.mrb[0].mxu0 %v157
    %v464 = vpop.f32.mrb[0].mxu0
    %v465 = vadd.f32 0.0, %v464
    %v466 = vpop.f32.mrb[0].mxu0
    %467 = vmatprep.mubr.f32.mxu0 0.0
    %468 = vmatmul.mubr.f32.gmra.mrb[0].mxu0 %v160
    %v469 = vpop.f32.mrb[0].mxu0
    %v470 = vadd.f32 0.0, %v469
    %v471 = vpop.f32.mrb[0].mxu0
    %472 = vmatprep.mubr.f32.mxu0 0.0
    %473 = vmatmul.mubr.f32.gmra.mrb[0].mxu0 %v163
    %v474 = vpop.f32.mrb[0].mxu0
    %v475 = vadd.f32 0.0, %v474
    %v476 = vpop.f32.mrb[0].mxu0
    %477 = vmatprep.mubr.f32.mxu0 0.0
    %478 = vmatmul.mubr.f32.gmra.mrb[0].mxu0 %v166
    %v479 = vpop.f32.mrb[0].mxu0
    %v480 = vadd.f32 0.0, %v479
    %v481 = vpop.f32.mrb[0].mxu0
    %482 = vmatprep.mubr.f32.mxu0 0.0
    %483 = vmatmul.mubr.f32.gmra.mrb[0].mxu0 %v169
    %v484 = vpop.f32.mrb[0].mxu0
    %v485 = vadd.f32 0.0, %v484
    %v486 = vpop.f32.mrb[0].mxu0
    %487 = vmatprep.mubr.f32.mxu0 0.0
    %488 = vmatmul.mubr.f32.gmra.mrb[0].mxu0 %v172
    %v489 = vpop.f32.mrb[0].mxu0
    %v490 = vadd.f32 0.0, %v489
    %v491 = vpop.f32.mrb[0].mxu0
    %492 = vmatprep.mubr.f32.mxu0 0.0
    %493 = vmatmul.mubr.f32.gmra.mrb[0].mxu0 %v175
    %v494 = vpop.f32.mrb[0].mxu0
    %v495 = vadd.f32 0.0, %v494
    %v496 = vpop.f32.mrb[0].mxu0
    %497 = vmatprep.mubr.f32.mxu0 0.0
    %498 = vmatmul.mubr.f32.gmra.mrb[0].mxu0 %v178
    %v499 = vpop.f32.mrb[0].mxu0
    %v500 = vadd.f32 0.0, %v499
    %v501 = vpop.f32.mrb[0].mxu0
    %502 = vmatprep.mubr.f32.mxu0 0.0
    %503 = vmatmul.mubr.f32.gmra.mrb[0].mxu0 %v181
    %v504 = vpop.f32.mrb[0].mxu0
    %v505 = vadd.f32 0.0, %v504
    %v506 = vpop.f32.mrb[0].mxu0
    %507 = vmatprep.mubr.f32.mxu0 0.0
    %508 = vmatmul.mubr.f32.gmra.mrb[0].mxu0 %v184
    %v509 = vpop.f32.mrb[0].mxu0
    %v510 = vadd.f32 0.0, %v509
    %v511 = vpop.f32.mrb[0].mxu0
    %512 = vmatprep.mubr.f32.mxu0 0.0
    %513 = vmatmul.mubr.f32.gmra.mrb[0].mxu0 %v187
    %v514 = vpop.f32.mrb[0].mxu0
    %v515 = vadd.f32 0.0, %v514
    %v516 = vpop.f32.mrb[0].mxu0
    %517 = vmatprep.mubr.f32.mxu0 0.0
    %518 = vmatmul.mubr.f32.gmra.mrb[0].mxu0 %v190
    %v519 = vpop.f32.mrb[0].mxu0
    %v520 = vadd.f32 0.0, %v519
    %v521 = vpop.f32.mrb[0].mxu0
    %522 = vmatprep.mubr.f32.mxu0 0.0
    %523 = vmatmul.mubr.f32.gmra.mrb[0].mxu0 %v193
    %v524 = vpop.f32.mrb[0].mxu0
    %v525 = vadd.f32 0.0, %v524
    %v526 = vpop.f32.mrb[0].mxu0
    %527 = vmatprep.mubr.f32.mxu0 0.0
    %528 = vmatmul.mubr.f32.gmra.mrb[0].mxu0 %v196
    %v529 = vpop.f32.mrb[0].mxu0
    %v530 = vadd.f32 0.0, %v529
    %v531 = vpop.f32.mrb[0].mxu0
    %532 = vmatprep.mubr.f32.mxu0 0.0
    %533 = vmatmul.mubr.f32.gmra.mrb[0].mxu0 %v199
    %v534 = vpop.f32.mrb[0].mxu0
    %v535 = vadd.f32 0.0, %v534
    %v536 = vpop.f32.mrb[0].mxu0
    %537 = vmatprep.mubr.f32.mxu0 0.0
    %538 = vmatmul.mubr.f32.gmra.mrb[0].mxu0 %v202
    %v539 = vpop.f32.mrb[0].mxu0
    %v540 = vadd.f32 0.0, %v539
    %v541 = vpop.f32.mrb[0].mxu0
    %542 = vmatprep.mubr.f32.mxu0 0.0
    %543 = vmatmul.mubr.f32.gmra.mrb[0].mxu0 %v205
    %v544 = vpop.f32.mrb[0].mxu0
    %v545 = vadd.f32 0.0, %v544
    %v546 = vpop.f32.mrb[0].mxu0
    %547 = vmatprep.mubr.f32.mxu0 0.0
    %548 = vmatmul.mubr.f32.gmra.mrb[0].mxu0 %v208
    %v549 = vpop.f32.mrb[0].mxu0
    %v550 = vadd.f32 0.0, %v549
    %v551 = vpop.f32.mrb[0].mxu0
    %552 = vmatprep.mubr.f32.mxu0 0.0
    %553 = vmatmul.mubr.f32.gmra.mrb[0].mxu0 %v211
    %v554 = vpop.f32.mrb[0].mxu0
    %v555 = vadd.f32 0.0, %v554
    %v556 = vpop.f32.mrb[0].mxu0
    %557 = vmatprep.mubr.f32.mxu0 0.0
    %558 = vmatmul.mubr.f32.gmra.mrb[0].mxu0 %v214
    %v559 = vpop.f32.mrb[0].mxu0
    %v560 = vadd.f32 0.0, %v559
    %v561 = vpop.f32.mrb[0].mxu0
    %562 = vmatprep.mubr.f32.mxu0 0.0
    %563 = vmatmul.mubr.f32.gmra.mrb[0].mxu0 %v217
    %v564 = vpop.f32.mrb[0].mxu0
    %v565 = vadd.f32 0.0, %v564
    %v566 = vpop.f32.mrb[0].mxu0
    %567 = vmatprep.mubr.f32.mxu0 0.0
    %568 = vmatmul.mubr.f32.gmra.mrb[0].mxu0 %v220
    %v569 = vpop.f32.mrb[0].mxu0
    %v570 = vadd.f32 0.0, %v569
    %v571 = vpop.f32.mrb[0].mxu0
    %572 = vmatprep.mubr.f32.mxu0 0.0
    %573 = vmatmul.mubr.f32.gmra.mrb[0].mxu0 %v223
    %v574 = vpop.f32.mrb[0].mxu0
    %v575 = vadd.f32 0.0, %v574
    %v576 = vpop.f32.mrb[0].mxu0
    %577 = vmatprep.mubr.f32.mxu0 0.0
    %578 = vmatmul.mubr.f32.gmra.mrb[0].mxu0 %v226
    %v579 = vpop.f32.mrb[0].mxu0
    %v580 = vadd.f32 0.0, %v579
    %v581 = vpop.f32.mrb[0].mxu0
    %582 = vmatprep.mubr.f32.mxu0 0.0
    %583 = vmatmul.mubr.f32.gmra.mrb[0].mxu0 %v229
    %v584 = vpop.f32.mrb[0].mxu0
    %v585 = vadd.f32 0.0, %v584
    %v586 = vpop.f32.mrb[0].mxu0
    %587 = vmatprep.mubr.f32.mxu0 0.0
    %588 = vmatmul.mubr.f32.gmra.mrb[0].mxu0 %v232
    %v589 = vpop.f32.mrb[0].mxu0
    %v590 = vadd.f32 0.0, %v589
    %v591 = vpop.f32.mrb[0].mxu0
    %592 = vmatprep.mubr.f32.mxu0 0.0
    %593 = vmatmul.mubr.f32.gmra.mrb[0].mxu0 %v235
    %v594 = vpop.f32.mrb[0].mxu0
    %v595 = vadd.f32 0.0, %v594
    %v596 = vpop.f32.mrb[0].mxu0
    %597 = vmatprep.mubr.f32.mxu0 0.0
    %598 = vmatmul.mubr.f32.gmra.mrb[0].mxu0 %v238
    %v599 = vpop.f32.mrb[0].mxu0
    %v600 = vadd.f32 0.0, %v599
    %v601 = vpop.f32.mrb[0].mxu0
    %602 = vmatprep.mubr.f32.mxu0 0.0
    %603 = vmatmul.mubr.f32.gmra.mrb[0].mxu0 %v241
    %v604 = vpop.f32.mrb[0].mxu0
    %v605 = vadd.f32 0.0, %v604
    %v606 = vpop.f32.mrb[0].mxu0
    %607 = vmatprep.mubr.f32.mxu0 0.0
    %608 = vmatmul.mubr.f32.gmra.mrb[0].mxu0 %v244
    %v609 = vpop.f32.mrb[0].mxu0
    %v610 = vadd.f32 0.0, %v609
    %v611 = vpop.f32.mrb[0].mxu0
    %612 = vmatprep.mubr.f32.mxu0 0.0
    %613 = vmatmul.mubr.f32.gmra.mrb[0].mxu0 %v247
    %v614 = vpop.f32.mrb[0].mxu0
    %v615 = vadd.f32 0.0, %v614
    %v616 = vpop.f32.mrb[0].mxu0
    %617 = vmatprep.mubr.f32.mxu0 0.0
    %618 = vmatmul.mubr.f32.gmra.mrb[0].mxu0 %v250
    %v619 = vpop.f32.mrb[0].mxu0
    %v620 = vadd.f32 0.0, %v619
    %v621 = vpop.f32.mrb[0].mxu0
    %622 = vmatprep.mubr.f32.mxu0 0.0
    %623 = vmatmul.mubr.f32.gmra.mrb[0].mxu0 %v253
    %v624 = vpop.f32.mrb[0].mxu0
    %v625 = vadd.f32 0.0, %v624
    %v626 = vpop.f32.mrb[0].mxu0
    %627 = vmatprep.mubr.f32.mxu0 0.0
    %628 = vmatmul.mubr.f32.gmra.mrb[0].mxu0 %v256
    %v629 = vpop.f32.mrb[0].mxu0
    %v630 = vadd.f32 0.0, %v629
    %v631 = vpop.f32.mrb[0].mxu0
    %632 = vmatprep.mubr.f32.mxu0 0.0
    %633 = vmatmul.mubr.f32.gmra.mrb[0].mxu0 %v259
    %v634 = vpop.f32.mrb[0].mxu0
    %v635 = vadd.f32 0.0, %v634
    %v636 = vpop.f32.mrb[0].mxu0
    %637 = vmatprep.mubr.f32.mxu0 0.0
    %638 = vmatmul.mubr.f32.gmra.mrb[0].mxu0 %v262
    %v639 = vpop.f32.mrb[0].mxu0
    %v640 = vadd.f32 0.0, %v639
    %v641 = vpop.f32.mrb[0].mxu0
    %642 = vmatprep.mubr.f32.mxu0 0.0
    %643 = vmatmul.mubr.f32.gmra.mrb[0].mxu0 %v265
    %v644 = vpop.f32.mrb[0].mxu0
    %v645 = vadd.f32 0.0, %v644
    %v646 = vpop.f32.mrb[0].mxu0
    %647 = vmatprep.mubr.f32.mxu0 0.0
    %648 = vmatmul.mubr.f32.gmra.mrb[0].mxu0 %v268
    %v649 = vpop.f32.mrb[0].mxu0
    %v650 = vadd.f32 0.0, %v649
    %v651 = vpop.f32.mrb[0].mxu0
    %652 = vmatprep.mubr.f32.mxu0 0.0
    %653 = vmatmul.mubr.f32.gmra.mrb[0].mxu0 %v271
    %v654 = vpop.f32.mrb[0].mxu0
    %v655 = vadd.f32 0.0, %v654
    %v656 = vpop.f32.mrb[0].mxu0
    %657 = vdwg.mxu0
    %658 = vst.msk [vmem:[#allocation2] sm:$0xff] %vm80, %v340
    %659 = vst.msk [vmem:[#allocation2 + $0x8] sm:$0xff] %vm80, %v345
    %660 = vst.msk [vmem:[#allocation2 + $0x10] sm:$0xff] %vm80, %v350
    %661 = vst.msk [vmem:[#allocation2 + $0x18] sm:$0xff] %vm80, %v355
    %662 = vst.msk [vmem:[#allocation2 + $0x20] sm:$0xff] %vm80, %v360
    %663 = vst.msk [vmem:[#allocation2 + $0x28] sm:$0xff] %vm80, %v365
    %664 = vst.msk [vmem:[#allocation2 + $0x30] sm:$0xff] %vm80, %v370
    %665 = vst.msk [vmem:[#allocation2 + $0x38] sm:$0xff] %vm80, %v375
    %666 = vst.msk [vmem:[#allocation2 + $0x40] sm:$0xff] %vm80, %v380
    %667 = vst.msk [vmem:[#allocation2 + $0x48] sm:$0xff] %vm80, %v385
    %668 = vst.msk [vmem:[#allocation2 + $0x50] sm:$0xff] %vm80, %v390
    %669 = vst.msk [vmem:[#allocation2 + $0x58] sm:$0xff] %vm80, %v395
    %670 = vst.msk [vmem:[#allocation2 + $0x60] sm:$0xff] %vm80, %v400
    %671 = vst.msk [vmem:[#allocation2 + $0x68] sm:$0xff] %vm80, %v405
    %672 = vst.msk [vmem:[#allocation2 + $0x70] sm:$0xff] %vm80, %v410
    %673 = vst.msk [vmem:[#allocation2 + $0x78] sm:$0xff] %vm80, %v415
    %674 = vst.msk [vmem:[#allocation2 + $0x80] sm:$0xff] %vm80, %v420
    %675 = vst.msk [vmem:[#allocation2 + $0x88] sm:$0xff] %vm80, %v425
    %676 = vst.msk [vmem:[#allocation2 + $0x90] sm:$0xff] %vm80, %v430
    %677 = vst.msk [vmem:[#allocation2 + $0x98] sm:$0xff] %vm80, %v435
    %678 = vst.msk [vmem:[#allocation2 + $0xa0] sm:$0xff] %vm80, %v440
    %679 = vst.msk [vmem:[#allocation2 + $0xa8] sm:$0xff] %vm80, %v445
    %680 = vst.msk [vmem:[#allocation2 + $0xb0] sm:$0xff] %vm80, %v450
    %681 = vst.msk [vmem:[#allocation2 + $0xb8] sm:$0xff] %vm80, %v455
    %682 = vst.msk [vmem:[#allocation2 + $0xc0] sm:$0xff] %vm80, %v460
    %683 = vst.msk [vmem:[#allocation2 + $0xc8] sm:$0xff] %vm80, %v465
    %684 = vst.msk [vmem:[#allocation2 + $0xd0] sm:$0xff] %vm80, %v470
    %685 = vst.msk [vmem:[#allocation2 + $0xd8] sm:$0xff] %vm80, %v475
    %686 = vst.msk [vmem:[#allocation2 + $0xe0] sm:$0xff] %vm80, %v480
    %687 = vst.msk [vmem:[#allocation2 + $0xe8] sm:$0xff] %vm80, %v485
    %688 = vst.msk [vmem:[#allocation2 + $0xf0] sm:$0xff] %vm80, %v490
    %689 = vst.msk [vmem:[#allocation2 + $0xf8] sm:$0xff] %vm80, %v495
    %690 = vst.msk [vmem:[#allocation2 + $0x100] sm:$0xff] %vm80, %v500
    %691 = vst.msk [vmem:[#allocation2 + $0x108] sm:$0xff] %vm80, %v505
    %692 = vst.msk [vmem:[#allocation2 + $0x110] sm:$0xff] %vm80, %v510
    %693 = vst.msk [vmem:[#allocation2 + $0x118] sm:$0xff] %vm80, %v515
    %694 = vst.msk [vmem:[#allocation2 + $0x120] sm:$0xff] %vm80, %v520
    %695 = vst.msk [vmem:[#allocation2 + $0x128] sm:$0xff] %vm80, %v525
    %696 = vst.msk [vmem:[#allocation2 + $0x130] sm:$0xff] %vm80, %v530
    %697 = vst.msk [vmem:[#allocation2 + $0x138] sm:$0xff] %vm80, %v535
    %698 = vst.msk [vmem:[#allocation2 + $0x140] sm:$0xff] %vm80, %v540
    %699 = vst.msk [vmem:[#allocation2 + $0x148] sm:$0xff] %vm80, %v545
    %700 = vst.msk [vmem:[#allocation2 + $0x150] sm:$0xff] %vm80, %v550
    %701 = vst.msk [vmem:[#allocation2 + $0x158] sm:$0xff] %vm80, %v555
    %702 = vst.msk [vmem:[#allocation2 + $0x160] sm:$0xff] %vm80, %v560
    %703 = vst.msk [vmem:[#allocation2 + $0x168] sm:$0xff] %vm80, %v565
    %704 = vst.msk [vmem:[#allocation2 + $0x170] sm:$0xff] %vm80, %v570
    %705 = vst.msk [vmem:[#allocation2 + $0x178] sm:$0xff] %vm80, %v575
    %706 = vst.msk [vmem:[#allocation2 + $0x180] sm:$0xff] %vm80, %v580
    %707 = vst.msk [vmem:[#allocation2 + $0x188] sm:$0xff] %vm80, %v585
    %708 = vst.msk [vmem:[#allocation2 + $0x190] sm:$0xff] %vm80, %v590
    %709 = vst.msk [vmem:[#allocation2 + $0x198] sm:$0xff] %vm80, %v595
    %710 = vst.msk [vmem:[#allocation2 + $0x1a0] sm:$0xff] %vm80, %v600
    %711 = vst.msk [vmem:[#allocation2 + $0x1a8] sm:$0xff] %vm80, %v605
    %712 = vst.msk [vmem:[#allocation2 + $0x1b0] sm:$0xff] %vm80, %v610
    %713 = vst.msk [vmem:[#allocation2 + $0x1b8] sm:$0xff] %vm80, %v615
    %714 = vst.msk [vmem:[#allocation2 + $0x1c0] sm:$0xff] %vm80, %v620
    %715 = vst.msk [vmem:[#allocation2 + $0x1c8] sm:$0xff] %vm80, %v625
    %716 = vst.msk [vmem:[#allocation2 + $0x1d0] sm:$0xff] %vm80, %v630
    %717 = vst.msk [vmem:[#allocation2 + $0x1d8] sm:$0xff] %vm80, %v635
    %718 = vst.msk [vmem:[#allocation2 + $0x1e0] sm:$0xff] %vm80, %v640
    %719 = vst.msk [vmem:[#allocation2 + $0x1e8] sm:$0xff] %vm80, %v645
    %720 = vst.msk [vmem:[#allocation2 + $0x1f0] sm:$0xff] %vm80, %v650
    %721 = vst.msk [vmem:[#allocation2 + $0x1f8] sm:$0xff] %vm80, %v655
    // Predicated region
    $region10: #{efficient_self_attention.7} parent=1 // pred_check
      _
    $region11: #{efficient_self_attention.7} parent=1 // pred_check_branch
      %723 = sbr.rel (0) target = $region13
    $region12: #{efficient_self_attention.7} parent=1 // pred_region
      %s725 = ssub.s32 8192, 8192
      %726 = vsyncadd [#allocation3], %s725
      %s727 = sshll.u32 [#allocation2], 4
      %s728 = int_to_ptr.vmem [resolvable:$true] %s727
      %733 = dma.vmem_to_hbm [thread:$0]  %s728, 8192, %s2, [#allocation3], 128, 128, 8
    $region13: #{efficient_self_attention.7} parent=1 // pred_fallthru
      _
    // Predicated region
    $region14: #{efficient_self_attention.7} parent=1 // pred_check
      _
    $region15: #{efficient_self_attention.7} parent=1 // pred_check_branch
      %735 = sbr.rel (0) target = $region17
    $region16: #{efficient_self_attention.7} parent=1 // pred_region
      %736 = dma.done [#allocation3], 8192
    $region17: #{efficient_self_attention.7} parent=1 // pred_fallthru
      _
    %737 = vsyncpa [#allocation3], 1

</llo_original>
